<compile_context>
chip_gen: v6e
topology: v6e:2x2x1
jax: 0.10.0
libtpu: 0.0.40
codegen_flags: <defaults>
</compile_context>

<pallas_src>
import jax
import jax.numpy as jnp
from jax.experimental import pallas as pl
from jax.experimental.pallas import tpu as pltpu

LANE = 128
VMEM_LIMIT = 32 * 1024 * 1024


def _pad_to(n, m):
    return ((n + m - 1) // m) * m


# ---------------------------------------------------------------------------
# Kernel 1: conv1x1 (BN scale folded into w) + bias + ReLU
# ---------------------------------------------------------------------------
def _conv1x1_bn_relu_kernel(x_ref, w_ref, b_ref, o_ref):
    acc = jnp.dot(x_ref[...], w_ref[...], preferred_element_type=jnp.float32)
    o_ref[...] = jnp.maximum(acc + b_ref[...], 0.0).astype(o_ref.dtype)


def conv1x1_bn_relu(x2d, w, bias, *, tm=256, out_dtype=jnp.bfloat16):
    """relu(x2d @ w + bias).  x2d:(M,K) bf16, w:(K,N) bf16, bias:(1,N) f32."""
    M, K = x2d.shape
    _, N = w.shape
    grid_m = (M + tm - 1) // tm
    m_pad = grid_m * tm
    if m_pad != M:
        x2d = jnp.pad(x2d, ((0, m_pad - M), (0, 0)))

    out = pl.pallas_call(
        _conv1x1_bn_relu_kernel,
        out_shape=jax.ShapeDtypeStruct((m_pad, N), out_dtype),
        grid=(grid_m,),
        in_specs=[
            pl.BlockSpec((tm, K), lambda i: (i, 0)),   # activation row tile
            pl.BlockSpec((K, N), lambda i: (0, 0)),    # full (scale-folded) weight
            pl.BlockSpec((1, N), lambda i: (0, 0)),    # BN bias
        ],
        out_specs=pl.BlockSpec((tm, N), lambda i: (i, 0)),
        compiler_params=pltpu.CompilerParams(
            dimension_semantics=("parallel",),
            vmem_limit_bytes=VMEM_LIMIT),
    )(x2d, w, bias)
    return out[:M] if m_pad != M else out


# ---------------------------------------------------------------------------
# Kernel 2: fused conv3x3(+bn2+ReLU) -> conv1x1(+bn3) + residual + ReLU
# One grid step = one image; the 3x3 conv is 9 accumulated shifted matmuls.
# ---------------------------------------------------------------------------
def _make_bottleneck_tail_kernel(H, W):
    HW = H * W

    def kernel(x1s_ref, w2_ref, b2_ref, w3_ref, b3_ref, res_ref, o_ref):
        cw = w2_ref.shape[2]
        # x1s: 3 column-shifted, row-padded copies of conv1 output, stacked
        # along the leading (untiled) axis: shape (3*(H+2), W, cw), bf16.
        x1s = x1s_ref[0]

        acc = jnp.zeros((HW, cw), jnp.float32)
        for kh in range(3):
            for kw in range(3):
                start = kw * (H + 2) + kh                 # static slice start
                patch = x1s[start:start + H].reshape(HW, cw)
                acc = acc + jnp.dot(patch, w2_ref[kh * 3 + kw],
                                    preferred_element_type=jnp.float32)

        hidden = jnp.maximum(acc + b2_ref[...], 0.0).astype(jnp.bfloat16)
        out = jnp.dot(hidden, w3_ref[...], preferred_element_type=jnp.float32)
        out = out + b3_ref[...] + res_ref[0]
        o_ref[0] = jnp.maximum(out, 0.0).astype(o_ref.dtype)

    return kernel


# ---------------------------------------------------------------------------
# BN folding
# ---------------------------------------------------------------------------
def _bn_fold(bn, eps=1e-5):
    gamma, beta, mean, var = bn
    scale = gamma / jnp.sqrt(var + eps)
    bias = beta - mean * scale
    return scale, bias


# ---------------------------------------------------------------------------
# Bottleneck forward (NCHW in / NCHW out, like PyTorch)
# ---------------------------------------------------------------------------
def bottleneck_forward(x_nchw, params):
    x = jnp.transpose(x_nchw, (0, 2, 3, 1)).astype(jnp.float32)   # NCHW -> NHWC
    N, H, W, cin = x.shape

    width = params["conv1_w"].shape[0]
    cout = params["conv3_w"].shape[0]
    assert cout == cin, "downsample=None requires inplanes == planes * expansion"

    cin_p = _pad_to(cin, LANE)
    cw_p = _pad_to(width, LANE)
    cout_p = _pad_to(cout, LANE)

    # --- fold BN into per-channel scale/bias; fold scale into weight columns ---
    s1, b1 = _bn_fold(params["bn1"])
    s2, b2 = _bn_fold(params["bn2"])
    s3, b3 = _bn_fold(params["bn3"])

    w1 = jnp.transpose(params["conv1_w"][:, :, 0, 0], (1, 0)) * s1[None, :]        # (cin, width)
    w2 = jnp.transpose(params["conv2_w"], (2, 3, 1, 0)) * s2[None, None, None, :]  # (3,3,in,out)
    w2 = w2.reshape(9, width, width)
    w3 = jnp.transpose(params["conv3_w"][:, :, 0, 0], (1, 0)) * s3[None, :]        # (width, cout)

    # --- zero-pad channels to 128 lanes; bf16 matmul operands, f32 biases ---
    w1p = jnp.zeros((cin_p, cw_p), jnp.float32).at[:cin, :width].set(w1).astype(jnp.bfloat16)
    w2p = jnp.zeros((9, cw_p, cw_p), jnp.float32).at[:, :width, :width].set(w2).astype(jnp.bfloat16)
    w3p = jnp.zeros((cw_p, cout_p), jnp.float32).at[:width, :cout].set(w3).astype(jnp.bfloat16)
    b1p = jnp.zeros((1, cw_p), jnp.float32).at[0, :width].set(b1)
    b2p = jnp.zeros((1, cw_p), jnp.float32).at[0, :width].set(b2)
    b3p = jnp.zeros((1, cout_p), jnp.float32).at[0, :cout].set(b3)

    # --- stage 1: conv1 (1x1) + bn1 + ReLU ---
    xp = jnp.zeros((N, H, W, cin_p), jnp.float32).at[..., :cin].set(x)
    x2d_bf16 = xp.reshape(N * H * W, cin_p).astype(jnp.bfloat16)
    out1 = conv1x1_bn_relu(x2d_bf16, w1p, b1p)                    # (N*H*W, cw_p) bf16
    out1 = out1.reshape(N, H, W, cw_p)

    # --- 3 column-shifted, row-padded views of out1 (replaces 9x im2col) ---
    out1_p = jnp.pad(out1, ((0, 0), (1, 1), (1, 1), (0, 0)))      # zero pad = conv2 padding
    shifts = jnp.concatenate([out1_p[:, :, kw:kw + W, :] for kw in range(3)], axis=1)
    # shifts: (N, 3*(H+2), W, cw_p) bf16

    # --- stage 2: fused conv2 + bn2 + ReLU -> conv3 + bn3 + residual + ReLU ---
    res = xp.reshape(N, H * W, cin_p)                              # f32 identity path
    kernel = _make_bottleneck_tail_kernel(H, W)
    out = pl.pallas_call(
        kernel,
        out_shape=jax.ShapeDtypeStruct((N, H * W, cout_p), jnp.float32),
        grid=(N,),
        in_specs=[
            pl.BlockSpec((1, 3 * (H + 2), W, cw_p), lambda n: (n, 0, 0, 0)),
            pl.BlockSpec((9, cw_p, cw_p), lambda n: (0, 0, 0)),
            pl.BlockSpec((1, cw_p), lambda n: (0, 0)),
            pl.BlockSpec((cw_p, cout_p), lambda n: (0, 0)),
            pl.BlockSpec((1, cout_p), lambda n: (0, 0)),
            pl.BlockSpec((1, H * W, cout_p), lambda n: (n, 0, 0)),
        ],
        out_specs=pl.BlockSpec((1, H * W, cout_p), lambda n: (n, 0, 0)),
        compiler_params=pltpu.CompilerParams(
            dimension_semantics=("parallel",),
            vmem_limit_bytes=VMEM_LIMIT),
    )(shifts, w2p, b2p, w3p, b3p, res)

    out = out[:, :, :cout].reshape(N, H, W, cout)
    return jnp.transpose(out, (0, 3, 1, 2))                        # NHWC -> NCHW


# ---------------------------------------------------------------------------
# Parameter init (PyTorch BatchNorm2d defaults) and pure-JAX reference
# ---------------------------------------------------------------------------
def init_bottleneck_params(key, inplanes, planes, base_width=64, groups=1,
                           expansion=4, dtype=jnp.float32):
    width = int(planes * (base_width / 64.0)) * groups
    out_planes = planes * expansion
    k1, k2, k3 = jax.random.split(key, 3)

    def bn_default(c):
        return (jnp.ones((c,), dtype), jnp.zeros((c,), dtype),
                jnp.zeros((c,), dtype), jnp.ones((c,), dtype))

    return {
        "conv1_w": 0.1 * jax.random.normal(k1, (width, inplanes, 1, 1), dtype),
        "bn1": bn_default(width),
        "conv2_w": 0.1 * jax.random.normal(k2, (width, width, 3, 3), dtype),
        "bn2": bn_default(width),
        "conv3_w": 0.1 * jax.random.normal(k3, (out_planes, width, 1, 1), dtype),
        "bn3": bn_default(out_planes),
    }


def _reference_forward(x_nchw, params, eps=1e-5):
    x = jnp.transpose(x_nchw, (0, 2, 3, 1)).astype(jnp.float32)
    _, H, W, _ = x.shape

    def bn(y, p):
        g, b, m, v = p
        return (y - m) / jnp.sqrt(v + eps) * g + b

    w1 = params["conv1_w"][:, :, 0, 0]
    out = jnp.maximum(bn(jnp.einsum("nhwc,oc->nhwo", x, w1), params["bn1"]), 0.0)
    w2 = params["conv2_w"]
    xp = jnp.pad(out, ((0, 0), (1, 1), (1, 1), (0, 0)))
    acc = jnp.zeros_like(out)
    for kh in range(3):
        for kw in range(3):
            acc = acc + jnp.einsum("nhwc,oc->nhwo",
                                   xp[:, kh:kh + H, kw:kw + W, :], w2[:, :, kh, kw])
    out = jnp.maximum(bn(acc, params["bn2"]), 0.0)
    w3 = params["conv3_w"][:, :, 0, 0]
    out = jnp.maximum(bn(jnp.einsum("nhwc,oc->nhwo", out, w3), params["bn3"]) + x, 0.0)
    return jnp.transpose(out, (0, 3, 1, 2))


if __name__ == "__main__":
    # batch=2, inplanes=16, planes=4 (width=4, out=16), spatial 16x16 — NCHW input.
    key = jax.random.PRNGKey(0)
    k_x, k_p = jax.random.split(key)
    inplanes, planes = 16, 4
    x = jax.random.normal(k_x, (2, inplanes, 16, 16), jnp.float32)
    params = init_bottleneck_params(k_p, inplanes, planes)

    out = jax.jit(bottleneck_forward)(x, params)
    out = jax.block_until_ready(out)
    assert out.shape == (2, planes * 4, 16, 16)
    assert bool(jnp.all(out >= 0.0))                       # final ReLU

    ref = _reference_forward(x, params)
    assert bool(jnp.allclose(out, ref, atol=2e-2, rtol=2e-2)), \
        float(jnp.max(jnp.abs(out - ref)))
    print("KERNEL_OK")
</pallas_src>

<mosaic_0001>
module attributes {stable_mosaic.version = 11 : i64} {
  func.func @_conv1x1_bn_relu_kernel(%arg0: i32, %arg1: memref<256x128xbf16, #tpu.memory_space<vmem>>, %arg2: memref<128x128xbf16, #tpu.memory_space<vmem>>, %arg3: memref<1x128xf32, #tpu.memory_space<vmem>>, %arg4: memref<256x128xbf16, #tpu.memory_space<vmem>>) attributes {dimension_semantics = [#tpu.dimension_semantics<parallel>], iteration_bounds = array<i64: 2>, scalar_prefetch = 0 : i64, scratch_operands = 0 : i64, tpu.core_type = #tpu.core_type<tc>, window_params = [{transform_indices = @transform_0, window_bounds = array<i64: 256, 128>}, {pipeline_mode = #tpu.pipeline_mode<synchronous>, transform_indices = @transform_1, window_bounds = array<i64: 128, 128>}, {pipeline_mode = #tpu.pipeline_mode<synchronous>, transform_indices = @transform_2, window_bounds = array<i64: 1, 128>}, {transform_indices = @transform_3, window_bounds = array<i64: 256, 128>}]} {
    %c0 = arith.constant 0 : index
    %c0_0 = arith.constant 0 : index
    %0 = vector.load %arg1[%c0, %c0_0] : memref<256x128xbf16, #tpu.memory_space<vmem>>, vector<256x128xbf16>
    %c0_1 = arith.constant 0 : index
    %c0_2 = arith.constant 0 : index
    %1 = vector.load %arg2[%c0_1, %c0_2] : memref<128x128xbf16, #tpu.memory_space<vmem>>, vector<128x128xbf16>
    %cst = arith.constant dense<0.000000e+00> : vector<256x128xf32>
    %2 = tpu.matmul %0, %1, %cst {dimension_numbers = #tpu.dot_dimension_numbers<[1], [0], [0], [1], [0, 0, 1, 1], [], []>} : vector<256x128xbf16>, vector<128x128xbf16>, vector<256x128xf32> -> vector<256x128xf32>
    %c0_3 = arith.constant 0 : index
    %c0_4 = arith.constant 0 : index
    %3 = vector.load %arg3[%c0_3, %c0_4] : memref<1x128xf32, #tpu.memory_space<vmem>>, vector<1x128xf32>
    %4 = vector.broadcast %3 : vector<1x128xf32> to vector<256x128xf32>
    %5 = arith.addf %2, %4 : vector<256x128xf32>
    %cst_5 = arith.constant 0.000000e+00 : f32
    %6 = vector.broadcast %cst_5 : f32 to vector<256x128xf32>
    %7 = arith.maximumf %5, %6 : vector<256x128xf32>
    %8 = arith.truncf %7 : vector<256x128xf32> to vector<256x128xbf16>
    %c0_6 = arith.constant 0 : index
    %c0_7 = arith.constant 0 : index
    %9 = vector.load %arg4[%c0_6, %c0_7] : memref<256x128xbf16, #tpu.memory_space<vmem>>, vector<256x128xbf16>
    tpu.vector_store %arg4[%c0_6, %c0_7], %8 {strides = array<i32>} : memref<256x128xbf16, #tpu.memory_space<vmem>>, vector<256x128xbf16>,
    return
  }
  func.func @transform_0(%arg0: i32) -> (i32, i32) {
    %c0_i32 = arith.constant 0 : i32
    %c0_i32_0 = arith.constant 0 : i32
    return %arg0, %c0_i32 : i32, i32
  }
  func.func @transform_1(%arg0: i32) -> (i32, i32) {
    %c0_i32 = arith.constant 0 : i32
    %c0_i32_0 = arith.constant 0 : i32
    %c0_i32_1 = arith.constant 0 : i32
    return %c0_i32, %c0_i32_0 : i32, i32
  }
  func.func @transform_2(%arg0: i32) -> (i32, i32) {
    %c0_i32 = arith.constant 0 : i32
    %c0_i32_0 = arith.constant 0 : i32
    %c0_i32_1 = arith.constant 0 : i32
    return %c0_i32, %c0_i32_0 : i32, i32
  }
  func.func @transform_3(%arg0: i32) -> (i32, i32) {
    %c0_i32 = arith.constant 0 : i32
    %c0_i32_0 = arith.constant 0 : i32
    return %arg0, %c0_i32 : i32, i32
  }
}

module attributes {stable_mosaic.version = 11 : i64} {
  func.func @kernel(%arg0: i32, %arg1: memref<1x54x16x128xbf16, #tpu.memory_space<vmem>>, %arg2: memref<9x128x128xbf16, #tpu.memory_space<vmem>>, %arg3: memref<1x128xf32, #tpu.memory_space<vmem>>, %arg4: memref<128x128xbf16, #tpu.memory_space<vmem>>, %arg5: memref<1x128xf32, #tpu.memory_space<vmem>>, %arg6: memref<1x256x128xf32, #tpu.memory_space<vmem>>, %arg7: memref<1x256x128xf32, #tpu.memory_space<vmem>>) attributes {dimension_semantics = [#tpu.dimension_semantics<parallel>], iteration_bounds = array<i64: 2>, scalar_prefetch = 0 : i64, scratch_operands = 0 : i64, tpu.core_type = #tpu.core_type<tc>, window_params = [{transform_indices = @transform_0, window_bounds = array<i64: 1, 54, 16, 128>}, {pipeline_mode = #tpu.pipeline_mode<synchronous>, transform_indices = @transform_1, window_bounds = array<i64: 9, 128, 128>}, {pipeline_mode = #tpu.pipeline_mode<synchronous>, transform_indices = @transform_2, window_bounds = array<i64: 1, 128>}, {pipeline_mode = #tpu.pipeline_mode<synchronous>, transform_indices = @transform_3, window_bounds = array<i64: 128, 128>}, {pipeline_mode = #tpu.pipeline_mode<synchronous>, transform_indices = @transform_4, window_bounds = array<i64: 1, 128>}, {transform_indices = @transform_5, window_bounds = array<i64: 1, 256, 128>}, {transform_indices = @transform_6, window_bounds = array<i64: 1, 256, 128>}]} {
    %c0 = arith.constant 0 : index
    %c0_0 = arith.constant 0 : index
    %c0_1 = arith.constant 0 : index
    %c0_2 = arith.constant 0 : index
    %0 = vector.load %arg1[%c0, %c0_0, %c0_1, %c0_2] : memref<1x54x16x128xbf16, #tpu.memory_space<vmem>>, vector<1x54x16x128xbf16>
    %1 = vector.shape_cast %0 : vector<1x54x16x128xbf16> to vector<54x16x128xbf16>
    %cst = arith.constant 0.000000e+00 : f32
    %2 = vector.broadcast %cst : f32 to vector<256x128xf32>
    %3 = vector.extract_strided_slice %1 {offsets = [0, 0, 0], sizes = [16, 16, 128], strides = [1, 1, 1]} : vector<54x16x128xbf16> to vector<16x16x128xbf16>
    %4 = vector.shape_cast %3 : vector<16x16x128xbf16> to vector<256x128xbf16>
    %c0_3 = arith.constant 0 : index
    %c0_4 = arith.constant 0 : index
    %c0_5 = arith.constant 0 : index
    %5 = vector.load %arg2[%c0_3, %c0_4, %c0_5] : memref<9x128x128xbf16, #tpu.memory_space<vmem>>, vector<1x128x128xbf16>
    %6 = vector.shape_cast %5 : vector<1x128x128xbf16> to vector<128x128xbf16>
    %cst_6 = arith.constant dense<0.000000e+00> : vector<256x128xf32>
    %7 = tpu.matmul %4, %6, %cst_6 {dimension_numbers = #tpu.dot_dimension_numbers<[1], [0], [0], [1], [0, 0, 1, 1], [], []>} : vector<256x128xbf16>, vector<128x128xbf16>, vector<256x128xf32> -> vector<256x128xf32>
    %8 = arith.addf %2, %7 : vector<256x128xf32>
    %9 = vector.extract_strided_slice %1 {offsets = [18, 0, 0], sizes = [16, 16, 128], strides = [1, 1, 1]} : vector<54x16x128xbf16> to vector<16x16x128xbf16>
    %10 = vector.shape_cast %9 : vector<16x16x128xbf16> to vector<256x128xbf16>
    %c1 = arith.constant 1 : index
    %c0_7 = arith.constant 0 : index
    %c0_8 = arith.constant 0 : index
    %11 = vector.load %arg2[%c1, %c0_7, %c0_8] : memref<9x128x128xbf16, #tpu.memory_space<vmem>>, vector<1x128x128xbf16>
    %12 = vector.shape_cast %11 : vector<1x128x128xbf16> to vector<128x128xbf16>
    %cst_9 = arith.constant dense<0.000000e+00> : vector<256x128xf32>
    %13 = tpu.matmul %10, %12, %cst_9 {dimension_numbers = #tpu.dot_dimension_numbers<[1], [0], [0], [1], [0, 0, 1, 1], [], []>} : vector<256x128xbf16>, vector<128x128xbf16>, vector<256x128xf32> -> vector<256x128xf32>
    %14 = arith.addf %8, %13 : vector<256x128xf32>
    %15 = vector.extract_strided_slice %1 {offsets = [36, 0, 0], sizes = [16, 16, 128], strides = [1, 1, 1]} : vector<54x16x128xbf16> to vector<16x16x128xbf16>
    %16 = vector.shape_cast %15 : vector<16x16x128xbf16> to vector<256x128xbf16>
    %c2 = arith.constant 2 : index
    %c0_10 = arith.constant 0 : index
    %c0_11 = arith.constant 0 : index
    %17 = vector.load %arg2[%c2, %c0_10, %c0_11] : memref<9x128x128xbf16, #tpu.memory_space<vmem>>, vector<1x128x128xbf16>
    %18 = vector.shape_cast %17 : vector<1x128x128xbf16> to vector<128x128xbf16>
    %cst_12 = arith.constant dense<0.000000e+00> : vector<256x128xf32>
    %19 = tpu.matmul %16, %18, %cst_12 {dimension_numbers = #tpu.dot_dimension_numbers<[1], [0], [0], [1], [0, 0, 1, 1], [], []>} : vector<256x128xbf16>, vector<128x128xbf16>, vector<256x128xf32> -> vector<256x128xf32>
    %20 = arith.addf %14, %19 : vector<256x128xf32>
    %21 = vector.extract_strided_slice %1 {offsets = [1, 0, 0], sizes = [16, 16, 128], strides = [1, 1, 1]} : vector<54x16x128xbf16> to vector<16x16x128xbf16>
    %22 = vector.shape_cast %21 : vector<16x16x128xbf16> to vector<256x128xbf16>
    %c3 = arith.constant 3 : index
    %c0_13 = arith.constant 0 : index
    %c0_14 = arith.constant 0 : index
    %23 = vector.load %arg2[%c3, %c0_13, %c0_14] : memref<9x128x128xbf16, #tpu.memory_space<vmem>>, vector<1x128x128xbf16>
    %24 = vector.shape_cast %23 : vector<1x128x128xbf16> to vector<128x128xbf16>
    %cst_15 = arith.constant dense<0.000000e+00> : vector<256x128xf32>
    %25 = tpu.matmul %22, %24, %cst_15 {dimension_numbers = #tpu.dot_dimension_numbers<[1], [0], [0], [1], [0, 0, 1, 1], [], []>} : vector<256x128xbf16>, vector<128x128xbf16>, vector<256x128xf32> -> vector<256x128xf32>
    %26 = arith.addf %20, %25 : vector<256x128xf32>
    %27 = vector.extract_strided_slice %1 {offsets = [19, 0, 0], sizes = [16, 16, 128], strides = [1, 1, 1]} : vector<54x16x128xbf16> to vector<16x16x128xbf16>
    %28 = vector.shape_cast %27 : vector<16x16x128xbf16> to vector<256x128xbf16>
    %c4 = arith.constant 4 : index
    %c0_16 = arith.constant 0 : index
    %c0_17 = arith.constant 0 : index
    %29 = vector.load %arg2[%c4, %c0_16, %c0_17] : memref<9x128x128xbf16, #tpu.memory_space<vmem>>, vector<1x128x128xbf16>
    %30 = vector.shape_cast %29 : vector<1x128x128xbf16> to vector<128x128xbf16>
    %cst_18 = arith.constant dense<0.000000e+00> : vector<256x128xf32>
    %31 = tpu.matmul %28, %30, %cst_18 {dimension_numbers = #tpu.dot_dimension_numbers<[1], [0], [0], [1], [0, 0, 1, 1], [], []>} : vector<256x128xbf16>, vector<128x128xbf16>, vector<256x128xf32> -> vector<256x128xf32>
    %32 = arith.addf %26, %31 : vector<256x128xf32>
    %33 = vector.extract_strided_slice %1 {offsets = [37, 0, 0], sizes = [16, 16, 128], strides = [1, 1, 1]} : vector<54x16x128xbf16> to vector<16x16x128xbf16>
    %34 = vector.shape_cast %33 : vector<16x16x128xbf16> to vector<256x128xbf16>
    %c5 = arith.constant 5 : index
    %c0_19 = arith.constant 0 : index
    %c0_20 = arith.constant 0 : index
    %35 = vector.load %arg2[%c5, %c0_19, %c0_20] : memref<9x128x128xbf16, #tpu.memory_space<vmem>>, vector<1x128x128xbf16>
    %36 = vector.shape_cast %35 : vector<1x128x128xbf16> to vector<128x128xbf16>
    %cst_21 = arith.constant dense<0.000000e+00> : vector<256x128xf32>
    %37 = tpu.matmul %34, %36, %cst_21 {dimension_numbers = #tpu.dot_dimension_numbers<[1], [0], [0], [1], [0, 0, 1, 1], [], []>} : vector<256x128xbf16>, vector<128x128xbf16>, vector<256x128xf32> -> vector<256x128xf32>
    %38 = arith.addf %32, %37 : vector<256x128xf32>
    %39 = vector.extract_strided_slice %1 {offsets = [2, 0, 0], sizes = [16, 16, 128], strides = [1, 1, 1]} : vector<54x16x128xbf16> to vector<16x16x128xbf16>
    %40 = vector.shape_cast %39 : vector<16x16x128xbf16> to vector<256x128xbf16>
    %c6 = arith.constant 6 : index
    %c0_22 = arith.constant 0 : index
    %c0_23 = arith.constant 0 : index
    %41 = vector.load %arg2[%c6, %c0_22, %c0_23] : memref<9x128x128xbf16, #tpu.memory_space<vmem>>, vector<1x128x128xbf16>
    %42 = vector.shape_cast %41 : vector<1x128x128xbf16> to vector<128x128xbf16>
    %cst_24 = arith.constant dense<0.000000e+00> : vector<256x128xf32>
    %43 = tpu.matmul %40, %42, %cst_24 {dimension_numbers = #tpu.dot_dimension_numbers<[1], [0], [0], [1], [0, 0, 1, 1], [], []>} : vector<256x128xbf16>, vector<128x128xbf16>, vector<256x128xf32> -> vector<256x128xf32>
    %44 = arith.addf %38, %43 : vector<256x128xf32>
    %45 = vector.extract_strided_slice %1 {offsets = [20, 0, 0], sizes = [16, 16, 128], strides = [1, 1, 1]} : vector<54x16x128xbf16> to vector<16x16x128xbf16>
    %46 = vector.shape_cast %45 : vector<16x16x128xbf16> to vector<256x128xbf16>
    %c7 = arith.constant 7 : index
    %c0_25 = arith.constant 0 : index
    %c0_26 = arith.constant 0 : index
    %47 = vector.load %arg2[%c7, %c0_25, %c0_26] : memref<9x128x128xbf16, #tpu.memory_space<vmem>>, vector<1x128x128xbf16>
    %48 = vector.shape_cast %47 : vector<1x128x128xbf16> to vector<128x128xbf16>
    %cst_27 = arith.constant dense<0.000000e+00> : vector<256x128xf32>
    %49 = tpu.matmul %46, %48, %cst_27 {dimension_numbers = #tpu.dot_dimension_numbers<[1], [0], [0], [1], [0, 0, 1, 1], [], []>} : vector<256x128xbf16>, vector<128x128xbf16>, vector<256x128xf32> -> vector<256x128xf32>
    %50 = arith.addf %44, %49 : vector<256x128xf32>
    %51 = vector.extract_strided_slice %1 {offsets = [38, 0, 0], sizes = [16, 16, 128], strides = [1, 1, 1]} : vector<54x16x128xbf16> to vector<16x16x128xbf16>
    %52 = vector.shape_cast %51 : vector<16x16x128xbf16> to vector<256x128xbf16>
    %c8 = arith.constant 8 : index
    %c0_28 = arith.constant 0 : index
    %c0_29 = arith.constant 0 : index
    %53 = vector.load %arg2[%c8, %c0_28, %c0_29] : memref<9x128x128xbf16, #tpu.memory_space<vmem>>, vector<1x128x128xbf16>
    %54 = vector.shape_cast %53 : vector<1x128x128xbf16> to vector<128x128xbf16>
    %cst_30 = arith.constant dense<0.000000e+00> : vector<256x128xf32>
    %55 = tpu.matmul %52, %54, %cst_30 {dimension_numbers = #tpu.dot_dimension_numbers<[1], [0], [0], [1], [0, 0, 1, 1], [], []>} : vector<256x128xbf16>, vector<128x128xbf16>, vector<256x128xf32> -> vector<256x128xf32>
    %56 = arith.addf %50, %55 : vector<256x128xf32>
    %c0_31 = arith.constant 0 : index
    %c0_32 = arith.constant 0 : index
    %57 = vector.load %arg3[%c0_31, %c0_32] : memref<1x128xf32, #tpu.memory_space<vmem>>, vector<1x128xf32>
    %58 = vector.broadcast %57 : vector<1x128xf32> to vector<256x128xf32>
    %59 = arith.addf %56, %58 : vector<256x128xf32>
    %cst_33 = arith.constant 0.000000e+00 : f32
    %60 = vector.broadcast %cst_33 : f32 to vector<256x128xf32>
    %61 = arith.maximumf %59, %60 : vector<256x128xf32>
    %62 = arith.truncf %61 : vector<256x128xf32> to vector<256x128xbf16>
    %c0_34 = arith.constant 0 : index
    %c0_35 = arith.constant 0 : index
    %63 = vector.load %arg4[%c0_34, %c0_35] : memref<128x128xbf16, #tpu.memory_space<vmem>>, vector<128x128xbf16>
    %cst_36 = arith.constant dense<0.000000e+00> : vector<256x128xf32>
    %64 = tpu.matmul %62, %63, %cst_36 {dimension_numbers = #tpu.dot_dimension_numbers<[1], [0], [0], [1], [0, 0, 1, 1], [], []>} : vector<256x128xbf16>, vector<128x128xbf16>, vector<256x128xf32> -> vector<256x128xf32>
    %c0_37 = arith.constant 0 : index
    %c0_38 = arith.constant 0 : index
    %65 = vector.load %arg5[%c0_37, %c0_38] : memref<1x128xf32, #tpu.memory_space<vmem>>, vector<1x128xf32>
    %66 = vector.broadcast %65 : vector<1x128xf32> to vector<256x128xf32>
    %67 = arith.addf %64, %66 : vector<256x128xf32>
    %c0_39 = arith.constant 0 : index
    %c0_40 = arith.constant 0 : index
    %c0_41 = arith.constant 0 : index
    %68 = vector.load %arg6[%c0_39, %c0_40, %c0_41] : memref<1x256x128xf32, #tpu.memory_space<vmem>>, vector<1x256x128xf32>
    %69 = vector.shape_cast %68 : vector<1x256x128xf32> to vector<256x128xf32>
    %70 = arith.addf %67, %69 : vector<256x128xf32>
    %cst_42 = arith.constant 0.000000e+00 : f32
    %71 = vector.broadcast %cst_42 : f32 to vector<256x128xf32>
    %72 = arith.maximumf %70, %71 : vector<256x128xf32>
    %c0_43 = arith.constant 0 : index
    %c0_44 = arith.constant 0 : index
    %c0_45 = arith.constant 0 : index
    %73 = vector.load %arg7[%c0_43, %c0_44, %c0_45] : memref<1x256x128xf32, #tpu.memory_space<vmem>>, vector<1x256x128xf32>
    %74 = vector.shape_cast %73 : vector<1x256x128xf32> to vector<256x128xf32>
    %75 = vector.shape_cast %72 : vector<256x128xf32> to vector<1x256x128xf32>
    tpu.vector_store %arg7[%c0_43, %c0_44, %c0_45], %75 {strides = array<i32>} : memref<1x256x128xf32, #tpu.memory_space<vmem>>, vector<1x256x128xf32>,
    return
  }
  func.func @transform_0(%arg0: i32) -> (i32, i32, i32, i32) {
    %c0_i32 = arith.constant 0 : i32
    %c0_i32_0 = arith.constant 0 : i32
    %c0_i32_1 = arith.constant 0 : i32
    %c0_i32_2 = arith.constant 0 : i32
    return %arg0, %c0_i32, %c0_i32_0, %c0_i32_1 : i32, i32, i32, i32
  }
  func.func @transform_1(%arg0: i32) -> (i32, i32, i32) {
    %c0_i32 = arith.constant 0 : i32
    %c0_i32_0 = arith.constant 0 : i32
    %c0_i32_1 = arith.constant 0 : i32
    %c0_i32_2 = arith.constant 0 : i32
    return %c0_i32, %c0_i32_0, %c0_i32_1 : i32, i32, i32
  }
  func.func @transform_2(%arg0: i32) -> (i32, i32) {
    %c0_i32 = arith.constant 0 : i32
    %c0_i32_0 = arith.constant 0 : i32
    %c0_i32_1 = arith.constant 0 : i32
    return %c0_i32, %c0_i32_0 : i32, i32
  }
  func.func @transform_3(%arg0: i32) -> (i32, i32) {
    %c0_i32 = arith.constant 0 : i32
    %c0_i32_0 = arith.constant 0 : i32
    %c0_i32_1 = arith.constant 0 : i32
    return %c0_i32, %c0_i32_0 : i32, i32
  }
  func.func @transform_4(%arg0: i32) -> (i32, i32) {
    %c0_i32 = arith.constant 0 : i32
    %c0_i32_0 = arith.constant 0 : i32
    %c0_i32_1 = arith.constant 0 : i32
    return %c0_i32, %c0_i32_0 : i32, i32
  }
  func.func @transform_5(%arg0: i32) -> (i32, i32, i32) {
    %c0_i32 = arith.constant 0 : i32
    %c0_i32_0 = arith.constant 0 : i32
    %c0_i32_1 = arith.constant 0 : i32
    return %arg0, %c0_i32, %c0_i32_0 : i32, i32, i32
  }
  func.func @transform_6(%arg0: i32) -> (i32, i32, i32) {
    %c0_i32 = arith.constant 0 : i32
    %c0_i32_0 = arith.constant 0 : i32
    %c0_i32_1 = arith.constant 0 : i32
    return %arg0, %c0_i32, %c0_i32_0 : i32, i32, i32
  }
}

</mosaic_0001>

<llo_original>
// kernel: bottleneck_forward.2
$region0: #{bottleneck_forward.2}
  #allocation0 [shape = 'u32[]', space=smem, size = 0x4, offset = 0x4, fixed_abs, tag = 'smem constant byte address 0x4 - core index']
  #allocation1 [shape = 'u32[144,128]{1,0:T(1,128)}', space=vmem, size = 0x12000, scoped, tag = 'internal scratch']
  %s0 = inlined_call_operand.vmem [shape: bf16[512,128], index: 0, kind: input, shape index: {}]
  %s1 = inlined_call_operand.vmem [shape: bf16[128,128], index: 1, kind: input, shape index: {}]
  %s2 = inlined_call_operand.vmem [shape: f32[1,128], index: 2, kind: input, shape index: {}]
  %s3 = inlined_call_operand.vmem [shape: bf16[512,128], index: 3, kind: output, shape index: {}]
  %s4 = sld [smem:[#allocation0]]
  $region45: #{bottleneck_forward.2} parent=0
    _
  %s6 = ssub.s32 1, %s4
  %s7 = scalar_select 0, %s6, %s4
  loop: start=0, step=1, limit=4
  $region2: #{bottleneck_forward.2} parent=0 // loop_pre_header
    _
  $region3: #{bottleneck_forward.2} parent=0 // loop_header
    %s9 = sphi 0, %s13
    %p10 = scmp.ge.s32.totalorder %s9, 4
    %s19 = sphi 0, %s21
    %s22 = sphi 0, %s19
    %s23 = sphi 0, %s22
    %s39 = sphi 0, %s23
    %s43 = sphi 0, %s43
    %s45 = sphi 0, %s43
    %s46 = sphi 0, %s45
    %s60 = sphi 0, %s46
    %s64 = sphi 0, %s64
    %s66 = sphi 0, %s64
    %s67 = sphi 0, %s66
    %s81 = sphi 0, %s67
    %s87 = sphi 0, %s89
    %s90 = sphi 0, %s87
    %s91 = sphi 0, %s90
    %s107 = sphi 0, %s91
  $region4: #{bottleneck_forward.2} parent=0 // loop_header_branch
    %12 = sbr.rel (%p10) target = $region8
  $region5: #{bottleneck_forward.2} parent=0 // loop_body
    %s14 = ssub.s32 %s9, 1
    %s15 = ssub.s32 %s9, 2
    %s16 = sadd.s32 %s9, 1
    %s17 = ssub.s32 %s9, %s16
    %p18 = scmp.eq.s32.totalorder %s17, 0
    %s20 = sadd.s32 %s19, 1
    %s21 = scalar_select %p18, %s19, %s20
    %p24 = pneg %p18
    %p25 = scmp.eq.s32.totalorder %s9, 1
    %p26 = por %p24, %p25
    %p27 = scmp.ne.s32.totalorder %s19, %s22
    %p28 = scmp.eq.s32.totalorder %s9, 0
    %p29 = por %p27, %p28
    %p30 = scmp.ne.s32.totalorder %s19, %s22
    %p31 = scmp.eq.s32.totalorder %s14, 1
    %p32 = por %p30, %p31
    %p33 = scmp.ne.s32.totalorder %s22, %s23
    %p34 = scmp.eq.s32.totalorder %s14, 0
    %p35 = por %p33, %p34
    %p36 = scmp.ne.s32.totalorder %s22, %s23
    %p37 = scmp.eq.s32.totalorder %s15, 1
    %p38 = por %p36, %p37
    %p40 = scmp.ne.s32.totalorder %s23, %s39
    %p41 = scmp.eq.s32.totalorder %s15, 0
    %p42 = por %p40, %p41
    %s44 = sadd.s32 %s43, 1
    %p47 = scmp.eq.s32.totalorder %s9, 1
    %p48 = scmp.ne.s32.totalorder %s43, %s45
    %p49 = scmp.eq.s32.totalorder %s9, 0
    %p50 = por %p48, %p49
    %p51 = scmp.ne.s32.totalorder %s43, %s45
    %p52 = scmp.eq.s32.totalorder %s14, 1
    %p53 = por %p51, %p52
    %p54 = scmp.ne.s32.totalorder %s45, %s46
    %p55 = scmp.eq.s32.totalorder %s14, 0
    %p56 = por %p54, %p55
    %p57 = scmp.ne.s32.totalorder %s45, %s46
    %p58 = scmp.eq.s32.totalorder %s15, 1
    %p59 = por %p57, %p58
    %p61 = scmp.ne.s32.totalorder %s46, %s60
    %p62 = scmp.eq.s32.totalorder %s15, 0
    %p63 = por %p61, %p62
    %s65 = sadd.s32 %s64, 1
    %p68 = scmp.eq.s32.totalorder %s9, 1
    %p69 = scmp.ne.s32.totalorder %s64, %s66
    %p70 = scmp.eq.s32.totalorder %s9, 0
    %p71 = por %p69, %p70
    %p72 = scmp.ne.s32.totalorder %s64, %s66
    %p73 = scmp.eq.s32.totalorder %s14, 1
    %p74 = por %p72, %p73
    %p75 = scmp.ne.s32.totalorder %s66, %s67
    %p76 = scmp.eq.s32.totalorder %s14, 0
    %p77 = por %p75, %p76
    %p78 = scmp.ne.s32.totalorder %s66, %s67
    %p79 = scmp.eq.s32.totalorder %s15, 1
    %p80 = por %p78, %p79
    %p82 = scmp.ne.s32.totalorder %s67, %s81
    %p83 = scmp.eq.s32.totalorder %s15, 0
    %p84 = por %p82, %p83
    %s85 = ssub.s32 %s9, %s16
    %p86 = scmp.eq.s32.totalorder %s85, 0
    %s88 = sadd.s32 %s87, 1
    %s89 = scalar_select %p86, %s87, %s88
    %p92 = pneg %p86
    %p93 = scmp.eq.s32.totalorder %s9, 1
    %p94 = por %p92, %p93
    %p95 = scmp.ne.s32.totalorder %s87, %s90
    %p96 = scmp.eq.s32.totalorder %s9, 0
    %p97 = por %p95, %p96
    %p98 = scmp.ne.s32.totalorder %s87, %s90
    %p99 = scmp.eq.s32.totalorder %s14, 1
    %p100 = por %p98, %p99
    %p101 = scmp.ne.s32.totalorder %s90, %s91
    %p102 = scmp.eq.s32.totalorder %s14, 0
    %p103 = por %p101, %p102
    %p104 = scmp.ne.s32.totalorder %s90, %s91
    %p105 = scmp.eq.s32.totalorder %s15, 1
    %p106 = por %p104, %p105
    %p108 = scmp.ne.s32.totalorder %s91, %s107
    %p109 = scmp.eq.s32.totalorder %s15, 0
    %p110 = por %p108, %p109
    %p111 = scmp.le.s32.totalorder 1, %s9
    %p112 = scmp.lt.s32.totalorder %s9, 3
    %p113 = pnand %p111, %p112
    %p114 = pneg %p113
    // Predicated region
    $region9: #{bottleneck_forward.2} parent=5 // pred_check
      _
    $region10: #{bottleneck_forward.2} parent=5 // pred_check_branch
      %116 = sbr.rel (%p113) target = $region12
    $region11: #{bottleneck_forward.2} parent=5 // pred_region
      %s117 = ssub.s32 %s9, 1
      // Predicated region
      $region13: #{bottleneck_forward.2} parent=11 // pred_check
        %p118 = pneg %p56
      $region14: #{bottleneck_forward.2} parent=11 // pred_check_branch
        %120 = sbr.rel (%p118) target = $region16
      $region15: #{bottleneck_forward.2} parent=11 // pred_region
        _
      $region16: #{bottleneck_forward.2} parent=11 // pred_fallthru
        _
      // Predicated region
      $region17: #{bottleneck_forward.2} parent=11 // pred_check
        %p121 = pneg %p77
      $region18: #{bottleneck_forward.2} parent=11 // pred_check_branch
        %123 = sbr.rel (%p121) target = $region20
      $region19: #{bottleneck_forward.2} parent=11 // pred_region
        _
      $region20: #{bottleneck_forward.2} parent=11 // pred_fallthru
        _
    $region12: #{bottleneck_forward.2} parent=5 // pred_fallthru
      _
    %p124 = scmp.lt.s32.totalorder %s9, 2
    // Predicated region
    $region21: #{bottleneck_forward.2} parent=5 // pred_check
      %p125 = pneg %p124
    $region22: #{bottleneck_forward.2} parent=5 // pred_check_branch
      %127 = sbr.rel (%p125) target = $region24
    $region23: #{bottleneck_forward.2} parent=5 // pred_region
      // Predicated region
      $region25: #{bottleneck_forward.2} parent=23 // pred_check
        %p128 = pneg %p29
      $region26: #{bottleneck_forward.2} parent=23 // pred_check_branch
        %130 = sbr.rel (%p128) target = $region28
      $region27: #{bottleneck_forward.2} parent=23 // pred_region
        %s131 = smul.u32 32, %s9
        %p132 = scmp.lt.s32.totalorder %s131, 63
        %s133 = scalar_select %p132, %s131, 63
        %s134 = smul.addr %s133, 4
        %s135 = scalar_lea.vmem %s0, %s134
        %s136 = smul.u32 32, %s9
      $region28: #{bottleneck_forward.2} parent=23 // pred_fallthru
        _
    $region24: #{bottleneck_forward.2} parent=5 // pred_fallthru
      _
    %p137 = scmp.le.s32.totalorder 1, %s9
    %p138 = scmp.lt.s32.totalorder %s9, 3
    %p139 = pnand %p137, %p138
    %p140 = pneg %p139
    // Predicated region
    $region29: #{bottleneck_forward.2} parent=5 // pred_check
      _
    $region30: #{bottleneck_forward.2} parent=5 // pred_check_branch
      %142 = sbr.rel (%p139) target = $region32
    $region31: #{bottleneck_forward.2} parent=5 // pred_region
      %s143 = ssub.s32 %s9, 1
      %s144 = smul.u32 32, %s14
      %p145 = scmp.lt.s32.totalorder %s144, 63
      %s146 = scalar_select %p145, %s144, 63
      %s147 = smul.addr %s146, 4
      %s148 = scalar_lea.vmem %s0, %s147
      %p149 = pneg %p35
      %p150 = pneg %p32
      %p151 = pneg %p56
      %p152 = pneg %p53
      %p153 = pneg %p77
      %p154 = pneg %p74
      %p155 = pneg %p103
      %p156 = pneg %p100
      %s157 = smul.u32 32, %s14
      %p158 = scmp.lt.s32.totalorder %s157, 63
      %s159 = scalar_select %p158, %s157, 63
      %s160 = smul.addr %s159, 4
      %s161 = scalar_lea.vmem %s3, %s160
      %s162 = smul.u32 32, %s14
      %p163 = scmp.lt.s32.totalorder %s162, 63
      %s164 = scalar_select %p163, %s162, 63
      %s165 = smul.addr %s164, 4
      %s166 = scalar_lea.vmem %s0, %s165
      %s167 = smul.u32 32, %s14
      %s168 = smul.u32 32, %s14
      %p169 = scmp.lt.s32.totalorder %s168, 63
      %s170 = scalar_select %p169, %s168, 63
      %s171 = smul.addr %s170, 4
      %s172 = scalar_lea.vmem %s3, %s171
      %s173 = smul.u32 32, %s14
      %v175 = vld [vmem:[%s166] sm:$0xf]
      %v176 = vld [vmem:[%s166 + $0x4] sm:$0xf]
      %v177 = vld [vmem:[%s166 + $0x8] sm:$0xf]
      %v178 = vld [vmem:[%s166 + $0xc] sm:$0xf]
      %v179 = vld [vmem:[%s166 + $0x10] sm:$0xf]
      %v180 = vld [vmem:[%s166 + $0x14] sm:$0xf]
      %v181 = vld [vmem:[%s166 + $0x18] sm:$0xf]
      %v182 = vld [vmem:[%s166 + $0x1c] sm:$0xf]
      %v183 = vld [vmem:[%s166 + $0x20] sm:$0xf]
      %v184 = vld [vmem:[%s166 + $0x24] sm:$0xf]
      %v185 = vld [vmem:[%s166 + $0x28] sm:$0xf]
      %v186 = vld [vmem:[%s166 + $0x2c] sm:$0xf]
      %v187 = vld [vmem:[%s166 + $0x30] sm:$0xf]
      %v188 = vld [vmem:[%s166 + $0x34] sm:$0xf]
      %v189 = vld [vmem:[%s166 + $0x38] sm:$0xf]
      %v190 = vld [vmem:[%s166 + $0x3c] sm:$0xf]
      %v191 = vld [vmem:[%s166 + $0x40] sm:$0xf]
      %v192 = vld [vmem:[%s166 + $0x44] sm:$0xf]
      %v193 = vld [vmem:[%s166 + $0x48] sm:$0xf]
      %v194 = vld [vmem:[%s166 + $0x4c] sm:$0xf]
      %v195 = vld [vmem:[%s166 + $0x50] sm:$0xf]
      %v196 = vld [vmem:[%s166 + $0x54] sm:$0xf]
      %v197 = vld [vmem:[%s166 + $0x58] sm:$0xf]
      %v198 = vld [vmem:[%s166 + $0x5c] sm:$0xf]
      %v199 = vld [vmem:[%s166 + $0x60] sm:$0xf]
      %v200 = vld [vmem:[%s166 + $0x64] sm:$0xf]
      %v201 = vld [vmem:[%s166 + $0x68] sm:$0xf]
      %v202 = vld [vmem:[%s166 + $0x6c] sm:$0xf]
      %v203 = vld [vmem:[%s166 + $0x70] sm:$0xf]
      %v204 = vld [vmem:[%s166 + $0x74] sm:$0xf]
      %v205 = vld [vmem:[%s166 + $0x78] sm:$0xf]
      %v206 = vld [vmem:[%s166 + $0x7c] sm:$0xf]
      %v207 = vld [vmem:[%s1] sm:$0xf]
      %v208 = vld [vmem:[%s1 + $0x4] sm:$0xf]
      %v209 = vld [vmem:[%s1 + $0x8] sm:$0xf]
      %v210 = vld [vmem:[%s1 + $0xc] sm:$0xf]
      %v211 = vld [vmem:[%s1 + $0x10] sm:$0xf]
      %v212 = vld [vmem:[%s1 + $0x14] sm:$0xf]
      %v213 = vld [vmem:[%s1 + $0x18] sm:$0xf]
      %v214 = vld [vmem:[%s1 + $0x1c] sm:$0xf]
      %v215 = vld [vmem:[%s1 + $0x20] sm:$0xf]
      %v216 = vld [vmem:[%s1 + $0x24] sm:$0xf]
      %v217 = vld [vmem:[%s1 + $0x28] sm:$0xf]
      %v218 = vld [vmem:[%s1 + $0x2c] sm:$0xf]
      %v219 = vld [vmem:[%s1 + $0x30] sm:$0xf]
      %v220 = vld [vmem:[%s1 + $0x34] sm:$0xf]
      %v221 = vld [vmem:[%s1 + $0x38] sm:$0xf]
      %v222 = vld [vmem:[%s1 + $0x3c] sm:$0xf]
      %v223 = vld [vmem:[%s2] sm:$0x1]
      %v225 = vlaneseq
      %v226 = vshrl.u32 %v225, 7
      %v227 = vsub.s32 0, %v226
      %v228 = vrot.slane %v223, %v227
      %v262 = vunpack.c.l.b16 %v175
      %v263 = vunpack.c.l.b16 %v176
      %v264 = vunpack.c.l.b16 %v177
      %v265 = vunpack.c.l.b16 %v178
      %v266 = vunpack.c.l.b16 %v179
      %v267 = vunpack.c.l.b16 %v180
      %v268 = vunpack.c.l.b16 %v181
      %v269 = vunpack.c.l.b16 %v182
      %v270 = vunpack.c.l.b16 %v183
      %v271 = vunpack.c.l.b16 %v184
      %v272 = vunpack.c.l.b16 %v185
      %v273 = vunpack.c.l.b16 %v186
      %v274 = vunpack.c.l.b16 %v187
      %v275 = vunpack.c.l.b16 %v188
      %v276 = vunpack.c.l.b16 %v189
      %v277 = vunpack.c.l.b16 %v190
      %v278 = vunpack.c.l.b16 %v191
      %v279 = vunpack.c.l.b16 %v192
      %v280 = vunpack.c.l.b16 %v193
      %v281 = vunpack.c.l.b16 %v194
      %v282 = vunpack.c.l.b16 %v195
      %v283 = vunpack.c.l.b16 %v196
      %v284 = vunpack.c.l.b16 %v197
      %v285 = vunpack.c.l.b16 %v198
      %v286 = vunpack.c.l.b16 %v199
      %v287 = vunpack.c.l.b16 %v200
      %v288 = vunpack.c.l.b16 %v201
      %v289 = vunpack.c.l.b16 %v202
      %v290 = vunpack.c.l.b16 %v203
      %v291 = vunpack.c.l.b16 %v204
      %v292 = vunpack.c.l.b16 %v205
      %v293 = vunpack.c.l.b16 %v206
      %v294 = vpack.c.b16 %v263, %v262
      %v295 = vpack.c.b16 %v265, %v264
      %v296 = vpack.c.b16 %v267, %v266
      %v297 = vpack.c.b16 %v269, %v268
      %v298 = vpack.c.b16 %v271, %v270
      %v299 = vpack.c.b16 %v273, %v272
      %v300 = vpack.c.b16 %v275, %v274
      %v301 = vpack.c.b16 %v277, %v276
      %v302 = vpack.c.b16 %v279, %v278
      %v303 = vpack.c.b16 %v281, %v280
      %v304 = vpack.c.b16 %v283, %v282
      %v305 = vpack.c.b16 %v285, %v284
      %v306 = vpack.c.b16 %v287, %v286
      %v307 = vpack.c.b16 %v289, %v288
      %v308 = vpack.c.b16 %v291, %v290
      %v309 = vpack.c.b16 %v293, %v292
      %v342 = vunpack.c.l.b16 %v207
      %v343 = vunpack.c.l.b16 %v208
      %v344 = vunpack.c.l.b16 %v209
      %v345 = vunpack.c.l.b16 %v210
      %v346 = vunpack.c.l.b16 %v211
      %v347 = vunpack.c.l.b16 %v212
      %v348 = vunpack.c.l.b16 %v213
      %v349 = vunpack.c.l.b16 %v214
      %v350 = vunpack.c.l.b16 %v215
      %v351 = vunpack.c.l.b16 %v216
      %v352 = vunpack.c.l.b16 %v217
      %v353 = vunpack.c.l.b16 %v218
      %v354 = vunpack.c.l.b16 %v219
      %v355 = vunpack.c.l.b16 %v220
      %v356 = vunpack.c.l.b16 %v221
      %v357 = vunpack.c.l.b16 %v222
      %v358 = vpack.c.b16 %v343, %v342
      %v359 = vpack.c.b16 %v345, %v344
      %v360 = vpack.c.b16 %v347, %v346
      %v361 = vpack.c.b16 %v349, %v348
      %v362 = vpack.c.b16 %v351, %v350
      %v363 = vpack.c.b16 %v353, %v352
      %v364 = vpack.c.b16 %v355, %v354
      %v365 = vpack.c.b16 %v357, %v356
      %374 = vmatprep.subr.bf16.mxu0 0
      %375 = vmatpush1.bf16.msra.mxu0 %v365
      %376 = vmatprep.subr.bf16.mxu0 0
      %377 = vmatpush1.bf16.msra.mxu0 %v364
      %378 = vmatprep.subr.bf16.mxu0 0
      %379 = vmatpush1.bf16.msra.mxu0 %v363
      %380 = vmatprep.subr.bf16.mxu0 0
      %381 = vmatpush1.bf16.msra.mxu0 %v362
      %382 = vmatprep.subr.bf16.mxu0 0
      %383 = vmatpush1.bf16.msra.mxu0 %v361
      %384 = vmatprep.subr.bf16.mxu0 0
      %385 = vmatpush1.bf16.msra.mxu0 %v360
      %386 = vmatprep.subr.bf16.mxu0 0
      %387 = vmatpush1.bf16.msra.mxu0 %v359
      %388 = vmatprep.subr.bf16.mxu0 0
      %389 = vmatpush1.bf16.msra.mxu0 %v358
      %390 = vmatprep.subr.bf16.mxu0 0
      %391 = vmatpush2.bf16.msra.mxu0 0
      %392 = vmatprep.subr.bf16.mxu0 0
      %393 = vmatpush2.bf16.msra.mxu0 0
      %394 = vmatprep.subr.bf16.mxu0 0
      %395 = vmatpush2.bf16.msra.mxu0 0
      %396 = vmatprep.subr.bf16.mxu0 0
      %397 = vmatpush2.bf16.msra.mxu0 0
      %398 = vmatprep.subr.bf16.mxu0 0
      %399 = vmatpush2.bf16.msra.mxu0 0
      %400 = vmatprep.subr.bf16.mxu0 0
      %401 = vmatpush2.bf16.msra.mxu0 0
      %402 = vmatprep.subr.bf16.mxu0 0
      %403 = vmatpush2.bf16.msra.mxu0 0
      %404 = vmatprep.subr.bf16.mxu0 0
      %405 = vmatpush2.bf16.msra.mxu0 0
      %406 = vmatprep.mubr.bf16.mxu0 0
      %407 = vmatmul.mubr.bf16.gmra.mxu0 %v294
      %v408 = vpop.f32.mrf.mxu0
      %v409 = vadd.f32 %v228, %v408
      %v410 = vpop.f32.mrf.mxu0
      %v411 = vpop.f32.mrf.mxu0
      %v412 = vadd.f32 %v228, %v411
      %v413 = vpop.f32.mrf.mxu0
      %414 = vmatprep.mubr.bf16.mxu0 0
      %415 = vmatmul.mubr.bf16.gmra.mxu0 %v295
      %v416 = vpop.f32.mrf.mxu0
      %v417 = vadd.f32 %v228, %v416
      %v418 = vpop.f32.mrf.mxu0
      %v419 = vpop.f32.mrf.mxu0
      %v420 = vadd.f32 %v228, %v419
      %v421 = vpop.f32.mrf.mxu0
      %422 = vmatprep.mubr.bf16.mxu0 0
      %423 = vmatmul.mubr.bf16.gmra.mxu0 %v296
      %v424 = vpop.f32.mrf.mxu0
      %v425 = vadd.f32 %v228, %v424
      %v426 = vpop.f32.mrf.mxu0
      %v427 = vpop.f32.mrf.mxu0
      %v428 = vadd.f32 %v228, %v427
      %v429 = vpop.f32.mrf.mxu0
      %430 = vmatprep.mubr.bf16.mxu0 0
      %431 = vmatmul.mubr.bf16.gmra.mxu0 %v297
      %v432 = vpop.f32.mrf.mxu0
      %v433 = vadd.f32 %v228, %v432
      %v434 = vpop.f32.mrf.mxu0
      %v435 = vpop.f32.mrf.mxu0
      %v436 = vadd.f32 %v228, %v435
      %v437 = vpop.f32.mrf.mxu0
      %438 = vmatprep.mubr.bf16.mxu0 0
      %439 = vmatmul.mubr.bf16.gmra.mxu0 %v298
      %v440 = vpop.f32.mrf.mxu0
      %v441 = vadd.f32 %v228, %v440
      %v442 = vpop.f32.mrf.mxu0
      %v443 = vpop.f32.mrf.mxu0
      %v444 = vadd.f32 %v228, %v443
      %v445 = vpop.f32.mrf.mxu0
      %446 = vmatprep.mubr.bf16.mxu0 0
      %447 = vmatmul.mubr.bf16.gmra.mxu0 %v299
      %v448 = vpop.f32.mrf.mxu0
      %v449 = vadd.f32 %v228, %v448
      %v450 = vpop.f32.mrf.mxu0
      %v451 = vpop.f32.mrf.mxu0
      %v452 = vadd.f32 %v228, %v451
      %v453 = vpop.f32.mrf.mxu0
      %454 = vmatprep.mubr.bf16.mxu0 0
      %455 = vmatmul.mubr.bf16.gmra.mxu0 %v300
      %v456 = vpop.f32.mrf.mxu0
      %v457 = vadd.f32 %v228, %v456
      %v458 = vpop.f32.mrf.mxu0
      %v459 = vpop.f32.mrf.mxu0
      %v460 = vadd.f32 %v228, %v459
      %v461 = vpop.f32.mrf.mxu0
      %462 = vmatprep.mubr.bf16.mxu0 0
      %463 = vmatmul.mubr.bf16.gmra.mxu0 %v301
      %v464 = vpop.f32.mrf.mxu0
      %v465 = vadd.f32 %v228, %v464
      %v466 = vpop.f32.mrf.mxu0
      %v467 = vpop.f32.mrf.mxu0
      %v468 = vadd.f32 %v228, %v467
      %v469 = vpop.f32.mrf.mxu0
      %470 = vmatprep.mubr.bf16.mxu0 0
      %471 = vmatmul.mubr.bf16.gmra.mxu0 %v302
      %v472 = vpop.f32.mrf.mxu0
      %v473 = vadd.f32 %v228, %v472
      %v474 = vpop.f32.mrf.mxu0
      %v475 = vpop.f32.mrf.mxu0
      %v476 = vadd.f32 %v228, %v475
      %v477 = vpop.f32.mrf.mxu0
      %478 = vmatprep.mubr.bf16.mxu0 0
      %479 = vmatmul.mubr.bf16.gmra.mxu0 %v303
      %v480 = vpop.f32.mrf.mxu0
      %v481 = vadd.f32 %v228, %v480
      %v482 = vpop.f32.mrf.mxu0
      %v483 = vpop.f32.mrf.mxu0
      %v484 = vadd.f32 %v228, %v483
      %v485 = vpop.f32.mrf.mxu0
      %486 = vmatprep.mubr.bf16.mxu0 0
      %487 = vmatmul.mubr.bf16.gmra.mxu0 %v304
      %v488 = vpop.f32.mrf.mxu0
      %v489 = vadd.f32 %v228, %v488
      %v490 = vpop.f32.mrf.mxu0
      %v491 = vpop.f32.mrf.mxu0
      %v492 = vadd.f32 %v228, %v491
      %v493 = vpop.f32.mrf.mxu0
      %494 = vmatprep.mubr.bf16.mxu0 0
      %495 = vmatmul.mubr.bf16.gmra.mxu0 %v305
      %v496 = vpop.f32.mrf.mxu0
      %v497 = vadd.f32 %v228, %v496
      %v498 = vpop.f32.mrf.mxu0
      %v499 = vpop.f32.mrf.mxu0
      %v500 = vadd.f32 %v228, %v499
      %v501 = vpop.f32.mrf.mxu0
      %502 = vmatprep.mubr.bf16.mxu0 0
      %503 = vmatmul.mubr.bf16.gmra.mxu0 %v306
      %v504 = vpop.f32.mrf.mxu0
      %v505 = vadd.f32 %v228, %v504
      %v506 = vpop.f32.mrf.mxu0
      %v507 = vpop.f32.mrf.mxu0
      %v508 = vadd.f32 %v228, %v507
      %v509 = vpop.f32.mrf.mxu0
      %510 = vmatprep.mubr.bf16.mxu0 0
      %511 = vmatmul.mubr.bf16.gmra.mxu0 %v307
      %v512 = vpop.f32.mrf.mxu0
      %v513 = vadd.f32 %v228, %v512
      %v514 = vpop.f32.mrf.mxu0
      %v515 = vpop.f32.mrf.mxu0
      %v516 = vadd.f32 %v228, %v515
      %v517 = vpop.f32.mrf.mxu0
      %518 = vmatprep.mubr.bf16.mxu0 0
      %519 = vmatmul.mubr.bf16.gmra.mxu0 %v308
      %v520 = vpop.f32.mrf.mxu0
      %v521 = vadd.f32 %v228, %v520
      %v522 = vpop.f32.mrf.mxu0
      %v523 = vpop.f32.mrf.mxu0
      %v524 = vadd.f32 %v228, %v523
      %v525 = vpop.f32.mrf.mxu0
      %526 = vmatprep.mubr.bf16.mxu0 0
      %527 = vmatmul.mubr.bf16.gmra.mxu0 %v309
      %v528 = vpop.f32.mrf.mxu0
      %v529 = vadd.f32 %v228, %v528
      %v530 = vpop.f32.mrf.mxu0
      %v531 = vpop.f32.mrf.mxu0
      %v532 = vadd.f32 %v228, %v531
      %v533 = vpop.f32.mrf.mxu0
      %534 = vdwg.mxu0
      %v535 = vmax.f32 %v409, 0.0
      %v536 = vmax.f32 %v412, 0.0
      %v537 = vmax.f32 %v417, 0.0
      %v538 = vmax.f32 %v420, 0.0
      %v539 = vmax.f32 %v425, 0.0
      %v540 = vmax.f32 %v428, 0.0
      %v541 = vmax.f32 %v433, 0.0
      %v542 = vmax.f32 %v436, 0.0
      %v543 = vmax.f32 %v441, 0.0
      %v544 = vmax.f32 %v444, 0.0
      %v545 = vmax.f32 %v449, 0.0
      %v546 = vmax.f32 %v452, 0.0
      %v547 = vmax.f32 %v457, 0.0
      %v548 = vmax.f32 %v460, 0.0
      %v549 = vmax.f32 %v465, 0.0
      %v550 = vmax.f32 %v468, 0.0
      %v551 = vmax.f32 %v473, 0.0
      %v552 = vmax.f32 %v476, 0.0
      %v553 = vmax.f32 %v481, 0.0
      %v554 = vmax.f32 %v484, 0.0
      %v555 = vmax.f32 %v489, 0.0
      %v556 = vmax.f32 %v492, 0.0
      %v557 = vmax.f32 %v497, 0.0
      %v558 = vmax.f32 %v500, 0.0
      %v559 = vmax.f32 %v505, 0.0
      %v560 = vmax.f32 %v508, 0.0
      %v561 = vmax.f32 %v513, 0.0
      %v562 = vmax.f32 %v516, 0.0
      %v563 = vmax.f32 %v521, 0.0
      %v564 = vmax.f32 %v524, 0.0
      %v565 = vmax.f32 %v529, 0.0
      %v566 = vmax.f32 %v532, 0.0
      %v567 = vpack.c.bf16 %v536, %v535
      %v568 = vpack.c.bf16 %v538, %v537
      %v569 = vpack.c.bf16 %v540, %v539
      %v570 = vpack.c.bf16 %v542, %v541
      %v571 = vpack.c.bf16 %v544, %v543
      %v572 = vpack.c.bf16 %v546, %v545
      %v573 = vpack.c.bf16 %v548, %v547
      %v574 = vpack.c.bf16 %v550, %v549
      %v575 = vpack.c.bf16 %v552, %v551
      %v576 = vpack.c.bf16 %v554, %v553
      %v577 = vpack.c.bf16 %v556, %v555
      %v578 = vpack.c.bf16 %v558, %v557
      %v579 = vpack.c.bf16 %v560, %v559
      %v580 = vpack.c.bf16 %v562, %v561
      %v581 = vpack.c.bf16 %v564, %v563
      %v582 = vpack.c.bf16 %v566, %v565
      %v599 = vunpack.c.l.b16 %v567
      %v600 = vunpack.c.h.b16 %v567
      %v601 = vunpack.c.l.b16 %v568
      %v602 = vunpack.c.h.b16 %v568
      %v603 = vunpack.c.l.b16 %v569
      %v604 = vunpack.c.h.b16 %v569
      %v605 = vunpack.c.l.b16 %v570
      %v606 = vunpack.c.h.b16 %v570
      %v607 = vunpack.c.l.b16 %v571
      %v608 = vunpack.c.h.b16 %v571
      %v609 = vunpack.c.l.b16 %v572
      %v610 = vunpack.c.h.b16 %v572
      %v611 = vunpack.c.l.b16 %v573
      %v612 = vunpack.c.h.b16 %v573
      %v613 = vunpack.c.l.b16 %v574
      %v614 = vunpack.c.h.b16 %v574
      %v615 = vunpack.c.l.b16 %v575
      %v616 = vunpack.c.h.b16 %v575
      %v617 = vunpack.c.l.b16 %v576
      %v618 = vunpack.c.h.b16 %v576
      %v619 = vunpack.c.l.b16 %v577
      %v620 = vunpack.c.h.b16 %v577
      %v621 = vunpack.c.l.b16 %v578
      %v622 = vunpack.c.h.b16 %v578
      %v623 = vunpack.c.l.b16 %v579
      %v624 = vunpack.c.h.b16 %v579
      %v625 = vunpack.c.l.b16 %v580
      %v626 = vunpack.c.h.b16 %v580
      %v627 = vunpack.c.l.b16 %v581
      %v628 = vunpack.c.h.b16 %v581
      %v629 = vunpack.c.l.b16 %v582
      %v630 = vunpack.c.h.b16 %v582
      %v631 = vpack.c.b16 %v599, %v599
      %v632 = vpack.c.b16 %v600, %v600
      %v633 = vpack.c.b16 %v601, %v601
      %v634 = vpack.c.b16 %v602, %v602
      %v635 = vpack.c.b16 %v603, %v603
      %v636 = vpack.c.b16 %v604, %v604
      %v637 = vpack.c.b16 %v605, %v605
      %v638 = vpack.c.b16 %v606, %v606
      %v639 = vpack.c.b16 %v607, %v607
      %v640 = vpack.c.b16 %v608, %v608
      %v641 = vpack.c.b16 %v609, %v609
      %v642 = vpack.c.b16 %v610, %v610
      %v643 = vpack.c.b16 %v611, %v611
      %v644 = vpack.c.b16 %v612, %v612
      %v645 = vpack.c.b16 %v613, %v613
      %v646 = vpack.c.b16 %v614, %v614
      %v647 = vpack.c.b16 %v615, %v615
      %v648 = vpack.c.b16 %v616, %v616
      %v649 = vpack.c.b16 %v617, %v617
      %v650 = vpack.c.b16 %v618, %v618
      %v651 = vpack.c.b16 %v619, %v619
      %v652 = vpack.c.b16 %v620, %v620
      %v653 = vpack.c.b16 %v621, %v621
      %v654 = vpack.c.b16 %v622, %v622
      %v655 = vpack.c.b16 %v623, %v623
      %v656 = vpack.c.b16 %v624, %v624
      %v657 = vpack.c.b16 %v625, %v625
      %v658 = vpack.c.b16 %v626, %v626
      %v659 = vpack.c.b16 %v627, %v627
      %v660 = vpack.c.b16 %v628, %v628
      %v661 = vpack.c.b16 %v629, %v629
      %v662 = vpack.c.b16 %v630, %v630
      %695 = vst [vmem:[%s172] sm:$0xf] %v631
      %696 = vst [vmem:[%s172 + $0x4] sm:$0xf] %v632
      %697 = vst [vmem:[%s172 + $0x8] sm:$0xf] %v633
      %698 = vst [vmem:[%s172 + $0xc] sm:$0xf] %v634
      %699 = vst [vmem:[%s172 + $0x10] sm:$0xf] %v635
      %700 = vst [vmem:[%s172 + $0x14] sm:$0xf] %v636
      %701 = vst [vmem:[%s172 + $0x18] sm:$0xf] %v637
      %702 = vst [vmem:[%s172 + $0x1c] sm:$0xf] %v638
      %703 = vst [vmem:[%s172 + $0x20] sm:$0xf] %v639
      %704 = vst [vmem:[%s172 + $0x24] sm:$0xf] %v640
      %705 = vst [vmem:[%s172 + $0x28] sm:$0xf] %v641
      %706 = vst [vmem:[%s172 + $0x2c] sm:$0xf] %v642
      %707 = vst [vmem:[%s172 + $0x30] sm:$0xf] %v643
      %708 = vst [vmem:[%s172 + $0x34] sm:$0xf] %v644
      %709 = vst [vmem:[%s172 + $0x38] sm:$0xf] %v645
      %710 = vst [vmem:[%s172 + $0x3c] sm:$0xf] %v646
      %711 = vst [vmem:[%s172 + $0x40] sm:$0xf] %v647
      %712 = vst [vmem:[%s172 + $0x44] sm:$0xf] %v648
      %713 = vst [vmem:[%s172 + $0x48] sm:$0xf] %v649
      %714 = vst [vmem:[%s172 + $0x4c] sm:$0xf] %v650
      %715 = vst [vmem:[%s172 + $0x50] sm:$0xf] %v651
      %716 = vst [vmem:[%s172 + $0x54] sm:$0xf] %v652
      %717 = vst [vmem:[%s172 + $0x58] sm:$0xf] %v653
      %718 = vst [vmem:[%s172 + $0x5c] sm:$0xf] %v654
      %719 = vst [vmem:[%s172 + $0x60] sm:$0xf] %v655
      %720 = vst [vmem:[%s172 + $0x64] sm:$0xf] %v656
      %721 = vst [vmem:[%s172 + $0x68] sm:$0xf] %v657
      %722 = vst [vmem:[%s172 + $0x6c] sm:$0xf] %v658
      %723 = vst [vmem:[%s172 + $0x70] sm:$0xf] %v659
      %724 = vst [vmem:[%s172 + $0x74] sm:$0xf] %v660
      %725 = vst [vmem:[%s172 + $0x78] sm:$0xf] %v661
      %726 = vst [vmem:[%s172 + $0x7c] sm:$0xf] %v662
      %s727 = smul.u32 32, %s14
      %p728 = scmp.lt.s32.totalorder %s727, 63
      %s729 = scalar_select %p728, %s727, 63
      %s730 = smul.addr %s729, 4
      %s731 = scalar_lea.vmem %s3, %s730
      // Predicated region
      $region33: #{bottleneck_forward.2} parent=31 // pred_check
        %p732 = pneg %p100
      $region34: #{bottleneck_forward.2} parent=31 // pred_check_branch
        %734 = sbr.rel (%p732) target = $region36
      $region35: #{bottleneck_forward.2} parent=31 // pred_region
        %s735 = smul.u32 32, %s14
      $region36: #{bottleneck_forward.2} parent=31 // pred_fallthru
        _
    $region32: #{bottleneck_forward.2} parent=5 // pred_fallthru
      _
    %p736 = scmp.le.s32.totalorder 2, %s9
    // Predicated region
    $region37: #{bottleneck_forward.2} parent=5 // pred_check
      %p737 = pneg %p736
    $region38: #{bottleneck_forward.2} parent=5 // pred_check_branch
      %739 = sbr.rel (%p737) target = $region40
    $region39: #{bottleneck_forward.2} parent=5 // pred_region
      %s740 = ssub.s32 %s9, 2
      // Predicated region
      $region41: #{bottleneck_forward.2} parent=39 // pred_check
        %p741 = pneg %p106
      $region42: #{bottleneck_forward.2} parent=39 // pred_check_branch
        %743 = sbr.rel (%p741) target = $region44
      $region43: #{bottleneck_forward.2} parent=39 // pred_region
        %s744 = smul.u32 32, %s15
        %p745 = scmp.lt.s32.totalorder %s744, 63
        %s746 = scalar_select %p745, %s744, 63
        %s747 = smul.addr %s746, 4
        %s748 = scalar_lea.vmem %s3, %s747
      $region44: #{bottleneck_forward.2} parent=39 // pred_fallthru
        _
    $region40: #{bottleneck_forward.2} parent=5 // pred_fallthru
      _
  $region6: #{bottleneck_forward.2} parent=0 // loop_footer
    %s13 = sadd.s32 1, %s9
  $region7: #{bottleneck_forward.2} parent=0 // loop_footer_branch
    %8 = sbr.rel target = $region3
  $region8: #{bottleneck_forward.2} parent=0 // loop_exit
    _

// kernel: bottleneck_forward.3
$region0: #{bottleneck_forward.3}
  #allocation0 [shape = 'u32[]', space=smem, size = 0x4, offset = 0x4, fixed_abs, tag = 'smem constant byte address 0x4 - core index']
  #allocation1 [shape = 'u32[144,128]{1,0:T(1,128)}', space=vmem, size = 0x12000, scoped, tag = 'internal scratch']
  %s0 = inlined_call_operand.vmem [shape: bf16[2,54,16,128], index: 0, kind: input, shape index: {}]
  %s1 = inlined_call_operand.vmem [shape: bf16[9,128,128], index: 1, kind: input, shape index: {}]
  %s2 = inlined_call_operand.vmem [shape: f32[1,128], index: 2, kind: input, shape index: {}]
  %s3 = inlined_call_operand.vmem [shape: bf16[128,128], index: 3, kind: input, shape index: {}]
  %s4 = inlined_call_operand.vmem [shape: f32[1,128], index: 4, kind: input, shape index: {}]
  %s5 = inlined_call_operand.vmem [shape: f32[2,256,128], index: 5, kind: input, shape index: {}]
  %s6 = inlined_call_operand.vmem [shape: f32[2,256,128], index: 6, kind: output, shape index: {}]
  %s7 = sld [smem:[#allocation0]]
  $region57: #{bottleneck_forward.3} parent=0
    _
  %s9 = ssub.s32 1, %s7
  %s10 = scalar_select 0, %s9, %s7
  loop: start=0, step=1, limit=4
  $region2: #{bottleneck_forward.3} parent=0 // loop_pre_header
    _
  $region3: #{bottleneck_forward.3} parent=0 // loop_header
    %s12 = sphi 0, %s16
    %p13 = scmp.ge.s32.totalorder %s12, 4
    %s22 = sphi 0, %s24
    %s25 = sphi 0, %s22
    %s26 = sphi 0, %s25
    %s42 = sphi 0, %s26
    %s46 = sphi 0, %s46
    %s48 = sphi 0, %s46
    %s49 = sphi 0, %s48
    %s63 = sphi 0, %s49
    %s67 = sphi 0, %s67
    %s69 = sphi 0, %s67
    %s70 = sphi 0, %s69
    %s84 = sphi 0, %s70
    %s88 = sphi 0, %s88
    %s90 = sphi 0, %s88
    %s91 = sphi 0, %s90
    %s105 = sphi 0, %s91
    %s109 = sphi 0, %s109
    %s111 = sphi 0, %s109
    %s112 = sphi 0, %s111
    %s126 = sphi 0, %s112
    %s132 = sphi 0, %s134
    %s135 = sphi 0, %s132
    %s136 = sphi 0, %s135
    %s152 = sphi 0, %s136
    %s158 = sphi 0, %s160
    %s161 = sphi 0, %s158
    %s162 = sphi 0, %s161
    %s178 = sphi 0, %s162
  $region4: #{bottleneck_forward.3} parent=0 // loop_header_branch
    %15 = sbr.rel (%p13) target = $region8
  $region5: #{bottleneck_forward.3} parent=0 // loop_body
    %s17 = ssub.s32 %s12, 1
    %s18 = ssub.s32 %s12, 2
    %s19 = sadd.s32 %s12, 1
    %s20 = ssub.s32 %s12, %s19
    %p21 = scmp.eq.s32.totalorder %s20, 0
    %s23 = sadd.s32 %s22, 1
    %s24 = scalar_select %p21, %s22, %s23
    %p27 = pneg %p21
    %p28 = scmp.eq.s32.totalorder %s12, 1
    %p29 = por %p27, %p28
    %p30 = scmp.ne.s32.totalorder %s22, %s25
    %p31 = scmp.eq.s32.totalorder %s12, 0
    %p32 = por %p30, %p31
    %p33 = scmp.ne.s32.totalorder %s22, %s25
    %p34 = scmp.eq.s32.totalorder %s17, 1
    %p35 = por %p33, %p34
    %p36 = scmp.ne.s32.totalorder %s25, %s26
    %p37 = scmp.eq.s32.totalorder %s17, 0
    %p38 = por %p36, %p37
    %p39 = scmp.ne.s32.totalorder %s25, %s26
    %p40 = scmp.eq.s32.totalorder %s18, 1
    %p41 = por %p39, %p40
    %p43 = scmp.ne.s32.totalorder %s26, %s42
    %p44 = scmp.eq.s32.totalorder %s18, 0
    %p45 = por %p43, %p44
    %s47 = sadd.s32 %s46, 1
    %p50 = scmp.eq.s32.totalorder %s12, 1
    %p51 = scmp.ne.s32.totalorder %s46, %s48
    %p52 = scmp.eq.s32.totalorder %s12, 0
    %p53 = por %p51, %p52
    %p54 = scmp.ne.s32.totalorder %s46, %s48
    %p55 = scmp.eq.s32.totalorder %s17, 1
    %p56 = por %p54, %p55
    %p57 = scmp.ne.s32.totalorder %s48, %s49
    %p58 = scmp.eq.s32.totalorder %s17, 0
    %p59 = por %p57, %p58
    %p60 = scmp.ne.s32.totalorder %s48, %s49
    %p61 = scmp.eq.s32.totalorder %s18, 1
    %p62 = por %p60, %p61
    %p64 = scmp.ne.s32.totalorder %s49, %s63
    %p65 = scmp.eq.s32.totalorder %s18, 0
    %p66 = por %p64, %p65
    %s68 = sadd.s32 %s67, 1
    %p71 = scmp.eq.s32.totalorder %s12, 1
    %p72 = scmp.ne.s32.totalorder %s67, %s69
    %p73 = scmp.eq.s32.totalorder %s12, 0
    %p74 = por %p72, %p73
    %p75 = scmp.ne.s32.totalorder %s67, %s69
    %p76 = scmp.eq.s32.totalorder %s17, 1
    %p77 = por %p75, %p76
    %p78 = scmp.ne.s32.totalorder %s69, %s70
    %p79 = scmp.eq.s32.totalorder %s17, 0
    %p80 = por %p78, %p79
    %p81 = scmp.ne.s32.totalorder %s69, %s70
    %p82 = scmp.eq.s32.totalorder %s18, 1
    %p83 = por %p81, %p82
    %p85 = scmp.ne.s32.totalorder %s70, %s84
    %p86 = scmp.eq.s32.totalorder %s18, 0
    %p87 = por %p85, %p86
    %s89 = sadd.s32 %s88, 1
    %p92 = scmp.eq.s32.totalorder %s12, 1
    %p93 = scmp.ne.s32.totalorder %s88, %s90
    %p94 = scmp.eq.s32.totalorder %s12, 0
    %p95 = por %p93, %p94
    %p96 = scmp.ne.s32.totalorder %s88, %s90
    %p97 = scmp.eq.s32.totalorder %s17, 1
    %p98 = por %p96, %p97
    %p99 = scmp.ne.s32.totalorder %s90, %s91
    %p100 = scmp.eq.s32.totalorder %s17, 0
    %p101 = por %p99, %p100
    %p102 = scmp.ne.s32.totalorder %s90, %s91
    %p103 = scmp.eq.s32.totalorder %s18, 1
    %p104 = por %p102, %p103
    %p106 = scmp.ne.s32.totalorder %s91, %s105
    %p107 = scmp.eq.s32.totalorder %s18, 0
    %p108 = por %p106, %p107
    %s110 = sadd.s32 %s109, 1
    %p113 = scmp.eq.s32.totalorder %s12, 1
    %p114 = scmp.ne.s32.totalorder %s109, %s111
    %p115 = scmp.eq.s32.totalorder %s12, 0
    %p116 = por %p114, %p115
    %p117 = scmp.ne.s32.totalorder %s109, %s111
    %p118 = scmp.eq.s32.totalorder %s17, 1
    %p119 = por %p117, %p118
    %p120 = scmp.ne.s32.totalorder %s111, %s112
    %p121 = scmp.eq.s32.totalorder %s17, 0
    %p122 = por %p120, %p121
    %p123 = scmp.ne.s32.totalorder %s111, %s112
    %p124 = scmp.eq.s32.totalorder %s18, 1
    %p125 = por %p123, %p124
    %p127 = scmp.ne.s32.totalorder %s112, %s126
    %p128 = scmp.eq.s32.totalorder %s18, 0
    %p129 = por %p127, %p128
    %s130 = ssub.s32 %s12, %s19
    %p131 = scmp.eq.s32.totalorder %s130, 0
    %s133 = sadd.s32 %s132, 1
    %s134 = scalar_select %p131, %s132, %s133
    %p137 = pneg %p131
    %p138 = scmp.eq.s32.totalorder %s12, 1
    %p139 = por %p137, %p138
    %p140 = scmp.ne.s32.totalorder %s132, %s135
    %p141 = scmp.eq.s32.totalorder %s12, 0
    %p142 = por %p140, %p141
    %p143 = scmp.ne.s32.totalorder %s132, %s135
    %p144 = scmp.eq.s32.totalorder %s17, 1
    %p145 = por %p143, %p144
    %p146 = scmp.ne.s32.totalorder %s135, %s136
    %p147 = scmp.eq.s32.totalorder %s17, 0
    %p148 = por %p146, %p147
    %p149 = scmp.ne.s32.totalorder %s135, %s136
    %p150 = scmp.eq.s32.totalorder %s18, 1
    %p151 = por %p149, %p150
    %p153 = scmp.ne.s32.totalorder %s136, %s152
    %p154 = scmp.eq.s32.totalorder %s18, 0
    %p155 = por %p153, %p154
    %s156 = ssub.s32 %s12, %s19
    %p157 = scmp.eq.s32.totalorder %s156, 0
    %s159 = sadd.s32 %s158, 1
    %s160 = scalar_select %p157, %s158, %s159
    %p163 = pneg %p157
    %p164 = scmp.eq.s32.totalorder %s12, 1
    %p165 = por %p163, %p164
    %p166 = scmp.ne.s32.totalorder %s158, %s161
    %p167 = scmp.eq.s32.totalorder %s12, 0
    %p168 = por %p166, %p167
    %p169 = scmp.ne.s32.totalorder %s158, %s161
    %p170 = scmp.eq.s32.totalorder %s17, 1
    %p171 = por %p169, %p170
    %p172 = scmp.ne.s32.totalorder %s161, %s162
    %p173 = scmp.eq.s32.totalorder %s17, 0
    %p174 = por %p172, %p173
    %p175 = scmp.ne.s32.totalorder %s161, %s162
    %p176 = scmp.eq.s32.totalorder %s18, 1
    %p177 = por %p175, %p176
    %p179 = scmp.ne.s32.totalorder %s162, %s178
    %p180 = scmp.eq.s32.totalorder %s18, 0
    %p181 = por %p179, %p180
    %p182 = scmp.le.s32.totalorder 1, %s12
    %p183 = scmp.lt.s32.totalorder %s12, 3
    %p184 = pnand %p182, %p183
    %p185 = pneg %p184
    // Predicated region
    $region9: #{bottleneck_forward.3} parent=5 // pred_check
      _
    $region10: #{bottleneck_forward.3} parent=5 // pred_check_branch
      %187 = sbr.rel (%p184) target = $region12
    $region11: #{bottleneck_forward.3} parent=5 // pred_region
      %s188 = ssub.s32 %s12, 1
      // Predicated region
      $region13: #{bottleneck_forward.3} parent=11 // pred_check
        %p189 = pneg %p59
      $region14: #{bottleneck_forward.3} parent=11 // pred_check_branch
        %191 = sbr.rel (%p189) target = $region16
      $region15: #{bottleneck_forward.3} parent=11 // pred_region
        _
      $region16: #{bottleneck_forward.3} parent=11 // pred_fallthru
        _
      // Predicated region
      $region17: #{bottleneck_forward.3} parent=11 // pred_check
        %p192 = pneg %p80
      $region18: #{bottleneck_forward.3} parent=11 // pred_check_branch
        %194 = sbr.rel (%p192) target = $region20
      $region19: #{bottleneck_forward.3} parent=11 // pred_region
        _
      $region20: #{bottleneck_forward.3} parent=11 // pred_fallthru
        _
      // Predicated region
      $region21: #{bottleneck_forward.3} parent=11 // pred_check
        %p195 = pneg %p101
      $region22: #{bottleneck_forward.3} parent=11 // pred_check_branch
        %197 = sbr.rel (%p195) target = $region24
      $region23: #{bottleneck_forward.3} parent=11 // pred_region
        _
      $region24: #{bottleneck_forward.3} parent=11 // pred_fallthru
        _
      // Predicated region
      $region25: #{bottleneck_forward.3} parent=11 // pred_check
        %p198 = pneg %p122
      $region26: #{bottleneck_forward.3} parent=11 // pred_check_branch
        %200 = sbr.rel (%p198) target = $region28
      $region27: #{bottleneck_forward.3} parent=11 // pred_region
        _
      $region28: #{bottleneck_forward.3} parent=11 // pred_fallthru
        _
    $region12: #{bottleneck_forward.3} parent=5 // pred_fallthru
      _
    %p201 = scmp.lt.s32.totalorder %s12, 2
    // Predicated region
    $region29: #{bottleneck_forward.3} parent=5 // pred_check
      %p202 = pneg %p201
    $region30: #{bottleneck_forward.3} parent=5 // pred_check_branch
      %204 = sbr.rel (%p202) target = $region32
    $region31: #{bottleneck_forward.3} parent=5 // pred_region
      // Predicated region
      $region33: #{bottleneck_forward.3} parent=31 // pred_check
        %p205 = pneg %p32
      $region34: #{bottleneck_forward.3} parent=31 // pred_check_branch
        %207 = sbr.rel (%p205) target = $region36
      $region35: #{bottleneck_forward.3} parent=31 // pred_region
        %p208 = scmp.lt.s32.totalorder %s12, 1
        %s209 = scalar_select %p208, %s12, 1
        %s210 = smul.addr %s209, 108
        %s211 = smul.addr %s210, 4
        %s212 = scalar_lea.vmem %s0, %s211
      $region36: #{bottleneck_forward.3} parent=31 // pred_fallthru
        _
      // Predicated region
      $region37: #{bottleneck_forward.3} parent=31 // pred_check
        %p213 = pneg %p142
      $region38: #{bottleneck_forward.3} parent=31 // pred_check_branch
        %215 = sbr.rel (%p213) target = $region40
      $region39: #{bottleneck_forward.3} parent=31 // pred_region
        %p216 = scmp.lt.s32.totalorder %s12, 1
        %s217 = scalar_select %p216, %s12, 1
        %s218 = smul.addr %s217, 32
        %s219 = smul.addr %s218, 8
        %s220 = scalar_lea.vmem %s5, %s219
      $region40: #{bottleneck_forward.3} parent=31 // pred_fallthru
        _
    $region32: #{bottleneck_forward.3} parent=5 // pred_fallthru
      _
    %p221 = scmp.le.s32.totalorder 1, %s12
    %p222 = scmp.lt.s32.totalorder %s12, 3
    %p223 = pnand %p221, %p222
    %p224 = pneg %p223
    // Predicated region
    $region41: #{bottleneck_forward.3} parent=5 // pred_check
      _
    $region42: #{bottleneck_forward.3} parent=5 // pred_check_branch
      %226 = sbr.rel (%p223) target = $region44
    $region43: #{bottleneck_forward.3} parent=5 // pred_region
      %s227 = ssub.s32 %s12, 1
      %p228 = scmp.lt.s32.totalorder %s17, 1
      %s229 = scalar_select %p228, %s17, 1
      %s230 = smul.addr %s229, 108
      %s231 = smul.addr %s230, 4
      %s232 = scalar_lea.vmem %s0, %s231
      %p233 = pneg %p38
      %p234 = pneg %p35
      %p235 = pneg %p59
      %p236 = pneg %p56
      %p237 = pneg %p80
      %p238 = pneg %p77
      %p239 = pneg %p101
      %p240 = pneg %p98
      %p241 = pneg %p122
      %p242 = pneg %p119
      %p243 = scmp.lt.s32.totalorder %s17, 1
      %s244 = scalar_select %p243, %s17, 1
      %s245 = smul.addr %s244, 32
      %s246 = smul.addr %s245, 8
      %s247 = scalar_lea.vmem %s5, %s246
      %p248 = pneg %p148
      %p249 = pneg %p145
      %p250 = pneg %p174
      %p251 = pneg %p171
      %p252 = scmp.lt.s32.totalorder %s17, 1
      %s253 = scalar_select %p252, %s17, 1
      %s254 = smul.addr %s253, 32
      %s255 = smul.addr %s254, 8
      %s256 = scalar_lea.vmem %s6, %s255
      %p257 = scmp.lt.s32.totalorder %s17, 1
      %s258 = scalar_select %p257, %s17, 1
      %s259 = smul.addr %s258, 108
      %s260 = smul.addr %s259, 4
      %s261 = scalar_lea.vmem %s0, %s260
      %p262 = scmp.lt.s32.totalorder %s17, 1
      %s263 = scalar_select %p262, %s17, 1
      %s264 = smul.addr %s263, 32
      %s265 = smul.addr %s264, 8
      %s266 = scalar_lea.vmem %s5, %s265
      %p267 = scmp.lt.s32.totalorder %s17, 1
      %s268 = scalar_select %p267, %s17, 1
      %s269 = smul.addr %s268, 32
      %s270 = smul.addr %s269, 8
      %s271 = scalar_lea.vmem %s6, %s270
      %v273 = vld [vmem:[%s261] sm:$0xf]
      %v274 = vld [vmem:[%s261 + $0x4] sm:$0xf]
      %v275 = vld [vmem:[%s261 + $0x8] sm:$0xf]
      %v276 = vld [vmem:[%s261 + $0xc] sm:$0xf]
      %v277 = vld [vmem:[%s261 + $0x10] sm:$0xf]
      %v278 = vld [vmem:[%s261 + $0x14] sm:$0xf]
      %v279 = vld [vmem:[%s261 + $0x18] sm:$0xf]
      %v280 = vld [vmem:[%s261 + $0x1c] sm:$0xf]
      %v281 = vld [vmem:[%s261 + $0x20] sm:$0xf]
      %v282 = vld [vmem:[%s261 + $0x24] sm:$0xf]
      %v283 = vld [vmem:[%s261 + $0x28] sm:$0xf]
      %v284 = vld [vmem:[%s261 + $0x2c] sm:$0xf]
      %v285 = vld [vmem:[%s261 + $0x30] sm:$0xf]
      %v286 = vld [vmem:[%s261 + $0x34] sm:$0xf]
      %v287 = vld [vmem:[%s261 + $0x38] sm:$0xf]
      %v288 = vld [vmem:[%s261 + $0x3c] sm:$0xf]
      %v289 = vld [vmem:[%s261 + $0x40] sm:$0xf]
      %v290 = vld [vmem:[%s261 + $0x44] sm:$0xf]
      %v291 = vld [vmem:[%s261 + $0x48] sm:$0xf]
      %v292 = vld [vmem:[%s261 + $0x4c] sm:$0xf]
      %v293 = vld [vmem:[%s261 + $0x50] sm:$0xf]
      %v294 = vld [vmem:[%s261 + $0x54] sm:$0xf]
      %v295 = vld [vmem:[%s261 + $0x58] sm:$0xf]
      %v296 = vld [vmem:[%s261 + $0x5c] sm:$0xf]
      %v297 = vld [vmem:[%s261 + $0x60] sm:$0xf]
      %v298 = vld [vmem:[%s261 + $0x64] sm:$0xf]
      %v299 = vld [vmem:[%s261 + $0x68] sm:$0xf]
      %v300 = vld [vmem:[%s261 + $0x6c] sm:$0xf]
      %v301 = vld [vmem:[%s261 + $0x70] sm:$0xf]
      %v302 = vld [vmem:[%s261 + $0x74] sm:$0xf]
      %v303 = vld [vmem:[%s261 + $0x78] sm:$0xf]
      %v304 = vld [vmem:[%s261 + $0x7c] sm:$0xf]
      %v305 = vld [vmem:[%s261 + $0x80] sm:$0xf]
      %v306 = vld [vmem:[%s261 + $0x84] sm:$0xf]
      %v307 = vld [vmem:[%s261 + $0x88] sm:$0xf]
      %v308 = vld [vmem:[%s261 + $0x8c] sm:$0xf]
      %v309 = vld [vmem:[%s261 + $0x90] sm:$0xf]
      %v310 = vld [vmem:[%s261 + $0x94] sm:$0xf]
      %v311 = vld [vmem:[%s261 + $0x98] sm:$0xf]
      %v312 = vld [vmem:[%s261 + $0x9c] sm:$0xf]
      %v313 = vld [vmem:[%s261 + $0xa0] sm:$0xf]
      %v314 = vld [vmem:[%s261 + $0xa4] sm:$0xf]
      %v315 = vld [vmem:[%s261 + $0xa8] sm:$0xf]
      %v316 = vld [vmem:[%s261 + $0xac] sm:$0xf]
      %v317 = vld [vmem:[%s261 + $0xb0] sm:$0xf]
      %v318 = vld [vmem:[%s261 + $0xb4] sm:$0xf]
      %v319 = vld [vmem:[%s261 + $0xb8] sm:$0xf]
      %v320 = vld [vmem:[%s261 + $0xbc] sm:$0xf]
      %v321 = vld [vmem:[%s261 + $0xc0] sm:$0xf]
      %v322 = vld [vmem:[%s261 + $0xc4] sm:$0xf]
      %v323 = vld [vmem:[%s261 + $0xc8] sm:$0xf]
      %v324 = vld [vmem:[%s261 + $0xcc] sm:$0xf]
      %v325 = vld [vmem:[%s261 + $0xd0] sm:$0xf]
      %v326 = vld [vmem:[%s261 + $0xd4] sm:$0xf]
      %v327 = vld [vmem:[%s261 + $0xd8] sm:$0xf]
      %v328 = vld [vmem:[%s261 + $0xdc] sm:$0xf]
      %v329 = vld [vmem:[%s261 + $0xe0] sm:$0xf]
      %v330 = vld [vmem:[%s261 + $0xe4] sm:$0xf]
      %v331 = vld [vmem:[%s261 + $0xe8] sm:$0xf]
      %v332 = vld [vmem:[%s261 + $0xec] sm:$0xf]
      %v333 = vld [vmem:[%s261 + $0xf0] sm:$0xf]
      %v334 = vld [vmem:[%s261 + $0xf4] sm:$0xf]
      %v335 = vld [vmem:[%s261 + $0xf8] sm:$0xf]
      %v336 = vld [vmem:[%s261 + $0xfc] sm:$0xf]
      %v337 = vld [vmem:[%s261 + $0x100] sm:$0xf]
      %v338 = vld [vmem:[%s261 + $0x104] sm:$0xf]
      %v339 = vld [vmem:[%s261 + $0x108] sm:$0xf]
      %v340 = vld [vmem:[%s261 + $0x10c] sm:$0xf]
      %v341 = vld [vmem:[%s261 + $0x110] sm:$0xf]
      %v342 = vld [vmem:[%s261 + $0x114] sm:$0xf]
      %v343 = vld [vmem:[%s261 + $0x118] sm:$0xf]
      %v344 = vld [vmem:[%s261 + $0x11c] sm:$0xf]
      %v345 = vld [vmem:[%s261 + $0x120] sm:$0xf]
      %v346 = vld [vmem:[%s261 + $0x124] sm:$0xf]
      %v347 = vld [vmem:[%s261 + $0x128] sm:$0xf]
      %v348 = vld [vmem:[%s261 + $0x12c] sm:$0xf]
      %v349 = vld [vmem:[%s261 + $0x130] sm:$0xf]
      %v350 = vld [vmem:[%s261 + $0x134] sm:$0xf]
      %v351 = vld [vmem:[%s261 + $0x138] sm:$0xf]
      %v352 = vld [vmem:[%s261 + $0x13c] sm:$0xf]
      %v353 = vld [vmem:[%s261 + $0x140] sm:$0xf]
      %v354 = vld [vmem:[%s261 + $0x144] sm:$0xf]
      %v355 = vld [vmem:[%s261 + $0x148] sm:$0xf]
      %v356 = vld [vmem:[%s261 + $0x14c] sm:$0xf]
      %v357 = vld [vmem:[%s261 + $0x150] sm:$0xf]
      %v358 = vld [vmem:[%s261 + $0x154] sm:$0xf]
      %v359 = vld [vmem:[%s261 + $0x158] sm:$0xf]
      %v360 = vld [vmem:[%s261 + $0x15c] sm:$0xf]
      %v361 = vld [vmem:[%s261 + $0x160] sm:$0xf]
      %v362 = vld [vmem:[%s261 + $0x164] sm:$0xf]
      %v363 = vld [vmem:[%s261 + $0x168] sm:$0xf]
      %v364 = vld [vmem:[%s261 + $0x16c] sm:$0xf]
      %v365 = vld [vmem:[%s261 + $0x170] sm:$0xf]
      %v366 = vld [vmem:[%s261 + $0x174] sm:$0xf]
      %v367 = vld [vmem:[%s261 + $0x178] sm:$0xf]
      %v368 = vld [vmem:[%s261 + $0x17c] sm:$0xf]
      %v369 = vld [vmem:[%s261 + $0x180] sm:$0xf]
      %v370 = vld [vmem:[%s261 + $0x184] sm:$0xf]
      %v371 = vld [vmem:[%s261 + $0x188] sm:$0xf]
      %v372 = vld [vmem:[%s261 + $0x18c] sm:$0xf]
      %v373 = vld [vmem:[%s261 + $0x190] sm:$0xf]
      %v374 = vld [vmem:[%s261 + $0x194] sm:$0xf]
      %v375 = vld [vmem:[%s261 + $0x198] sm:$0xf]
      %v376 = vld [vmem:[%s261 + $0x19c] sm:$0xf]
      %v377 = vld [vmem:[%s261 + $0x1a0] sm:$0xf]
      %v378 = vld [vmem:[%s261 + $0x1a4] sm:$0xf]
      %v379 = vld [vmem:[%s261 + $0x1a8] sm:$0xf]
      %v380 = vld [vmem:[%s261 + $0x1ac] sm:$0xf]
      %v381 = vld [vmem:[%s1] sm:$0xf]
      %v382 = vld [vmem:[%s1 + $0x4] sm:$0xf]
      %v383 = vld [vmem:[%s1 + $0x8] sm:$0xf]
      %v384 = vld [vmem:[%s1 + $0xc] sm:$0xf]
      %v385 = vld [vmem:[%s1 + $0x10] sm:$0xf]
      %v386 = vld [vmem:[%s1 + $0x14] sm:$0xf]
      %v387 = vld [vmem:[%s1 + $0x18] sm:$0xf]
      %v388 = vld [vmem:[%s1 + $0x1c] sm:$0xf]
      %v389 = vld [vmem:[%s1 + $0x20] sm:$0xf]
      %v390 = vld [vmem:[%s1 + $0x24] sm:$0xf]
      %v391 = vld [vmem:[%s1 + $0x28] sm:$0xf]
      %v392 = vld [vmem:[%s1 + $0x2c] sm:$0xf]
      %v393 = vld [vmem:[%s1 + $0x30] sm:$0xf]
      %v394 = vld [vmem:[%s1 + $0x34] sm:$0xf]
      %v395 = vld [vmem:[%s1 + $0x38] sm:$0xf]
      %v396 = vld [vmem:[%s1 + $0x3c] sm:$0xf]
      %s397 = scalar_lea.vmem %s1, 64
      %v398 = vld [vmem:[%s397] sm:$0xf]
      %v399 = vld [vmem:[%s397 + $0x4] sm:$0xf]
      %v400 = vld [vmem:[%s397 + $0x8] sm:$0xf]
      %v401 = vld [vmem:[%s397 + $0xc] sm:$0xf]
      %v402 = vld [vmem:[%s397 + $0x10] sm:$0xf]
      %v403 = vld [vmem:[%s397 + $0x14] sm:$0xf]
      %v404 = vld [vmem:[%s397 + $0x18] sm:$0xf]
      %v405 = vld [vmem:[%s397 + $0x1c] sm:$0xf]
      %v406 = vld [vmem:[%s397 + $0x20] sm:$0xf]
      %v407 = vld [vmem:[%s397 + $0x24] sm:$0xf]
      %v408 = vld [vmem:[%s397 + $0x28] sm:$0xf]
      %v409 = vld [vmem:[%s397 + $0x2c] sm:$0xf]
      %v410 = vld [vmem:[%s397 + $0x30] sm:$0xf]
      %v411 = vld [vmem:[%s397 + $0x34] sm:$0xf]
      %v412 = vld [vmem:[%s397 + $0x38] sm:$0xf]
      %v413 = vld [vmem:[%s397 + $0x3c] sm:$0xf]
      %v446 = vunpack.c.l.b16 %v309
      %v447 = vunpack.c.l.b16 %v310
      %v448 = vunpack.c.l.b16 %v311
      %v449 = vunpack.c.l.b16 %v312
      %v450 = vunpack.c.l.b16 %v313
      %v451 = vunpack.c.l.b16 %v314
      %v452 = vunpack.c.l.b16 %v315
      %v453 = vunpack.c.l.b16 %v316
      %v454 = vunpack.c.l.b16 %v317
      %v455 = vunpack.c.l.b16 %v318
      %v456 = vunpack.c.l.b16 %v319
      %v457 = vunpack.c.l.b16 %v320
      %v458 = vunpack.c.l.b16 %v321
      %v459 = vunpack.c.l.b16 %v322
      %v460 = vunpack.c.l.b16 %v323
      %v461 = vunpack.c.l.b16 %v324
      %v462 = vunpack.c.l.b16 %v325
      %v463 = vunpack.c.l.b16 %v326
      %v464 = vunpack.c.l.b16 %v327
      %v465 = vunpack.c.l.b16 %v328
      %v466 = vunpack.c.l.b16 %v329
      %v467 = vunpack.c.l.b16 %v330
      %v468 = vunpack.c.l.b16 %v331
      %v469 = vunpack.c.l.b16 %v332
      %v470 = vunpack.c.l.b16 %v333
      %v471 = vunpack.c.l.b16 %v334
      %v472 = vunpack.c.l.b16 %v335
      %v473 = vunpack.c.l.b16 %v336
      %v474 = vunpack.c.l.b16 %v337
      %v475 = vunpack.c.l.b16 %v338
      %v476 = vunpack.c.l.b16 %v339
      %v477 = vunpack.c.l.b16 %v340
      %v478 = vpack.c.b16 %v447, %v446
      %v479 = vpack.c.b16 %v449, %v448
      %v480 = vpack.c.b16 %v451, %v450
      %v481 = vpack.c.b16 %v453, %v452
      %v482 = vpack.c.b16 %v455, %v454
      %v483 = vpack.c.b16 %v457, %v456
      %v484 = vpack.c.b16 %v459, %v458
      %v485 = vpack.c.b16 %v461, %v460
      %v486 = vpack.c.b16 %v463, %v462
      %v487 = vpack.c.b16 %v465, %v464
      %v488 = vpack.c.b16 %v467, %v466
      %v489 = vpack.c.b16 %v469, %v468
      %v490 = vpack.c.b16 %v471, %v470
      %v491 = vpack.c.b16 %v473, %v472
      %v492 = vpack.c.b16 %v475, %v474
      %v493 = vpack.c.b16 %v477, %v476
      %v526 = vunpack.c.l.b16 %v398
      %v527 = vunpack.c.l.b16 %v399
      %v528 = vunpack.c.l.b16 %v400
      %v529 = vunpack.c.l.b16 %v401
      %v530 = vunpack.c.l.b16 %v402
      %v531 = vunpack.c.l.b16 %v403
      %v532 = vunpack.c.l.b16 %v404
      %v533 = vunpack.c.l.b16 %v405
      %v534 = vunpack.c.l.b16 %v406
      %v535 = vunpack.c.l.b16 %v407
      %v536 = vunpack.c.l.b16 %v408
      %v537 = vunpack.c.l.b16 %v409
      %v538 = vunpack.c.l.b16 %v410
      %v539 = vunpack.c.l.b16 %v411
      %v540 = vunpack.c.l.b16 %v412
      %v541 = vunpack.c.l.b16 %v413
      %v542 = vpack.c.b16 %v527, %v526
      %v543 = vpack.c.b16 %v529, %v528
      %v544 = vpack.c.b16 %v531, %v530
      %v545 = vpack.c.b16 %v533, %v532
      %v546 = vpack.c.b16 %v535, %v534
      %v547 = vpack.c.b16 %v537, %v536
      %v548 = vpack.c.b16 %v539, %v538
      %v549 = vpack.c.b16 %v541, %v540
      %558 = vmatprep.subr.bf16.mxu0 0
      %559 = vmatpush1.bf16.msra.mxu0 %v549
      %560 = vmatprep.subr.bf16.mxu0 0
      %561 = vmatpush1.bf16.msra.mxu0 %v548
      %562 = vmatprep.subr.bf16.mxu0 0
      %563 = vmatpush1.bf16.msra.mxu0 %v547
      %564 = vmatprep.subr.bf16.mxu0 0
      %565 = vmatpush1.bf16.msra.mxu0 %v546
      %566 = vmatprep.subr.bf16.mxu0 0
      %567 = vmatpush1.bf16.msra.mxu0 %v545
      %568 = vmatprep.subr.bf16.mxu0 0
      %569 = vmatpush1.bf16.msra.mxu0 %v544
      %570 = vmatprep.subr.bf16.mxu0 0
      %571 = vmatpush1.bf16.msra.mxu0 %v543
      %572 = vmatprep.subr.bf16.mxu0 0
      %573 = vmatpush1.bf16.msra.mxu0 %v542
      %574 = vmatprep.subr.bf16.mxu0 0
      %575 = vmatpush2.bf16.msra.mxu0 0
      %576 = vmatprep.subr.bf16.mxu0 0
      %577 = vmatpush2.bf16.msra.mxu0 0
      %578 = vmatprep.subr.bf16.mxu0 0
      %579 = vmatpush2.bf16.msra.mxu0 0
      %580 = vmatprep.subr.bf16.mxu0 0
      %581 = vmatpush2.bf16.msra.mxu0 0
      %582 = vmatprep.subr.bf16.mxu0 0
      %583 = vmatpush2.bf16.msra.mxu0 0
      %584 = vmatprep.subr.bf16.mxu0 0
      %585 = vmatpush2.bf16.msra.mxu0 0
      %586 = vmatprep.subr.bf16.mxu0 0
      %587 = vmatpush2.bf16.msra.mxu0 0
      %588 = vmatprep.subr.bf16.mxu0 0
      %589 = vmatpush2.bf16.msra.mxu0 0
      %590 = vmatprep.mubr.bf16.mxu0 0
      %591 = vmatmul.mubr.bf16.gmra.mxu0 %v478
      %v592 = vpop.f32.mrf.mxu0
      %v593 = vadd.f32 0.0, %v592
      %v594 = vpop.f32.mrf.mxu0
      %v595 = vpop.f32.mrf.mxu0
      %v596 = vadd.f32 0.0, %v595
      %v597 = vpop.f32.mrf.mxu0
      %598 = vmatprep.mubr.bf16.mxu0 0
      %599 = vmatmul.mubr.bf16.gmra.mxu0 %v479
      %v600 = vpop.f32.mrf.mxu0
      %v601 = vadd.f32 0.0, %v600
      %v602 = vpop.f32.mrf.mxu0
      %v603 = vpop.f32.mrf.mxu0
      %v604 = vadd.f32 0.0, %v603
      %v605 = vpop.f32.mrf.mxu0
      %606 = vmatprep.mubr.bf16.mxu0 0
      %607 = vmatmul.mubr.bf16.gmra.mxu0 %v480
      %v608 = vpop.f32.mrf.mxu0
      %v609 = vadd.f32 0.0, %v608
      %v610 = vpop.f32.mrf.mxu0
      %v611 = vpop.f32.mrf.mxu0
      %v612 = vadd.f32 0.0, %v611
      %v613 = vpop.f32.mrf.mxu0
      %614 = vmatprep.mubr.bf16.mxu0 0
      %615 = vmatmul.mubr.bf16.gmra.mxu0 %v481
      %v616 = vpop.f32.mrf.mxu0
      %v617 = vadd.f32 0.0, %v616
      %v618 = vpop.f32.mrf.mxu0
      %v619 = vpop.f32.mrf.mxu0
      %v620 = vadd.f32 0.0, %v619
      %v621 = vpop.f32.mrf.mxu0
      %622 = vmatprep.mubr.bf16.mxu0 0
      %623 = vmatmul.mubr.bf16.gmra.mxu0 %v482
      %v624 = vpop.f32.mrf.mxu0
      %v625 = vadd.f32 0.0, %v624
      %v626 = vpop.f32.mrf.mxu0
      %v627 = vpop.f32.mrf.mxu0
      %v628 = vadd.f32 0.0, %v627
      %v629 = vpop.f32.mrf.mxu0
      %630 = vmatprep.mubr.bf16.mxu0 0
      %631 = vmatmul.mubr.bf16.gmra.mxu0 %v483
      %v632 = vpop.f32.mrf.mxu0
      %v633 = vadd.f32 0.0, %v632
      %v634 = vpop.f32.mrf.mxu0
      %v635 = vpop.f32.mrf.mxu0
      %v636 = vadd.f32 0.0, %v635
      %v637 = vpop.f32.mrf.mxu0
      %638 = vmatprep.mubr.bf16.mxu0 0
      %639 = vmatmul.mubr.bf16.gmra.mxu0 %v484
      %v640 = vpop.f32.mrf.mxu0
      %v641 = vadd.f32 0.0, %v640
      %v642 = vpop.f32.mrf.mxu0
      %v643 = vpop.f32.mrf.mxu0
      %v644 = vadd.f32 0.0, %v643
      %v645 = vpop.f32.mrf.mxu0
      %646 = vmatprep.mubr.bf16.mxu0 0
      %647 = vmatmul.mubr.bf16.gmra.mxu0 %v485
      %v648 = vpop.f32.mrf.mxu0
      %v649 = vadd.f32 0.0, %v648
      %v650 = vpop.f32.mrf.mxu0
      %v651 = vpop.f32.mrf.mxu0
      %v652 = vadd.f32 0.0, %v651
      %v653 = vpop.f32.mrf.mxu0
      %654 = vmatprep.mubr.bf16.mxu0 0
      %655 = vmatmul.mubr.bf16.gmra.mxu0 %v486
      %v656 = vpop.f32.mrf.mxu0
      %v657 = vadd.f32 0.0, %v656
      %v658 = vpop.f32.mrf.mxu0
      %v659 = vpop.f32.mrf.mxu0
      %v660 = vadd.f32 0.0, %v659
      %v661 = vpop.f32.mrf.mxu0
      %662 = vmatprep.mubr.bf16.mxu0 0
      %663 = vmatmul.mubr.bf16.gmra.mxu0 %v487
      %v664 = vpop.f32.mrf.mxu0
      %v665 = vadd.f32 0.0, %v664
      %v666 = vpop.f32.mrf.mxu0
      %v667 = vpop.f32.mrf.mxu0
      %v668 = vadd.f32 0.0, %v667
      %v669 = vpop.f32.mrf.mxu0
      %670 = vmatprep.mubr.bf16.mxu0 0
      %671 = vmatmul.mubr.bf16.gmra.mxu0 %v488
      %v672 = vpop.f32.mrf.mxu0
      %v673 = vadd.f32 0.0, %v672
      %v674 = vpop.f32.mrf.mxu0
      %v675 = vpop.f32.mrf.mxu0
      %v676 = vadd.f32 0.0, %v675
      %v677 = vpop.f32.mrf.mxu0
      %678 = vmatprep.mubr.bf16.mxu0 0
      %679 = vmatmul.mubr.bf16.gmra.mxu0 %v489
      %v680 = vpop.f32.mrf.mxu0
      %v681 = vadd.f32 0.0, %v680
      %v682 = vpop.f32.mrf.mxu0
      %v683 = vpop.f32.mrf.mxu0
      %v684 = vadd.f32 0.0, %v683
      %v685 = vpop.f32.mrf.mxu0
      %686 = vmatprep.mubr.bf16.mxu0 0
      %687 = vmatmul.mubr.bf16.gmra.mxu0 %v490
      %v688 = vpop.f32.mrf.mxu0
      %v689 = vadd.f32 0.0, %v688
      %v690 = vpop.f32.mrf.mxu0
      %v691 = vpop.f32.mrf.mxu0
      %v692 = vadd.f32 0.0, %v691
      %v693 = vpop.f32.mrf.mxu0
      %694 = vmatprep.mubr.bf16.mxu0 0
      %695 = vmatmul.mubr.bf16.gmra.mxu0 %v491
      %v696 = vpop.f32.mrf.mxu0
      %v697 = vadd.f32 0.0, %v696
      %v698 = vpop.f32.mrf.mxu0
      %v699 = vpop.f32.mrf.mxu0
      %v700 = vadd.f32 0.0, %v699
      %v701 = vpop.f32.mrf.mxu0
      %702 = vmatprep.mubr.bf16.mxu0 0
      %703 = vmatmul.mubr.bf16.gmra.mxu0 %v492
      %v704 = vpop.f32.mrf.mxu0
      %v705 = vadd.f32 0.0, %v704
      %v706 = vpop.f32.mrf.mxu0
      %v707 = vpop.f32.mrf.mxu0
      %v708 = vadd.f32 0.0, %v707
      %v709 = vpop.f32.mrf.mxu0
      %710 = vmatprep.mubr.bf16.mxu0 0
      %711 = vmatmul.mubr.bf16.gmra.mxu0 %v493
      %v712 = vpop.f32.mrf.mxu0
      %v713 = vadd.f32 0.0, %v712
      %v714 = vpop.f32.mrf.mxu0
      %v715 = vpop.f32.mrf.mxu0
      %v716 = vadd.f32 0.0, %v715
      %v717 = vpop.f32.mrf.mxu0
      %718 = vdwg.mxu0
      %v751 = vunpack.c.l.b16 %v273
      %v752 = vunpack.c.l.b16 %v274
      %v753 = vunpack.c.l.b16 %v275
      %v754 = vunpack.c.l.b16 %v276
      %v755 = vunpack.c.l.b16 %v277
      %v756 = vunpack.c.l.b16 %v278
      %v757 = vunpack.c.l.b16 %v279
      %v758 = vunpack.c.l.b16 %v280
      %v759 = vunpack.c.l.b16 %v281
      %v760 = vunpack.c.l.b16 %v282
      %v761 = vunpack.c.l.b16 %v283
      %v762 = vunpack.c.l.b16 %v284
      %v763 = vunpack.c.l.b16 %v285
      %v764 = vunpack.c.l.b16 %v286
      %v765 = vunpack.c.l.b16 %v287
      %v766 = vunpack.c.l.b16 %v288
      %v767 = vunpack.c.l.b16 %v289
      %v768 = vunpack.c.l.b16 %v290
      %v769 = vunpack.c.l.b16 %v291
      %v770 = vunpack.c.l.b16 %v292
      %v771 = vunpack.c.l.b16 %v293
      %v772 = vunpack.c.l.b16 %v294
      %v773 = vunpack.c.l.b16 %v295
      %v774 = vunpack.c.l.b16 %v296
      %v775 = vunpack.c.l.b16 %v297
      %v776 = vunpack.c.l.b16 %v298
      %v777 = vunpack.c.l.b16 %v299
      %v778 = vunpack.c.l.b16 %v300
      %v779 = vunpack.c.l.b16 %v301
      %v780 = vunpack.c.l.b16 %v302
      %v781 = vunpack.c.l.b16 %v303
      %v782 = vunpack.c.l.b16 %v304
      %v783 = vpack.c.b16 %v752, %v751
      %v784 = vpack.c.b16 %v754, %v753
      %v785 = vpack.c.b16 %v756, %v755
      %v786 = vpack.c.b16 %v758, %v757
      %v787 = vpack.c.b16 %v760, %v759
      %v788 = vpack.c.b16 %v762, %v761
      %v789 = vpack.c.b16 %v764, %v763
      %v790 = vpack.c.b16 %v766, %v765
      %v791 = vpack.c.b16 %v768, %v767
      %v792 = vpack.c.b16 %v770, %v769
      %v793 = vpack.c.b16 %v772, %v771
      %v794 = vpack.c.b16 %v774, %v773
      %v795 = vpack.c.b16 %v776, %v775
      %v796 = vpack.c.b16 %v778, %v777
      %v797 = vpack.c.b16 %v780, %v779
      %v798 = vpack.c.b16 %v782, %v781
      %v831 = vunpack.c.l.b16 %v381
      %v832 = vunpack.c.l.b16 %v382
      %v833 = vunpack.c.l.b16 %v383
      %v834 = vunpack.c.l.b16 %v384
      %v835 = vunpack.c.l.b16 %v385
      %v836 = vunpack.c.l.b16 %v386
      %v837 = vunpack.c.l.b16 %v387
      %v838 = vunpack.c.l.b16 %v388
      %v839 = vunpack.c.l.b16 %v389
      %v840 = vunpack.c.l.b16 %v390
      %v841 = vunpack.c.l.b16 %v391
      %v842 = vunpack.c.l.b16 %v392
      %v843 = vunpack.c.l.b16 %v393
      %v844 = vunpack.c.l.b16 %v394
      %v845 = vunpack.c.l.b16 %v395
      %v846 = vunpack.c.l.b16 %v396
      %v847 = vpack.c.b16 %v832, %v831
      %v848 = vpack.c.b16 %v834, %v833
      %v849 = vpack.c.b16 %v836, %v835
      %v850 = vpack.c.b16 %v838, %v837
      %v851 = vpack.c.b16 %v840, %v839
      %v852 = vpack.c.b16 %v842, %v841
      %v853 = vpack.c.b16 %v844, %v843
      %v854 = vpack.c.b16 %v846, %v845
      %863 = vmatprep.subr.bf16.mxu0 0
      %864 = vmatpush1.bf16.msra.mxu0 %v854
      %865 = vmatprep.subr.bf16.mxu0 0
      %866 = vmatpush1.bf16.msra.mxu0 %v853
      %867 = vmatprep.subr.bf16.mxu0 0
      %868 = vmatpush1.bf16.msra.mxu0 %v852
      %869 = vmatprep.subr.bf16.mxu0 0
      %870 = vmatpush1.bf16.msra.mxu0 %v851
      %871 = vmatprep.subr.bf16.mxu0 0
      %872 = vmatpush1.bf16.msra.mxu0 %v850
      %873 = vmatprep.subr.bf16.mxu0 0
      %874 = vmatpush1.bf16.msra.mxu0 %v849
      %875 = vmatprep.subr.bf16.mxu0 0
      %876 = vmatpush1.bf16.msra.mxu0 %v848
      %877 = vmatprep.subr.bf16.mxu0 0
      %878 = vmatpush1.bf16.msra.mxu0 %v847
      %879 = vmatprep.subr.bf16.mxu0 0
      %880 = vmatpush2.bf16.msra.mxu0 0
      %881 = vmatprep.subr.bf16.mxu0 0
      %882 = vmatpush2.bf16.msra.mxu0 0
      %883 = vmatprep.subr.bf16.mxu0 0
      %884 = vmatpush2.bf16.msra.mxu0 0
      %885 = vmatprep.subr.bf16.mxu0 0
      %886 = vmatpush2.bf16.msra.mxu0 0
      %887 = vmatprep.subr.bf16.mxu0 0
      %888 = vmatpush2.bf16.msra.mxu0 0
      %889 = vmatprep.subr.bf16.mxu0 0
      %890 = vmatpush2.bf16.msra.mxu0 0
      %891 = vmatprep.subr.bf16.mxu0 0
      %892 = vmatpush2.bf16.msra.mxu0 0
      %893 = vmatprep.subr.bf16.mxu0 0
      %894 = vmatpush2.bf16.msra.mxu0 0
      %895 = vmatprep.mubr.bf16.mxu0 0
      %896 = vmatmul.mubr.bf16.gmra.mxu0 %v783
      %v897 = vpop.f32.mrf.mxu0
      %v898 = vadd.f32 %v593, %v897
      %v899 = vpop.f32.mrf.mxu0
      %v900 = vpop.f32.mrf.mxu0
      %v901 = vadd.f32 %v596, %v900
      %v902 = vpop.f32.mrf.mxu0
      %903 = vmatprep.mubr.bf16.mxu0 0
      %904 = vmatmul.mubr.bf16.gmra.mxu0 %v784
      %v905 = vpop.f32.mrf.mxu0
      %v906 = vadd.f32 %v601, %v905
      %v907 = vpop.f32.mrf.mxu0
      %v908 = vpop.f32.mrf.mxu0
      %v909 = vadd.f32 %v604, %v908
      %v910 = vpop.f32.mrf.mxu0
      %911 = vmatprep.mubr.bf16.mxu0 0
      %912 = vmatmul.mubr.bf16.gmra.mxu0 %v785
      %v913 = vpop.f32.mrf.mxu0
      %v914 = vadd.f32 %v609, %v913
      %v915 = vpop.f32.mrf.mxu0
      %v916 = vpop.f32.mrf.mxu0
      %v917 = vadd.f32 %v612, %v916
      %v918 = vpop.f32.mrf.mxu0
      %919 = vmatprep.mubr.bf16.mxu0 0
      %920 = vmatmul.mubr.bf16.gmra.mxu0 %v786
      %v921 = vpop.f32.mrf.mxu0
      %v922 = vadd.f32 %v617, %v921
      %v923 = vpop.f32.mrf.mxu0
      %v924 = vpop.f32.mrf.mxu0
      %v925 = vadd.f32 %v620, %v924
      %v926 = vpop.f32.mrf.mxu0
      %927 = vmatprep.mubr.bf16.mxu0 0
      %928 = vmatmul.mubr.bf16.gmra.mxu0 %v787
      %v929 = vpop.f32.mrf.mxu0
      %v930 = vadd.f32 %v625, %v929
      %v931 = vpop.f32.mrf.mxu0
      %v932 = vpop.f32.mrf.mxu0
      %v933 = vadd.f32 %v628, %v932
      %v934 = vpop.f32.mrf.mxu0
      %935 = vmatprep.mubr.bf16.mxu0 0
      %936 = vmatmul.mubr.bf16.gmra.mxu0 %v788
      %v937 = vpop.f32.mrf.mxu0
      %v938 = vadd.f32 %v633, %v937
      %v939 = vpop.f32.mrf.mxu0
      %v940 = vpop.f32.mrf.mxu0
      %v941 = vadd.f32 %v636, %v940
      %v942 = vpop.f32.mrf.mxu0
      %943 = vmatprep.mubr.bf16.mxu0 0
      %944 = vmatmul.mubr.bf16.gmra.mxu0 %v789
      %v945 = vpop.f32.mrf.mxu0
      %v946 = vadd.f32 %v641, %v945
      %v947 = vpop.f32.mrf.mxu0
      %v948 = vpop.f32.mrf.mxu0
      %v949 = vadd.f32 %v644, %v948
      %v950 = vpop.f32.mrf.mxu0
      %951 = vmatprep.mubr.bf16.mxu0 0
      %952 = vmatmul.mubr.bf16.gmra.mxu0 %v790
      %v953 = vpop.f32.mrf.mxu0
      %v954 = vadd.f32 %v649, %v953
      %v955 = vpop.f32.mrf.mxu0
      %v956 = vpop.f32.mrf.mxu0
      %v957 = vadd.f32 %v652, %v956
      %v958 = vpop.f32.mrf.mxu0
      %959 = vmatprep.mubr.bf16.mxu0 0
      %960 = vmatmul.mubr.bf16.gmra.mxu0 %v791
      %v961 = vpop.f32.mrf.mxu0
      %v962 = vadd.f32 %v657, %v961
      %v963 = vpop.f32.mrf.mxu0
      %v964 = vpop.f32.mrf.mxu0
      %v965 = vadd.f32 %v660, %v964
      %v966 = vpop.f32.mrf.mxu0
      %967 = vmatprep.mubr.bf16.mxu0 0
      %968 = vmatmul.mubr.bf16.gmra.mxu0 %v792
      %v969 = vpop.f32.mrf.mxu0
      %v970 = vadd.f32 %v665, %v969
      %v971 = vpop.f32.mrf.mxu0
      %v972 = vpop.f32.mrf.mxu0
      %v973 = vadd.f32 %v668, %v972
      %v974 = vpop.f32.mrf.mxu0
      %975 = vmatprep.mubr.bf16.mxu0 0
      %976 = vmatmul.mubr.bf16.gmra.mxu0 %v793
      %v977 = vpop.f32.mrf.mxu0
      %v978 = vadd.f32 %v673, %v977
      %v979 = vpop.f32.mrf.mxu0
      %v980 = vpop.f32.mrf.mxu0
      %v981 = vadd.f32 %v676, %v980
      %v982 = vpop.f32.mrf.mxu0
      %983 = vmatprep.mubr.bf16.mxu0 0
      %984 = vmatmul.mubr.bf16.gmra.mxu0 %v794
      %v985 = vpop.f32.mrf.mxu0
      %v986 = vadd.f32 %v681, %v985
      %v987 = vpop.f32.mrf.mxu0
      %v988 = vpop.f32.mrf.mxu0
      %v989 = vadd.f32 %v684, %v988
      %v990 = vpop.f32.mrf.mxu0
      %991 = vmatprep.mubr.bf16.mxu0 0
      %992 = vmatmul.mubr.bf16.gmra.mxu0 %v795
      %v993 = vpop.f32.mrf.mxu0
      %v994 = vadd.f32 %v689, %v993
      %v995 = vpop.f32.mrf.mxu0
      %v996 = vpop.f32.mrf.mxu0
      %v997 = vadd.f32 %v692, %v996
      %v998 = vpop.f32.mrf.mxu0
      %999 = vmatprep.mubr.bf16.mxu0 0
      %1000 = vmatmul.mubr.bf16.gmra.mxu0 %v796
      %v1001 = vpop.f32.mrf.mxu0
      %v1002 = vadd.f32 %v697, %v1001
      %v1003 = vpop.f32.mrf.mxu0
      %v1004 = vpop.f32.mrf.mxu0
      %v1005 = vadd.f32 %v700, %v1004
      %v1006 = vpop.f32.mrf.mxu0
      %1007 = vmatprep.mubr.bf16.mxu0 0
      %1008 = vmatmul.mubr.bf16.gmra.mxu0 %v797
      %v1009 = vpop.f32.mrf.mxu0
      %v1010 = vadd.f32 %v705, %v1009
      %v1011 = vpop.f32.mrf.mxu0
      %v1012 = vpop.f32.mrf.mxu0
      %v1013 = vadd.f32 %v708, %v1012
      %v1014 = vpop.f32.mrf.mxu0
      %1015 = vmatprep.mubr.bf16.mxu0 0
      %1016 = vmatmul.mubr.bf16.gmra.mxu0 %v798
      %v1017 = vpop.f32.mrf.mxu0
      %v1018 = vadd.f32 %v713, %v1017
      %v1019 = vpop.f32.mrf.mxu0
      %v1020 = vpop.f32.mrf.mxu0
      %v1021 = vadd.f32 %v716, %v1020
      %v1022 = vpop.f32.mrf.mxu0
      %1023 = vdwg.mxu0
      %s1024 = scalar_lea.vmem %s1, 128
      %v1025 = vld [vmem:[%s1024] sm:$0xf]
      %v1026 = vld [vmem:[%s1024 + $0x4] sm:$0xf]
      %v1027 = vld [vmem:[%s1024 + $0x8] sm:$0xf]
      %v1028 = vld [vmem:[%s1024 + $0xc] sm:$0xf]
      %v1029 = vld [vmem:[%s1024 + $0x10] sm:$0xf]
      %v1030 = vld [vmem:[%s1024 + $0x14] sm:$0xf]
      %v1031 = vld [vmem:[%s1024 + $0x18] sm:$0xf]
      %v1032 = vld [vmem:[%s1024 + $0x1c] sm:$0xf]
      %v1033 = vld [vmem:[%s1024 + $0x20] sm:$0xf]
      %v1034 = vld [vmem:[%s1024 + $0x24] sm:$0xf]
      %v1035 = vld [vmem:[%s1024 + $0x28] sm:$0xf]
      %v1036 = vld [vmem:[%s1024 + $0x2c] sm:$0xf]
      %v1037 = vld [vmem:[%s1024 + $0x30] sm:$0xf]
      %v1038 = vld [vmem:[%s1024 + $0x34] sm:$0xf]
      %v1039 = vld [vmem:[%s1024 + $0x38] sm:$0xf]
      %v1040 = vld [vmem:[%s1024 + $0x3c] sm:$0xf]
      %v1073 = vunpack.c.l.b16 %v345
      %v1074 = vunpack.c.l.b16 %v346
      %v1075 = vunpack.c.l.b16 %v347
      %v1076 = vunpack.c.l.b16 %v348
      %v1077 = vunpack.c.l.b16 %v349
      %v1078 = vunpack.c.l.b16 %v350
      %v1079 = vunpack.c.l.b16 %v351
      %v1080 = vunpack.c.l.b16 %v352
      %v1081 = vunpack.c.l.b16 %v353
      %v1082 = vunpack.c.l.b16 %v354
      %v1083 = vunpack.c.l.b16 %v355
      %v1084 = vunpack.c.l.b16 %v356
      %v1085 = vunpack.c.l.b16 %v357
      %v1086 = vunpack.c.l.b16 %v358
      %v1087 = vunpack.c.l.b16 %v359
      %v1088 = vunpack.c.l.b16 %v360
      %v1089 = vunpack.c.l.b16 %v361
      %v1090 = vunpack.c.l.b16 %v362
      %v1091 = vunpack.c.l.b16 %v363
      %v1092 = vunpack.c.l.b16 %v364
      %v1093 = vunpack.c.l.b16 %v365
      %v1094 = vunpack.c.l.b16 %v366
      %v1095 = vunpack.c.l.b16 %v367
      %v1096 = vunpack.c.l.b16 %v368
      %v1097 = vunpack.c.l.b16 %v369
      %v1098 = vunpack.c.l.b16 %v370
      %v1099 = vunpack.c.l.b16 %v371
      %v1100 = vunpack.c.l.b16 %v372
      %v1101 = vunpack.c.l.b16 %v373
      %v1102 = vunpack.c.l.b16 %v374
      %v1103 = vunpack.c.l.b16 %v375
      %v1104 = vunpack.c.l.b16 %v376
      %v1105 = vpack.c.b16 %v1074, %v1073
      %v1106 = vpack.c.b16 %v1076, %v1075
      %v1107 = vpack.c.b16 %v1078, %v1077
      %v1108 = vpack.c.b16 %v1080, %v1079
      %v1109 = vpack.c.b16 %v1082, %v1081
      %v1110 = vpack.c.b16 %v1084, %v1083
      %v1111 = vpack.c.b16 %v1086, %v1085
      %v1112 = vpack.c.b16 %v1088, %v1087
      %v1113 = vpack.c.b16 %v1090, %v1089
      %v1114 = vpack.c.b16 %v1092, %v1091
      %v1115 = vpack.c.b16 %v1094, %v1093
      %v1116 = vpack.c.b16 %v1096, %v1095
      %v1117 = vpack.c.b16 %v1098, %v1097
      %v1118 = vpack.c.b16 %v1100, %v1099
      %v1119 = vpack.c.b16 %v1102, %v1101
      %v1120 = vpack.c.b16 %v1104, %v1103
      %v1153 = vunpack.c.l.b16 %v1025
      %v1154 = vunpack.c.l.b16 %v1026
      %v1155 = vunpack.c.l.b16 %v1027
      %v1156 = vunpack.c.l.b16 %v1028
      %v1157 = vunpack.c.l.b16 %v1029
      %v1158 = vunpack.c.l.b16 %v1030
      %v1159 = vunpack.c.l.b16 %v1031
      %v1160 = vunpack.c.l.b16 %v1032
      %v1161 = vunpack.c.l.b16 %v1033
      %v1162 = vunpack.c.l.b16 %v1034
      %v1163 = vunpack.c.l.b16 %v1035
      %v1164 = vunpack.c.l.b16 %v1036
      %v1165 = vunpack.c.l.b16 %v1037
      %v1166 = vunpack.c.l.b16 %v1038
      %v1167 = vunpack.c.l.b16 %v1039
      %v1168 = vunpack.c.l.b16 %v1040
      %v1169 = vpack.c.b16 %v1154, %v1153
      %v1170 = vpack.c.b16 %v1156, %v1155
      %v1171 = vpack.c.b16 %v1158, %v1157
      %v1172 = vpack.c.b16 %v1160, %v1159
      %v1173 = vpack.c.b16 %v1162, %v1161
      %v1174 = vpack.c.b16 %v1164, %v1163
      %v1175 = vpack.c.b16 %v1166, %v1165
      %v1176 = vpack.c.b16 %v1168, %v1167
      %1185 = vmatprep.subr.bf16.mxu0 0
      %1186 = vmatpush1.bf16.msra.mxu0 %v1176
      %1187 = vmatprep.subr.bf16.mxu0 0
      %1188 = vmatpush1.bf16.msra.mxu0 %v1175
      %1189 = vmatprep.subr.bf16.mxu0 0
      %1190 = vmatpush1.bf16.msra.mxu0 %v1174
      %1191 = vmatprep.subr.bf16.mxu0 0
      %1192 = vmatpush1.bf16.msra.mxu0 %v1173
      %1193 = vmatprep.subr.bf16.mxu0 0
      %1194 = vmatpush1.bf16.msra.mxu0 %v1172
      %1195 = vmatprep.subr.bf16.mxu0 0
      %1196 = vmatpush1.bf16.msra.mxu0 %v1171
      %1197 = vmatprep.subr.bf16.mxu0 0
      %1198 = vmatpush1.bf16.msra.mxu0 %v1170
      %1199 = vmatprep.subr.bf16.mxu0 0
      %1200 = vmatpush1.bf16.msra.mxu0 %v1169
      %1201 = vmatprep.subr.bf16.mxu0 0
      %1202 = vmatpush2.bf16.msra.mxu0 0
      %1203 = vmatprep.subr.bf16.mxu0 0
      %1204 = vmatpush2.bf16.msra.mxu0 0
      %1205 = vmatprep.subr.bf16.mxu0 0
      %1206 = vmatpush2.bf16.msra.mxu0 0
      %1207 = vmatprep.subr.bf16.mxu0 0
      %1208 = vmatpush2.bf16.msra.mxu0 0
      %1209 = vmatprep.subr.bf16.mxu0 0
      %1210 = vmatpush2.bf16.msra.mxu0 0
      %1211 = vmatprep.subr.bf16.mxu0 0
      %1212 = vmatpush2.bf16.msra.mxu0 0
      %1213 = vmatprep.subr.bf16.mxu0 0
      %1214 = vmatpush2.bf16.msra.mxu0 0
      %1215 = vmatprep.subr.bf16.mxu0 0
      %1216 = vmatpush2.bf16.msra.mxu0 0
      %1217 = vmatprep.mubr.bf16.mxu0 0
      %1218 = vmatmul.mubr.bf16.gmra.mxu0 %v1105
      %v1219 = vpop.f32.mrf.mxu0
      %v1220 = vadd.f32 0.0, %v1219
      %v1221 = vpop.f32.mrf.mxu0
      %v1222 = vpop.f32.mrf.mxu0
      %v1223 = vadd.f32 0.0, %v1222
      %v1224 = vpop.f32.mrf.mxu0
      %1225 = vmatprep.mubr.bf16.mxu0 0
      %1226 = vmatmul.mubr.bf16.gmra.mxu0 %v1106
      %v1227 = vpop.f32.mrf.mxu0
      %v1228 = vadd.f32 0.0, %v1227
      %v1229 = vpop.f32.mrf.mxu0
      %v1230 = vpop.f32.mrf.mxu0
      %v1231 = vadd.f32 0.0, %v1230
      %v1232 = vpop.f32.mrf.mxu0
      %1233 = vmatprep.mubr.bf16.mxu0 0
      %1234 = vmatmul.mubr.bf16.gmra.mxu0 %v1107
      %v1235 = vpop.f32.mrf.mxu0
      %v1236 = vadd.f32 0.0, %v1235
      %v1237 = vpop.f32.mrf.mxu0
      %v1238 = vpop.f32.mrf.mxu0
      %v1239 = vadd.f32 0.0, %v1238
      %v1240 = vpop.f32.mrf.mxu0
      %1241 = vmatprep.mubr.bf16.mxu0 0
      %1242 = vmatmul.mubr.bf16.gmra.mxu0 %v1108
      %v1243 = vpop.f32.mrf.mxu0
      %v1244 = vadd.f32 0.0, %v1243
      %v1245 = vpop.f32.mrf.mxu0
      %v1246 = vpop.f32.mrf.mxu0
      %v1247 = vadd.f32 0.0, %v1246
      %v1248 = vpop.f32.mrf.mxu0
      %1249 = vmatprep.mubr.bf16.mxu0 0
      %1250 = vmatmul.mubr.bf16.gmra.mxu0 %v1109
      %v1251 = vpop.f32.mrf.mxu0
      %v1252 = vadd.f32 0.0, %v1251
      %v1253 = vpop.f32.mrf.mxu0
      %v1254 = vpop.f32.mrf.mxu0
      %v1255 = vadd.f32 0.0, %v1254
      %v1256 = vpop.f32.mrf.mxu0
      %1257 = vmatprep.mubr.bf16.mxu0 0
      %1258 = vmatmul.mubr.bf16.gmra.mxu0 %v1110
      %v1259 = vpop.f32.mrf.mxu0
      %v1260 = vadd.f32 0.0, %v1259
      %v1261 = vpop.f32.mrf.mxu0
      %v1262 = vpop.f32.mrf.mxu0
      %v1263 = vadd.f32 0.0, %v1262
      %v1264 = vpop.f32.mrf.mxu0
      %1265 = vmatprep.mubr.bf16.mxu0 0
      %1266 = vmatmul.mubr.bf16.gmra.mxu0 %v1111
      %v1267 = vpop.f32.mrf.mxu0
      %v1268 = vadd.f32 0.0, %v1267
      %v1269 = vpop.f32.mrf.mxu0
      %v1270 = vpop.f32.mrf.mxu0
      %v1271 = vadd.f32 0.0, %v1270
      %v1272 = vpop.f32.mrf.mxu0
      %1273 = vmatprep.mubr.bf16.mxu0 0
      %1274 = vmatmul.mubr.bf16.gmra.mxu0 %v1112
      %v1275 = vpop.f32.mrf.mxu0
      %v1276 = vadd.f32 0.0, %v1275
      %v1277 = vpop.f32.mrf.mxu0
      %v1278 = vpop.f32.mrf.mxu0
      %v1279 = vadd.f32 0.0, %v1278
      %v1280 = vpop.f32.mrf.mxu0
      %1281 = vmatprep.mubr.bf16.mxu0 0
      %1282 = vmatmul.mubr.bf16.gmra.mxu0 %v1113
      %v1283 = vpop.f32.mrf.mxu0
      %v1284 = vadd.f32 0.0, %v1283
      %v1285 = vpop.f32.mrf.mxu0
      %v1286 = vpop.f32.mrf.mxu0
      %v1287 = vadd.f32 0.0, %v1286
      %v1288 = vpop.f32.mrf.mxu0
      %1289 = vmatprep.mubr.bf16.mxu0 0
      %1290 = vmatmul.mubr.bf16.gmra.mxu0 %v1114
      %v1291 = vpop.f32.mrf.mxu0
      %v1292 = vadd.f32 0.0, %v1291
      %v1293 = vpop.f32.mrf.mxu0
      %v1294 = vpop.f32.mrf.mxu0
      %v1295 = vadd.f32 0.0, %v1294
      %v1296 = vpop.f32.mrf.mxu0
      %1297 = vmatprep.mubr.bf16.mxu0 0
      %1298 = vmatmul.mubr.bf16.gmra.mxu0 %v1115
      %v1299 = vpop.f32.mrf.mxu0
      %v1300 = vadd.f32 0.0, %v1299
      %v1301 = vpop.f32.mrf.mxu0
      %v1302 = vpop.f32.mrf.mxu0
      %v1303 = vadd.f32 0.0, %v1302
      %v1304 = vpop.f32.mrf.mxu0
      %1305 = vmatprep.mubr.bf16.mxu0 0
      %1306 = vmatmul.mubr.bf16.gmra.mxu0 %v1116
      %v1307 = vpop.f32.mrf.mxu0
      %v1308 = vadd.f32 0.0, %v1307
      %v1309 = vpop.f32.mrf.mxu0
      %v1310 = vpop.f32.mrf.mxu0
      %v1311 = vadd.f32 0.0, %v1310
      %v1312 = vpop.f32.mrf.mxu0
      %1313 = vmatprep.mubr.bf16.mxu0 0
      %1314 = vmatmul.mubr.bf16.gmra.mxu0 %v1117
      %v1315 = vpop.f32.mrf.mxu0
      %v1316 = vadd.f32 0.0, %v1315
      %v1317 = vpop.f32.mrf.mxu0
      %v1318 = vpop.f32.mrf.mxu0
      %v1319 = vadd.f32 0.0, %v1318
      %v1320 = vpop.f32.mrf.mxu0
      %1321 = vmatprep.mubr.bf16.mxu0 0
      %1322 = vmatmul.mubr.bf16.gmra.mxu0 %v1118
      %v1323 = vpop.f32.mrf.mxu0
      %v1324 = vadd.f32 0.0, %v1323
      %v1325 = vpop.f32.mrf.mxu0
      %v1326 = vpop.f32.mrf.mxu0
      %v1327 = vadd.f32 0.0, %v1326
      %v1328 = vpop.f32.mrf.mxu0
      %1329 = vmatprep.mubr.bf16.mxu0 0
      %1330 = vmatmul.mubr.bf16.gmra.mxu0 %v1119
      %v1331 = vpop.f32.mrf.mxu0
      %v1332 = vadd.f32 0.0, %v1331
      %v1333 = vpop.f32.mrf.mxu0
      %v1334 = vpop.f32.mrf.mxu0
      %v1335 = vadd.f32 0.0, %v1334
      %v1336 = vpop.f32.mrf.mxu0
      %1337 = vmatprep.mubr.bf16.mxu0 0
      %1338 = vmatmul.mubr.bf16.gmra.mxu0 %v1120
      %v1339 = vpop.f32.mrf.mxu0
      %v1340 = vadd.f32 0.0, %v1339
      %v1341 = vpop.f32.mrf.mxu0
      %v1342 = vpop.f32.mrf.mxu0
      %v1343 = vadd.f32 0.0, %v1342
      %v1344 = vpop.f32.mrf.mxu0
      %1345 = vdwg.mxu0
      %v1346 = vadd.f32 %v898, %v1220
      %v1347 = vadd.f32 %v901, %v1223
      %v1348 = vadd.f32 %v906, %v1228
      %v1349 = vadd.f32 %v909, %v1231
      %v1350 = vadd.f32 %v914, %v1236
      %v1351 = vadd.f32 %v917, %v1239
      %v1352 = vadd.f32 %v922, %v1244
      %v1353 = vadd.f32 %v925, %v1247
      %v1354 = vadd.f32 %v930, %v1252
      %v1355 = vadd.f32 %v933, %v1255
      %v1356 = vadd.f32 %v938, %v1260
      %v1357 = vadd.f32 %v941, %v1263
      %v1358 = vadd.f32 %v946, %v1268
      %v1359 = vadd.f32 %v949, %v1271
      %v1360 = vadd.f32 %v954, %v1276
      %v1361 = vadd.f32 %v957, %v1279
      %v1362 = vadd.f32 %v962, %v1284
      %v1363 = vadd.f32 %v965, %v1287
      %v1364 = vadd.f32 %v970, %v1292
      %v1365 = vadd.f32 %v973, %v1295
      %v1366 = vadd.f32 %v978, %v1300
      %v1367 = vadd.f32 %v981, %v1303
      %v1368 = vadd.f32 %v986, %v1308
      %v1369 = vadd.f32 %v989, %v1311
      %v1370 = vadd.f32 %v994, %v1316
      %v1371 = vadd.f32 %v997, %v1319
      %v1372 = vadd.f32 %v1002, %v1324
      %v1373 = vadd.f32 %v1005, %v1327
      %v1374 = vadd.f32 %v1010, %v1332
      %v1375 = vadd.f32 %v1013, %v1335
      %v1376 = vadd.f32 %v1018, %v1340
      %v1377 = vadd.f32 %v1021, %v1343
      %s1378 = scalar_lea.vmem %s1, 192
      %v1379 = vld [vmem:[%s1378] sm:$0xf]
      %v1380 = vld [vmem:[%s1378 + $0x4] sm:$0xf]
      %v1381 = vld [vmem:[%s1378 + $0x8] sm:$0xf]
      %v1382 = vld [vmem:[%s1378 + $0xc] sm:$0xf]
      %v1383 = vld [vmem:[%s1378 + $0x10] sm:$0xf]
      %v1384 = vld [vmem:[%s1378 + $0x14] sm:$0xf]
      %v1385 = vld [vmem:[%s1378 + $0x18] sm:$0xf]
      %v1386 = vld [vmem:[%s1378 + $0x1c] sm:$0xf]
      %v1387 = vld [vmem:[%s1378 + $0x20] sm:$0xf]
      %v1388 = vld [vmem:[%s1378 + $0x24] sm:$0xf]
      %v1389 = vld [vmem:[%s1378 + $0x28] sm:$0xf]
      %v1390 = vld [vmem:[%s1378 + $0x2c] sm:$0xf]
      %v1391 = vld [vmem:[%s1378 + $0x30] sm:$0xf]
      %v1392 = vld [vmem:[%s1378 + $0x34] sm:$0xf]
      %v1393 = vld [vmem:[%s1378 + $0x38] sm:$0xf]
      %v1394 = vld [vmem:[%s1378 + $0x3c] sm:$0xf]
      %v1397 = vunpack.c.l.b16 %v305
      %v1398 = vunpack.c.l.b16 %v306
      %v1399 = vpack.c.b16 %v1398, %v1397
      %v1417 = vunpack.c.l.b16 %v1379
      %v1418 = vunpack.c.l.b16 %v1380
      %v1419 = vunpack.c.l.b16 %v1381
      %v1420 = vunpack.c.l.b16 %v1382
      %v1421 = vunpack.c.l.b16 %v1383
      %v1422 = vunpack.c.l.b16 %v1384
      %v1423 = vunpack.c.l.b16 %v1385
      %v1424 = vunpack.c.l.b16 %v1386
      %v1425 = vunpack.c.l.b16 %v1387
      %v1426 = vunpack.c.l.b16 %v1388
      %v1427 = vunpack.c.l.b16 %v1389
      %v1428 = vunpack.c.l.b16 %v1390
      %v1429 = vunpack.c.l.b16 %v1391
      %v1430 = vunpack.c.l.b16 %v1392
      %v1431 = vunpack.c.l.b16 %v1393
      %v1432 = vunpack.c.l.b16 %v1394
      %v1433 = vpack.c.b16 %v1418, %v1417
      %v1434 = vpack.c.b16 %v1420, %v1419
      %v1435 = vpack.c.b16 %v1422, %v1421
      %v1436 = vpack.c.b16 %v1424, %v1423
      %v1437 = vpack.c.b16 %v1426, %v1425
      %v1438 = vpack.c.b16 %v1428, %v1427
      %v1439 = vpack.c.b16 %v1430, %v1429
      %v1440 = vpack.c.b16 %v1432, %v1431
      %1449 = vmatprep.subr.bf16.mxu0 0
      %1450 = vmatpush1.bf16.msra.mxu0 %v1440
      %1451 = vmatprep.subr.bf16.mxu0 0
      %1452 = vmatpush1.bf16.msra.mxu0 %v1439
      %1453 = vmatprep.subr.bf16.mxu0 0
      %1454 = vmatpush1.bf16.msra.mxu0 %v1438
      %1455 = vmatprep.subr.bf16.mxu0 0
      %1456 = vmatpush1.bf16.msra.mxu0 %v1437
      %1457 = vmatprep.subr.bf16.mxu0 0
      %1458 = vmatpush1.bf16.msra.mxu0 %v1436
      %1459 = vmatprep.subr.bf16.mxu0 0
      %1460 = vmatpush1.bf16.msra.mxu0 %v1435
      %1461 = vmatprep.subr.bf16.mxu0 0
      %1462 = vmatpush1.bf16.msra.mxu0 %v1434
      %1463 = vmatprep.subr.bf16.mxu0 0
      %1464 = vmatpush1.bf16.msra.mxu0 %v1433
      %1465 = vmatprep.subr.bf16.mxu0 0
      %1466 = vmatpush2.bf16.msra.mxu0 0
      %1467 = vmatprep.subr.bf16.mxu0 0
      %1468 = vmatpush2.bf16.msra.mxu0 0
      %1469 = vmatprep.subr.bf16.mxu0 0
      %1470 = vmatpush2.bf16.msra.mxu0 0
      %1471 = vmatprep.subr.bf16.mxu0 0
      %1472 = vmatpush2.bf16.msra.mxu0 0
      %1473 = vmatprep.subr.bf16.mxu0 0
      %1474 = vmatpush2.bf16.msra.mxu0 0
      %1475 = vmatprep.subr.bf16.mxu0 0
      %1476 = vmatpush2.bf16.msra.mxu0 0
      %1477 = vmatprep.subr.bf16.mxu0 0
      %1478 = vmatpush2.bf16.msra.mxu0 0
      %1479 = vmatprep.subr.bf16.mxu0 0
      %1480 = vmatpush2.bf16.msra.mxu0 0
      %1481 = vmatprep.mubr.bf16.mxu0 0
      %1482 = vmatmul.mubr.bf16.gmra.mxu0 %v784
      %v1483 = vpop.f32.mrf.mxu0
      %v1484 = vadd.f32 0.0, %v1483
      %v1485 = vpop.f32.mrf.mxu0
      %v1486 = vpop.f32.mrf.mxu0
      %v1487 = vadd.f32 0.0, %v1486
      %v1488 = vpop.f32.mrf.mxu0
      %1489 = vmatprep.mubr.bf16.mxu0 0
      %1490 = vmatmul.mubr.bf16.gmra.mxu0 %v785
      %v1491 = vpop.f32.mrf.mxu0
      %v1492 = vadd.f32 0.0, %v1491
      %v1493 = vpop.f32.mrf.mxu0
      %v1494 = vpop.f32.mrf.mxu0
      %v1495 = vadd.f32 0.0, %v1494
      %v1496 = vpop.f32.mrf.mxu0
      %1497 = vmatprep.mubr.bf16.mxu0 0
      %1498 = vmatmul.mubr.bf16.gmra.mxu0 %v786
      %v1499 = vpop.f32.mrf.mxu0
      %v1500 = vadd.f32 0.0, %v1499
      %v1501 = vpop.f32.mrf.mxu0
      %v1502 = vpop.f32.mrf.mxu0
      %v1503 = vadd.f32 0.0, %v1502
      %v1504 = vpop.f32.mrf.mxu0
      %1505 = vmatprep.mubr.bf16.mxu0 0
      %1506 = vmatmul.mubr.bf16.gmra.mxu0 %v787
      %v1507 = vpop.f32.mrf.mxu0
      %v1508 = vadd.f32 0.0, %v1507
      %v1509 = vpop.f32.mrf.mxu0
      %v1510 = vpop.f32.mrf.mxu0
      %v1511 = vadd.f32 0.0, %v1510
      %v1512 = vpop.f32.mrf.mxu0
      %1513 = vmatprep.mubr.bf16.mxu0 0
      %1514 = vmatmul.mubr.bf16.gmra.mxu0 %v788
      %v1515 = vpop.f32.mrf.mxu0
      %v1516 = vadd.f32 0.0, %v1515
      %v1517 = vpop.f32.mrf.mxu0
      %v1518 = vpop.f32.mrf.mxu0
      %v1519 = vadd.f32 0.0, %v1518
      %v1520 = vpop.f32.mrf.mxu0
      %1521 = vmatprep.mubr.bf16.mxu0 0
      %1522 = vmatmul.mubr.bf16.gmra.mxu0 %v789
      %v1523 = vpop.f32.mrf.mxu0
      %v1524 = vadd.f32 0.0, %v1523
      %v1525 = vpop.f32.mrf.mxu0
      %v1526 = vpop.f32.mrf.mxu0
      %v1527 = vadd.f32 0.0, %v1526
      %v1528 = vpop.f32.mrf.mxu0
      %1529 = vmatprep.mubr.bf16.mxu0 0
      %1530 = vmatmul.mubr.bf16.gmra.mxu0 %v790
      %v1531 = vpop.f32.mrf.mxu0
      %v1532 = vadd.f32 0.0, %v1531
      %v1533 = vpop.f32.mrf.mxu0
      %v1534 = vpop.f32.mrf.mxu0
      %v1535 = vadd.f32 0.0, %v1534
      %v1536 = vpop.f32.mrf.mxu0
      %1537 = vmatprep.mubr.bf16.mxu0 0
      %1538 = vmatmul.mubr.bf16.gmra.mxu0 %v791
      %v1539 = vpop.f32.mrf.mxu0
      %v1540 = vadd.f32 0.0, %v1539
      %v1541 = vpop.f32.mrf.mxu0
      %v1542 = vpop.f32.mrf.mxu0
      %v1543 = vadd.f32 0.0, %v1542
      %v1544 = vpop.f32.mrf.mxu0
      %1545 = vmatprep.mubr.bf16.mxu0 0
      %1546 = vmatmul.mubr.bf16.gmra.mxu0 %v792
      %v1547 = vpop.f32.mrf.mxu0
      %v1548 = vadd.f32 0.0, %v1547
      %v1549 = vpop.f32.mrf.mxu0
      %v1550 = vpop.f32.mrf.mxu0
      %v1551 = vadd.f32 0.0, %v1550
      %v1552 = vpop.f32.mrf.mxu0
      %1553 = vmatprep.mubr.bf16.mxu0 0
      %1554 = vmatmul.mubr.bf16.gmra.mxu0 %v793
      %v1555 = vpop.f32.mrf.mxu0
      %v1556 = vadd.f32 0.0, %v1555
      %v1557 = vpop.f32.mrf.mxu0
      %v1558 = vpop.f32.mrf.mxu0
      %v1559 = vadd.f32 0.0, %v1558
      %v1560 = vpop.f32.mrf.mxu0
      %1561 = vmatprep.mubr.bf16.mxu0 0
      %1562 = vmatmul.mubr.bf16.gmra.mxu0 %v794
      %v1563 = vpop.f32.mrf.mxu0
      %v1564 = vadd.f32 0.0, %v1563
      %v1565 = vpop.f32.mrf.mxu0
      %v1566 = vpop.f32.mrf.mxu0
      %v1567 = vadd.f32 0.0, %v1566
      %v1568 = vpop.f32.mrf.mxu0
      %1569 = vmatprep.mubr.bf16.mxu0 0
      %1570 = vmatmul.mubr.bf16.gmra.mxu0 %v795
      %v1571 = vpop.f32.mrf.mxu0
      %v1572 = vadd.f32 0.0, %v1571
      %v1573 = vpop.f32.mrf.mxu0
      %v1574 = vpop.f32.mrf.mxu0
      %v1575 = vadd.f32 0.0, %v1574
      %v1576 = vpop.f32.mrf.mxu0
      %1577 = vmatprep.mubr.bf16.mxu0 0
      %1578 = vmatmul.mubr.bf16.gmra.mxu0 %v796
      %v1579 = vpop.f32.mrf.mxu0
      %v1580 = vadd.f32 0.0, %v1579
      %v1581 = vpop.f32.mrf.mxu0
      %v1582 = vpop.f32.mrf.mxu0
      %v1583 = vadd.f32 0.0, %v1582
      %v1584 = vpop.f32.mrf.mxu0
      %1585 = vmatprep.mubr.bf16.mxu0 0
      %1586 = vmatmul.mubr.bf16.gmra.mxu0 %v797
      %v1587 = vpop.f32.mrf.mxu0
      %v1588 = vadd.f32 0.0, %v1587
      %v1589 = vpop.f32.mrf.mxu0
      %v1590 = vpop.f32.mrf.mxu0
      %v1591 = vadd.f32 0.0, %v1590
      %v1592 = vpop.f32.mrf.mxu0
      %1593 = vmatprep.mubr.bf16.mxu0 0
      %1594 = vmatmul.mubr.bf16.gmra.mxu0 %v798
      %v1595 = vpop.f32.mrf.mxu0
      %v1596 = vadd.f32 0.0, %v1595
      %v1597 = vpop.f32.mrf.mxu0
      %v1598 = vpop.f32.mrf.mxu0
      %v1599 = vadd.f32 0.0, %v1598
      %v1600 = vpop.f32.mrf.mxu0
      %1601 = vmatprep.mubr.bf16.mxu0 0
      %1602 = vmatmul.mubr.bf16.gmra.mxu0 %v1399
      %v1603 = vpop.f32.mrf.mxu0
      %v1604 = vadd.f32 0.0, %v1603
      %v1605 = vpop.f32.mrf.mxu0
      %v1606 = vpop.f32.mrf.mxu0
      %v1607 = vadd.f32 0.0, %v1606
      %v1608 = vpop.f32.mrf.mxu0
      %1609 = vdwg.mxu0
      %v1610 = vadd.f32 %v1346, %v1484
      %v1611 = vadd.f32 %v1347, %v1487
      %v1612 = vadd.f32 %v1348, %v1492
      %v1613 = vadd.f32 %v1349, %v1495
      %v1614 = vadd.f32 %v1350, %v1500
      %v1615 = vadd.f32 %v1351, %v1503
      %v1616 = vadd.f32 %v1352, %v1508
      %v1617 = vadd.f32 %v1353, %v1511
      %v1618 = vadd.f32 %v1354, %v1516
      %v1619 = vadd.f32 %v1355, %v1519
      %v1620 = vadd.f32 %v1356, %v1524
      %v1621 = vadd.f32 %v1357, %v1527
      %v1622 = vadd.f32 %v1358, %v1532
      %v1623 = vadd.f32 %v1359, %v1535
      %v1624 = vadd.f32 %v1360, %v1540
      %v1625 = vadd.f32 %v1361, %v1543
      %v1626 = vadd.f32 %v1362, %v1548
      %v1627 = vadd.f32 %v1363, %v1551
      %v1628 = vadd.f32 %v1364, %v1556
      %v1629 = vadd.f32 %v1365, %v1559
      %v1630 = vadd.f32 %v1366, %v1564
      %v1631 = vadd.f32 %v1367, %v1567
      %v1632 = vadd.f32 %v1368, %v1572
      %v1633 = vadd.f32 %v1369, %v1575
      %v1634 = vadd.f32 %v1370, %v1580
      %v1635 = vadd.f32 %v1371, %v1583
      %v1636 = vadd.f32 %v1372, %v1588
      %v1637 = vadd.f32 %v1373, %v1591
      %v1638 = vadd.f32 %v1374, %v1596
      %v1639 = vadd.f32 %v1375, %v1599
      %v1640 = vadd.f32 %v1376, %v1604
      %v1641 = vadd.f32 %v1377, %v1607
      %s1642 = scalar_lea.vmem %s1, 256
      %v1643 = vld [vmem:[%s1642] sm:$0xf]
      %v1644 = vld [vmem:[%s1642 + $0x4] sm:$0xf]
      %v1645 = vld [vmem:[%s1642 + $0x8] sm:$0xf]
      %v1646 = vld [vmem:[%s1642 + $0xc] sm:$0xf]
      %v1647 = vld [vmem:[%s1642 + $0x10] sm:$0xf]
      %v1648 = vld [vmem:[%s1642 + $0x14] sm:$0xf]
      %v1649 = vld [vmem:[%s1642 + $0x18] sm:$0xf]
      %v1650 = vld [vmem:[%s1642 + $0x1c] sm:$0xf]
      %v1651 = vld [vmem:[%s1642 + $0x20] sm:$0xf]
      %v1652 = vld [vmem:[%s1642 + $0x24] sm:$0xf]
      %v1653 = vld [vmem:[%s1642 + $0x28] sm:$0xf]
      %v1654 = vld [vmem:[%s1642 + $0x2c] sm:$0xf]
      %v1655 = vld [vmem:[%s1642 + $0x30] sm:$0xf]
      %v1656 = vld [vmem:[%s1642 + $0x34] sm:$0xf]
      %v1657 = vld [vmem:[%s1642 + $0x38] sm:$0xf]
      %v1658 = vld [vmem:[%s1642 + $0x3c] sm:$0xf]
      %v1661 = vunpack.c.l.b16 %v341
      %v1662 = vunpack.c.l.b16 %v342
      %v1663 = vpack.c.b16 %v1662, %v1661
      %v1681 = vunpack.c.l.b16 %v1643
      %v1682 = vunpack.c.l.b16 %v1644
      %v1683 = vunpack.c.l.b16 %v1645
      %v1684 = vunpack.c.l.b16 %v1646
      %v1685 = vunpack.c.l.b16 %v1647
      %v1686 = vunpack.c.l.b16 %v1648
      %v1687 = vunpack.c.l.b16 %v1649
      %v1688 = vunpack.c.l.b16 %v1650
      %v1689 = vunpack.c.l.b16 %v1651
      %v1690 = vunpack.c.l.b16 %v1652
      %v1691 = vunpack.c.l.b16 %v1653
      %v1692 = vunpack.c.l.b16 %v1654
      %v1693 = vunpack.c.l.b16 %v1655
      %v1694 = vunpack.c.l.b16 %v1656
      %v1695 = vunpack.c.l.b16 %v1657
      %v1696 = vunpack.c.l.b16 %v1658
      %v1697 = vpack.c.b16 %v1682, %v1681
      %v1698 = vpack.c.b16 %v1684, %v1683
      %v1699 = vpack.c.b16 %v1686, %v1685
      %v1700 = vpack.c.b16 %v1688, %v1687
      %v1701 = vpack.c.b16 %v1690, %v1689
      %v1702 = vpack.c.b16 %v1692, %v1691
      %v1703 = vpack.c.b16 %v1694, %v1693
      %v1704 = vpack.c.b16 %v1696, %v1695
      %1713 = vmatprep.subr.bf16.mxu0 0
      %1714 = vmatpush1.bf16.msra.mxu0 %v1704
      %1715 = vmatprep.subr.bf16.mxu0 0
      %1716 = vmatpush1.bf16.msra.mxu0 %v1703
      %1717 = vmatprep.subr.bf16.mxu0 0
      %1718 = vmatpush1.bf16.msra.mxu0 %v1702
      %1719 = vmatprep.subr.bf16.mxu0 0
      %1720 = vmatpush1.bf16.msra.mxu0 %v1701
      %1721 = vmatprep.subr.bf16.mxu0 0
      %1722 = vmatpush1.bf16.msra.mxu0 %v1700
      %1723 = vmatprep.subr.bf16.mxu0 0
      %1724 = vmatpush1.bf16.msra.mxu0 %v1699
      %1725 = vmatprep.subr.bf16.mxu0 0
      %1726 = vmatpush1.bf16.msra.mxu0 %v1698
      %1727 = vmatprep.subr.bf16.mxu0 0
      %1728 = vmatpush1.bf16.msra.mxu0 %v1697
      %1729 = vmatprep.subr.bf16.mxu0 0
      %1730 = vmatpush2.bf16.msra.mxu0 0
      %1731 = vmatprep.subr.bf16.mxu0 0
      %1732 = vmatpush2.bf16.msra.mxu0 0
      %1733 = vmatprep.subr.bf16.mxu0 0
      %1734 = vmatpush2.bf16.msra.mxu0 0
      %1735 = vmatprep.subr.bf16.mxu0 0
      %1736 = vmatpush2.bf16.msra.mxu0 0
      %1737 = vmatprep.subr.bf16.mxu0 0
      %1738 = vmatpush2.bf16.msra.mxu0 0
      %1739 = vmatprep.subr.bf16.mxu0 0
      %1740 = vmatpush2.bf16.msra.mxu0 0
      %1741 = vmatprep.subr.bf16.mxu0 0
      %1742 = vmatpush2.bf16.msra.mxu0 0
      %1743 = vmatprep.subr.bf16.mxu0 0
      %1744 = vmatpush2.bf16.msra.mxu0 0
      %1745 = vmatprep.mubr.bf16.mxu0 0
      %1746 = vmatmul.mubr.bf16.gmra.mxu0 %v479
      %v1747 = vpop.f32.mrf.mxu0
      %v1748 = vadd.f32 0.0, %v1747
      %v1749 = vpop.f32.mrf.mxu0
      %v1750 = vpop.f32.mrf.mxu0
      %v1751 = vadd.f32 0.0, %v1750
      %v1752 = vpop.f32.mrf.mxu0
      %1753 = vmatprep.mubr.bf16.mxu0 0
      %1754 = vmatmul.mubr.bf16.gmra.mxu0 %v480
      %v1755 = vpop.f32.mrf.mxu0
      %v1756 = vadd.f32 0.0, %v1755
      %v1757 = vpop.f32.mrf.mxu0
      %v1758 = vpop.f32.mrf.mxu0
      %v1759 = vadd.f32 0.0, %v1758
      %v1760 = vpop.f32.mrf.mxu0
      %1761 = vmatprep.mubr.bf16.mxu0 0
      %1762 = vmatmul.mubr.bf16.gmra.mxu0 %v481
      %v1763 = vpop.f32.mrf.mxu0
      %v1764 = vadd.f32 0.0, %v1763
      %v1765 = vpop.f32.mrf.mxu0
      %v1766 = vpop.f32.mrf.mxu0
      %v1767 = vadd.f32 0.0, %v1766
      %v1768 = vpop.f32.mrf.mxu0
      %1769 = vmatprep.mubr.bf16.mxu0 0
      %1770 = vmatmul.mubr.bf16.gmra.mxu0 %v482
      %v1771 = vpop.f32.mrf.mxu0
      %v1772 = vadd.f32 0.0, %v1771
      %v1773 = vpop.f32.mrf.mxu0
      %v1774 = vpop.f32.mrf.mxu0
      %v1775 = vadd.f32 0.0, %v1774
      %v1776 = vpop.f32.mrf.mxu0
      %1777 = vmatprep.mubr.bf16.mxu0 0
      %1778 = vmatmul.mubr.bf16.gmra.mxu0 %v483
      %v1779 = vpop.f32.mrf.mxu0
      %v1780 = vadd.f32 0.0, %v1779
      %v1781 = vpop.f32.mrf.mxu0
      %v1782 = vpop.f32.mrf.mxu0
      %v1783 = vadd.f32 0.0, %v1782
      %v1784 = vpop.f32.mrf.mxu0
      %1785 = vmatprep.mubr.bf16.mxu0 0
      %1786 = vmatmul.mubr.bf16.gmra.mxu0 %v484
      %v1787 = vpop.f32.mrf.mxu0
      %v1788 = vadd.f32 0.0, %v1787
      %v1789 = vpop.f32.mrf.mxu0
      %v1790 = vpop.f32.mrf.mxu0
      %v1791 = vadd.f32 0.0, %v1790
      %v1792 = vpop.f32.mrf.mxu0
      %1793 = vmatprep.mubr.bf16.mxu0 0
      %1794 = vmatmul.mubr.bf16.gmra.mxu0 %v485
      %v1795 = vpop.f32.mrf.mxu0
      %v1796 = vadd.f32 0.0, %v1795
      %v1797 = vpop.f32.mrf.mxu0
      %v1798 = vpop.f32.mrf.mxu0
      %v1799 = vadd.f32 0.0, %v1798
      %v1800 = vpop.f32.mrf.mxu0
      %1801 = vmatprep.mubr.bf16.mxu0 0
      %1802 = vmatmul.mubr.bf16.gmra.mxu0 %v486
      %v1803 = vpop.f32.mrf.mxu0
      %v1804 = vadd.f32 0.0, %v1803
      %v1805 = vpop.f32.mrf.mxu0
      %v1806 = vpop.f32.mrf.mxu0
      %v1807 = vadd.f32 0.0, %v1806
      %v1808 = vpop.f32.mrf.mxu0
      %1809 = vmatprep.mubr.bf16.mxu0 0
      %1810 = vmatmul.mubr.bf16.gmra.mxu0 %v487
      %v1811 = vpop.f32.mrf.mxu0
      %v1812 = vadd.f32 0.0, %v1811
      %v1813 = vpop.f32.mrf.mxu0
      %v1814 = vpop.f32.mrf.mxu0
      %v1815 = vadd.f32 0.0, %v1814
      %v1816 = vpop.f32.mrf.mxu0
      %1817 = vmatprep.mubr.bf16.mxu0 0
      %1818 = vmatmul.mubr.bf16.gmra.mxu0 %v488
      %v1819 = vpop.f32.mrf.mxu0
      %v1820 = vadd.f32 0.0, %v1819
      %v1821 = vpop.f32.mrf.mxu0
      %v1822 = vpop.f32.mrf.mxu0
      %v1823 = vadd.f32 0.0, %v1822
      %v1824 = vpop.f32.mrf.mxu0
      %1825 = vmatprep.mubr.bf16.mxu0 0
      %1826 = vmatmul.mubr.bf16.gmra.mxu0 %v489
      %v1827 = vpop.f32.mrf.mxu0
      %v1828 = vadd.f32 0.0, %v1827
      %v1829 = vpop.f32.mrf.mxu0
      %v1830 = vpop.f32.mrf.mxu0
      %v1831 = vadd.f32 0.0, %v1830
      %v1832 = vpop.f32.mrf.mxu0
      %1833 = vmatprep.mubr.bf16.mxu0 0
      %1834 = vmatmul.mubr.bf16.gmra.mxu0 %v490
      %v1835 = vpop.f32.mrf.mxu0
      %v1836 = vadd.f32 0.0, %v1835
      %v1837 = vpop.f32.mrf.mxu0
      %v1838 = vpop.f32.mrf.mxu0
      %v1839 = vadd.f32 0.0, %v1838
      %v1840 = vpop.f32.mrf.mxu0
      %1841 = vmatprep.mubr.bf16.mxu0 0
      %1842 = vmatmul.mubr.bf16.gmra.mxu0 %v491
      %v1843 = vpop.f32.mrf.mxu0
      %v1844 = vadd.f32 0.0, %v1843
      %v1845 = vpop.f32.mrf.mxu0
      %v1846 = vpop.f32.mrf.mxu0
      %v1847 = vadd.f32 0.0, %v1846
      %v1848 = vpop.f32.mrf.mxu0
      %1849 = vmatprep.mubr.bf16.mxu0 0
      %1850 = vmatmul.mubr.bf16.gmra.mxu0 %v492
      %v1851 = vpop.f32.mrf.mxu0
      %v1852 = vadd.f32 0.0, %v1851
      %v1853 = vpop.f32.mrf.mxu0
      %v1854 = vpop.f32.mrf.mxu0
      %v1855 = vadd.f32 0.0, %v1854
      %v1856 = vpop.f32.mrf.mxu0
      %1857 = vmatprep.mubr.bf16.mxu0 0
      %1858 = vmatmul.mubr.bf16.gmra.mxu0 %v493
      %v1859 = vpop.f32.mrf.mxu0
      %v1860 = vadd.f32 0.0, %v1859
      %v1861 = vpop.f32.mrf.mxu0
      %v1862 = vpop.f32.mrf.mxu0
      %v1863 = vadd.f32 0.0, %v1862
      %v1864 = vpop.f32.mrf.mxu0
      %1865 = vmatprep.mubr.bf16.mxu0 0
      %1866 = vmatmul.mubr.bf16.gmra.mxu0 %v1663
      %v1867 = vpop.f32.mrf.mxu0
      %v1868 = vadd.f32 0.0, %v1867
      %v1869 = vpop.f32.mrf.mxu0
      %v1870 = vpop.f32.mrf.mxu0
      %v1871 = vadd.f32 0.0, %v1870
      %v1872 = vpop.f32.mrf.mxu0
      %1873 = vdwg.mxu0
      %v1874 = vadd.f32 %v1610, %v1748
      %v1875 = vadd.f32 %v1611, %v1751
      %v1876 = vadd.f32 %v1612, %v1756
      %v1877 = vadd.f32 %v1613, %v1759
      %v1878 = vadd.f32 %v1614, %v1764
      %v1879 = vadd.f32 %v1615, %v1767
      %v1880 = vadd.f32 %v1616, %v1772
      %v1881 = vadd.f32 %v1617, %v1775
      %v1882 = vadd.f32 %v1618, %v1780
      %v1883 = vadd.f32 %v1619, %v1783
      %v1884 = vadd.f32 %v1620, %v1788
      %v1885 = vadd.f32 %v1621, %v1791
      %v1886 = vadd.f32 %v1622, %v1796
      %v1887 = vadd.f32 %v1623, %v1799
      %v1888 = vadd.f32 %v1624, %v1804
      %v1889 = vadd.f32 %v1625, %v1807
      %v1890 = vadd.f32 %v1626, %v1812
      %v1891 = vadd.f32 %v1627, %v1815
      %v1892 = vadd.f32 %v1628, %v1820
      %v1893 = vadd.f32 %v1629, %v1823
      %v1894 = vadd.f32 %v1630, %v1828
      %v1895 = vadd.f32 %v1631, %v1831
      %v1896 = vadd.f32 %v1632, %v1836
      %v1897 = vadd.f32 %v1633, %v1839
      %v1898 = vadd.f32 %v1634, %v1844
      %v1899 = vadd.f32 %v1635, %v1847
      %v1900 = vadd.f32 %v1636, %v1852
      %v1901 = vadd.f32 %v1637, %v1855
      %v1902 = vadd.f32 %v1638, %v1860
      %v1903 = vadd.f32 %v1639, %v1863
      %v1904 = vadd.f32 %v1640, %v1868
      %v1905 = vadd.f32 %v1641, %v1871
      %s1906 = scalar_lea.vmem %s1, 320
      %v1907 = vld [vmem:[%s1906] sm:$0xf]
      %v1908 = vld [vmem:[%s1906 + $0x4] sm:$0xf]
      %v1909 = vld [vmem:[%s1906 + $0x8] sm:$0xf]
      %v1910 = vld [vmem:[%s1906 + $0xc] sm:$0xf]
      %v1911 = vld [vmem:[%s1906 + $0x10] sm:$0xf]
      %v1912 = vld [vmem:[%s1906 + $0x14] sm:$0xf]
      %v1913 = vld [vmem:[%s1906 + $0x18] sm:$0xf]
      %v1914 = vld [vmem:[%s1906 + $0x1c] sm:$0xf]
      %v1915 = vld [vmem:[%s1906 + $0x20] sm:$0xf]
      %v1916 = vld [vmem:[%s1906 + $0x24] sm:$0xf]
      %v1917 = vld [vmem:[%s1906 + $0x28] sm:$0xf]
      %v1918 = vld [vmem:[%s1906 + $0x2c] sm:$0xf]
      %v1919 = vld [vmem:[%s1906 + $0x30] sm:$0xf]
      %v1920 = vld [vmem:[%s1906 + $0x34] sm:$0xf]
      %v1921 = vld [vmem:[%s1906 + $0x38] sm:$0xf]
      %v1922 = vld [vmem:[%s1906 + $0x3c] sm:$0xf]
      %v1925 = vunpack.c.l.b16 %v377
      %v1926 = vunpack.c.l.b16 %v378
      %v1927 = vpack.c.b16 %v1926, %v1925
      %v1945 = vunpack.c.l.b16 %v1907
      %v1946 = vunpack.c.l.b16 %v1908
      %v1947 = vunpack.c.l.b16 %v1909
      %v1948 = vunpack.c.l.b16 %v1910
      %v1949 = vunpack.c.l.b16 %v1911
      %v1950 = vunpack.c.l.b16 %v1912
      %v1951 = vunpack.c.l.b16 %v1913
      %v1952 = vunpack.c.l.b16 %v1914
      %v1953 = vunpack.c.l.b16 %v1915
      %v1954 = vunpack.c.l.b16 %v1916
      %v1955 = vunpack.c.l.b16 %v1917
      %v1956 = vunpack.c.l.b16 %v1918
      %v1957 = vunpack.c.l.b16 %v1919
      %v1958 = vunpack.c.l.b16 %v1920
      %v1959 = vunpack.c.l.b16 %v1921
      %v1960 = vunpack.c.l.b16 %v1922
      %v1961 = vpack.c.b16 %v1946, %v1945
      %v1962 = vpack.c.b16 %v1948, %v1947
      %v1963 = vpack.c.b16 %v1950, %v1949
      %v1964 = vpack.c.b16 %v1952, %v1951
      %v1965 = vpack.c.b16 %v1954, %v1953
      %v1966 = vpack.c.b16 %v1956, %v1955
      %v1967 = vpack.c.b16 %v1958, %v1957
      %v1968 = vpack.c.b16 %v1960, %v1959
      %1977 = vmatprep.subr.bf16.mxu0 0
      %1978 = vmatpush1.bf16.msra.mxu0 %v1968
      %1979 = vmatprep.subr.bf16.mxu0 0
      %1980 = vmatpush1.bf16.msra.mxu0 %v1967
      %1981 = vmatprep.subr.bf16.mxu0 0
      %1982 = vmatpush1.bf16.msra.mxu0 %v1966
      %1983 = vmatprep.subr.bf16.mxu0 0
      %1984 = vmatpush1.bf16.msra.mxu0 %v1965
      %1985 = vmatprep.subr.bf16.mxu0 0
      %1986 = vmatpush1.bf16.msra.mxu0 %v1964
      %1987 = vmatprep.subr.bf16.mxu0 0
      %1988 = vmatpush1.bf16.msra.mxu0 %v1963
      %1989 = vmatprep.subr.bf16.mxu0 0
      %1990 = vmatpush1.bf16.msra.mxu0 %v1962
      %1991 = vmatprep.subr.bf16.mxu0 0
      %1992 = vmatpush1.bf16.msra.mxu0 %v1961
      %1993 = vmatprep.subr.bf16.mxu0 0
      %1994 = vmatpush2.bf16.msra.mxu0 0
      %1995 = vmatprep.subr.bf16.mxu0 0
      %1996 = vmatpush2.bf16.msra.mxu0 0
      %1997 = vmatprep.subr.bf16.mxu0 0
      %1998 = vmatpush2.bf16.msra.mxu0 0
      %1999 = vmatprep.subr.bf16.mxu0 0
      %2000 = vmatpush2.bf16.msra.mxu0 0
      %2001 = vmatprep.subr.bf16.mxu0 0
      %2002 = vmatpush2.bf16.msra.mxu0 0
      %2003 = vmatprep.subr.bf16.mxu0 0
      %2004 = vmatpush2.bf16.msra.mxu0 0
      %2005 = vmatprep.subr.bf16.mxu0 0
      %2006 = vmatpush2.bf16.msra.mxu0 0
      %2007 = vmatprep.subr.bf16.mxu0 0
      %2008 = vmatpush2.bf16.msra.mxu0 0
      %2009 = vmatprep.mubr.bf16.mxu0 0
      %2010 = vmatmul.mubr.bf16.gmra.mxu0 %v1106
      %v2011 = vpop.f32.mrf.mxu0
      %v2012 = vadd.f32 0.0, %v2011
      %v2013 = vpop.f32.mrf.mxu0
      %v2014 = vpop.f32.mrf.mxu0
      %v2015 = vadd.f32 0.0, %v2014
      %v2016 = vpop.f32.mrf.mxu0
      %2017 = vmatprep.mubr.bf16.mxu0 0
      %2018 = vmatmul.mubr.bf16.gmra.mxu0 %v1107
      %v2019 = vpop.f32.mrf.mxu0
      %v2020 = vadd.f32 0.0, %v2019
      %v2021 = vpop.f32.mrf.mxu0
      %v2022 = vpop.f32.mrf.mxu0
      %v2023 = vadd.f32 0.0, %v2022
      %v2024 = vpop.f32.mrf.mxu0
      %2025 = vmatprep.mubr.bf16.mxu0 0
      %2026 = vmatmul.mubr.bf16.gmra.mxu0 %v1108
      %v2027 = vpop.f32.mrf.mxu0
      %v2028 = vadd.f32 0.0, %v2027
      %v2029 = vpop.f32.mrf.mxu0
      %v2030 = vpop.f32.mrf.mxu0
      %v2031 = vadd.f32 0.0, %v2030
      %v2032 = vpop.f32.mrf.mxu0
      %2033 = vmatprep.mubr.bf16.mxu0 0
      %2034 = vmatmul.mubr.bf16.gmra.mxu0 %v1109
      %v2035 = vpop.f32.mrf.mxu0
      %v2036 = vadd.f32 0.0, %v2035
      %v2037 = vpop.f32.mrf.mxu0
      %v2038 = vpop.f32.mrf.mxu0
      %v2039 = vadd.f32 0.0, %v2038
      %v2040 = vpop.f32.mrf.mxu0
      %2041 = vmatprep.mubr.bf16.mxu0 0
      %2042 = vmatmul.mubr.bf16.gmra.mxu0 %v1110
      %v2043 = vpop.f32.mrf.mxu0
      %v2044 = vadd.f32 0.0, %v2043
      %v2045 = vpop.f32.mrf.mxu0
      %v2046 = vpop.f32.mrf.mxu0
      %v2047 = vadd.f32 0.0, %v2046
      %v2048 = vpop.f32.mrf.mxu0
      %2049 = vmatprep.mubr.bf16.mxu0 0
      %2050 = vmatmul.mubr.bf16.gmra.mxu0 %v1111
      %v2051 = vpop.f32.mrf.mxu0
      %v2052 = vadd.f32 0.0, %v2051
      %v2053 = vpop.f32.mrf.mxu0
      %v2054 = vpop.f32.mrf.mxu0
      %v2055 = vadd.f32 0.0, %v2054
      %v2056 = vpop.f32.mrf.mxu0
      %2057 = vmatprep.mubr.bf16.mxu0 0
      %2058 = vmatmul.mubr.bf16.gmra.mxu0 %v1112
      %v2059 = vpop.f32.mrf.mxu0
      %v2060 = vadd.f32 0.0, %v2059
      %v2061 = vpop.f32.mrf.mxu0
      %v2062 = vpop.f32.mrf.mxu0
      %v2063 = vadd.f32 0.0, %v2062
      %v2064 = vpop.f32.mrf.mxu0
      %2065 = vmatprep.mubr.bf16.mxu0 0
      %2066 = vmatmul.mubr.bf16.gmra.mxu0 %v1113
      %v2067 = vpop.f32.mrf.mxu0
      %v2068 = vadd.f32 0.0, %v2067
      %v2069 = vpop.f32.mrf.mxu0
      %v2070 = vpop.f32.mrf.mxu0
      %v2071 = vadd.f32 0.0, %v2070
      %v2072 = vpop.f32.mrf.mxu0
      %2073 = vmatprep.mubr.bf16.mxu0 0
      %2074 = vmatmul.mubr.bf16.gmra.mxu0 %v1114
      %v2075 = vpop.f32.mrf.mxu0
      %v2076 = vadd.f32 0.0, %v2075
      %v2077 = vpop.f32.mrf.mxu0
      %v2078 = vpop.f32.mrf.mxu0
      %v2079 = vadd.f32 0.0, %v2078
      %v2080 = vpop.f32.mrf.mxu0
      %2081 = vmatprep.mubr.bf16.mxu0 0
      %2082 = vmatmul.mubr.bf16.gmra.mxu0 %v1115
      %v2083 = vpop.f32.mrf.mxu0
      %v2084 = vadd.f32 0.0, %v2083
      %v2085 = vpop.f32.mrf.mxu0
      %v2086 = vpop.f32.mrf.mxu0
      %v2087 = vadd.f32 0.0, %v2086
      %v2088 = vpop.f32.mrf.mxu0
      %2089 = vmatprep.mubr.bf16.mxu0 0
      %2090 = vmatmul.mubr.bf16.gmra.mxu0 %v1116
      %v2091 = vpop.f32.mrf.mxu0
      %v2092 = vadd.f32 0.0, %v2091
      %v2093 = vpop.f32.mrf.mxu0
      %v2094 = vpop.f32.mrf.mxu0
      %v2095 = vadd.f32 0.0, %v2094
      %v2096 = vpop.f32.mrf.mxu0
      %2097 = vmatprep.mubr.bf16.mxu0 0
      %2098 = vmatmul.mubr.bf16.gmra.mxu0 %v1117
      %v2099 = vpop.f32.mrf.mxu0
      %v2100 = vadd.f32 0.0, %v2099
      %v2101 = vpop.f32.mrf.mxu0
      %v2102 = vpop.f32.mrf.mxu0
      %v2103 = vadd.f32 0.0, %v2102
      %v2104 = vpop.f32.mrf.mxu0
      %2105 = vmatprep.mubr.bf16.mxu0 0
      %2106 = vmatmul.mubr.bf16.gmra.mxu0 %v1118
      %v2107 = vpop.f32.mrf.mxu0
      %v2108 = vadd.f32 0.0, %v2107
      %v2109 = vpop.f32.mrf.mxu0
      %v2110 = vpop.f32.mrf.mxu0
      %v2111 = vadd.f32 0.0, %v2110
      %v2112 = vpop.f32.mrf.mxu0
      %2113 = vmatprep.mubr.bf16.mxu0 0
      %2114 = vmatmul.mubr.bf16.gmra.mxu0 %v1119
      %v2115 = vpop.f32.mrf.mxu0
      %v2116 = vadd.f32 0.0, %v2115
      %v2117 = vpop.f32.mrf.mxu0
      %v2118 = vpop.f32.mrf.mxu0
      %v2119 = vadd.f32 0.0, %v2118
      %v2120 = vpop.f32.mrf.mxu0
      %2121 = vmatprep.mubr.bf16.mxu0 0
      %2122 = vmatmul.mubr.bf16.gmra.mxu0 %v1120
      %v2123 = vpop.f32.mrf.mxu0
      %v2124 = vadd.f32 0.0, %v2123
      %v2125 = vpop.f32.mrf.mxu0
      %v2126 = vpop.f32.mrf.mxu0
      %v2127 = vadd.f32 0.0, %v2126
      %v2128 = vpop.f32.mrf.mxu0
      %2129 = vmatprep.mubr.bf16.mxu0 0
      %2130 = vmatmul.mubr.bf16.gmra.mxu0 %v1927
      %v2131 = vpop.f32.mrf.mxu0
      %v2132 = vadd.f32 0.0, %v2131
      %v2133 = vpop.f32.mrf.mxu0
      %v2134 = vpop.f32.mrf.mxu0
      %v2135 = vadd.f32 0.0, %v2134
      %v2136 = vpop.f32.mrf.mxu0
      %2137 = vdwg.mxu0
      %v2138 = vadd.f32 %v1874, %v2012
      %v2139 = vadd.f32 %v1875, %v2015
      %v2140 = vadd.f32 %v1876, %v2020
      %v2141 = vadd.f32 %v1877, %v2023
      %v2142 = vadd.f32 %v1878, %v2028
      %v2143 = vadd.f32 %v1879, %v2031
      %v2144 = vadd.f32 %v1880, %v2036
      %v2145 = vadd.f32 %v1881, %v2039
      %v2146 = vadd.f32 %v1882, %v2044
      %v2147 = vadd.f32 %v1883, %v2047
      %v2148 = vadd.f32 %v1884, %v2052
      %v2149 = vadd.f32 %v1885, %v2055
      %v2150 = vadd.f32 %v1886, %v2060
      %v2151 = vadd.f32 %v1887, %v2063
      %v2152 = vadd.f32 %v1888, %v2068
      %v2153 = vadd.f32 %v1889, %v2071
      %v2154 = vadd.f32 %v1890, %v2076
      %v2155 = vadd.f32 %v1891, %v2079
      %v2156 = vadd.f32 %v1892, %v2084
      %v2157 = vadd.f32 %v1893, %v2087
      %v2158 = vadd.f32 %v1894, %v2092
      %v2159 = vadd.f32 %v1895, %v2095
      %v2160 = vadd.f32 %v1896, %v2100
      %v2161 = vadd.f32 %v1897, %v2103
      %v2162 = vadd.f32 %v1898, %v2108
      %v2163 = vadd.f32 %v1899, %v2111
      %v2164 = vadd.f32 %v1900, %v2116
      %v2165 = vadd.f32 %v1901, %v2119
      %v2166 = vadd.f32 %v1902, %v2124
      %v2167 = vadd.f32 %v1903, %v2127
      %v2168 = vadd.f32 %v1904, %v2132
      %v2169 = vadd.f32 %v1905, %v2135
      %s2170 = scalar_lea.vmem %s1, 384
      %v2171 = vld [vmem:[%s2170] sm:$0xf]
      %v2172 = vld [vmem:[%s2170 + $0x4] sm:$0xf]
      %v2173 = vld [vmem:[%s2170 + $0x8] sm:$0xf]
      %v2174 = vld [vmem:[%s2170 + $0xc] sm:$0xf]
      %v2175 = vld [vmem:[%s2170 + $0x10] sm:$0xf]
      %v2176 = vld [vmem:[%s2170 + $0x14] sm:$0xf]
      %v2177 = vld [vmem:[%s2170 + $0x18] sm:$0xf]
      %v2178 = vld [vmem:[%s2170 + $0x1c] sm:$0xf]
      %v2179 = vld [vmem:[%s2170 + $0x20] sm:$0xf]
      %v2180 = vld [vmem:[%s2170 + $0x24] sm:$0xf]
      %v2181 = vld [vmem:[%s2170 + $0x28] sm:$0xf]
      %v2182 = vld [vmem:[%s2170 + $0x2c] sm:$0xf]
      %v2183 = vld [vmem:[%s2170 + $0x30] sm:$0xf]
      %v2184 = vld [vmem:[%s2170 + $0x34] sm:$0xf]
      %v2185 = vld [vmem:[%s2170 + $0x38] sm:$0xf]
      %v2186 = vld [vmem:[%s2170 + $0x3c] sm:$0xf]
      %v2189 = vunpack.c.l.b16 %v307
      %v2190 = vunpack.c.l.b16 %v308
      %v2191 = vpack.c.b16 %v2190, %v2189
      %v2209 = vunpack.c.l.b16 %v2171
      %v2210 = vunpack.c.l.b16 %v2172
      %v2211 = vunpack.c.l.b16 %v2173
      %v2212 = vunpack.c.l.b16 %v2174
      %v2213 = vunpack.c.l.b16 %v2175
      %v2214 = vunpack.c.l.b16 %v2176
      %v2215 = vunpack.c.l.b16 %v2177
      %v2216 = vunpack.c.l.b16 %v2178
      %v2217 = vunpack.c.l.b16 %v2179
      %v2218 = vunpack.c.l.b16 %v2180
      %v2219 = vunpack.c.l.b16 %v2181
      %v2220 = vunpack.c.l.b16 %v2182
      %v2221 = vunpack.c.l.b16 %v2183
      %v2222 = vunpack.c.l.b16 %v2184
      %v2223 = vunpack.c.l.b16 %v2185
      %v2224 = vunpack.c.l.b16 %v2186
      %v2225 = vpack.c.b16 %v2210, %v2209
      %v2226 = vpack.c.b16 %v2212, %v2211
      %v2227 = vpack.c.b16 %v2214, %v2213
      %v2228 = vpack.c.b16 %v2216, %v2215
      %v2229 = vpack.c.b16 %v2218, %v2217
      %v2230 = vpack.c.b16 %v2220, %v2219
      %v2231 = vpack.c.b16 %v2222, %v2221
      %v2232 = vpack.c.b16 %v2224, %v2223
      %2241 = vmatprep.subr.bf16.mxu0 0
      %2242 = vmatpush1.bf16.msra.mxu0 %v2232
      %2243 = vmatprep.subr.bf16.mxu0 0
      %2244 = vmatpush1.bf16.msra.mxu0 %v2231
      %2245 = vmatprep.subr.bf16.mxu0 0
      %2246 = vmatpush1.bf16.msra.mxu0 %v2230
      %2247 = vmatprep.subr.bf16.mxu0 0
      %2248 = vmatpush1.bf16.msra.mxu0 %v2229
      %2249 = vmatprep.subr.bf16.mxu0 0
      %2250 = vmatpush1.bf16.msra.mxu0 %v2228
      %2251 = vmatprep.subr.bf16.mxu0 0
      %2252 = vmatpush1.bf16.msra.mxu0 %v2227
      %2253 = vmatprep.subr.bf16.mxu0 0
      %2254 = vmatpush1.bf16.msra.mxu0 %v2226
      %2255 = vmatprep.subr.bf16.mxu0 0
      %2256 = vmatpush1.bf16.msra.mxu0 %v2225
      %2257 = vmatprep.subr.bf16.mxu0 0
      %2258 = vmatpush2.bf16.msra.mxu0 0
      %2259 = vmatprep.subr.bf16.mxu0 0
      %2260 = vmatpush2.bf16.msra.mxu0 0
      %2261 = vmatprep.subr.bf16.mxu0 0
      %2262 = vmatpush2.bf16.msra.mxu0 0
      %2263 = vmatprep.subr.bf16.mxu0 0
      %2264 = vmatpush2.bf16.msra.mxu0 0
      %2265 = vmatprep.subr.bf16.mxu0 0
      %2266 = vmatpush2.bf16.msra.mxu0 0
      %2267 = vmatprep.subr.bf16.mxu0 0
      %2268 = vmatpush2.bf16.msra.mxu0 0
      %2269 = vmatprep.subr.bf16.mxu0 0
      %2270 = vmatpush2.bf16.msra.mxu0 0
      %2271 = vmatprep.subr.bf16.mxu0 0
      %2272 = vmatpush2.bf16.msra.mxu0 0
      %2273 = vmatprep.mubr.bf16.mxu0 0
      %2274 = vmatmul.mubr.bf16.gmra.mxu0 %v785
      %v2275 = vpop.f32.mrf.mxu0
      %v2276 = vadd.f32 0.0, %v2275
      %v2277 = vpop.f32.mrf.mxu0
      %v2278 = vpop.f32.mrf.mxu0
      %v2279 = vadd.f32 0.0, %v2278
      %v2280 = vpop.f32.mrf.mxu0
      %2281 = vmatprep.mubr.bf16.mxu0 0
      %2282 = vmatmul.mubr.bf16.gmra.mxu0 %v786
      %v2283 = vpop.f32.mrf.mxu0
      %v2284 = vadd.f32 0.0, %v2283
      %v2285 = vpop.f32.mrf.mxu0
      %v2286 = vpop.f32.mrf.mxu0
      %v2287 = vadd.f32 0.0, %v2286
      %v2288 = vpop.f32.mrf.mxu0
      %2289 = vmatprep.mubr.bf16.mxu0 0
      %2290 = vmatmul.mubr.bf16.gmra.mxu0 %v787
      %v2291 = vpop.f32.mrf.mxu0
      %v2292 = vadd.f32 0.0, %v2291
      %v2293 = vpop.f32.mrf.mxu0
      %v2294 = vpop.f32.mrf.mxu0
      %v2295 = vadd.f32 0.0, %v2294
      %v2296 = vpop.f32.mrf.mxu0
      %2297 = vmatprep.mubr.bf16.mxu0 0
      %2298 = vmatmul.mubr.bf16.gmra.mxu0 %v788
      %v2299 = vpop.f32.mrf.mxu0
      %v2300 = vadd.f32 0.0, %v2299
      %v2301 = vpop.f32.mrf.mxu0
      %v2302 = vpop.f32.mrf.mxu0
      %v2303 = vadd.f32 0.0, %v2302
      %v2304 = vpop.f32.mrf.mxu0
      %2305 = vmatprep.mubr.bf16.mxu0 0
      %2306 = vmatmul.mubr.bf16.gmra.mxu0 %v789
      %v2307 = vpop.f32.mrf.mxu0
      %v2308 = vadd.f32 0.0, %v2307
      %v2309 = vpop.f32.mrf.mxu0
      %v2310 = vpop.f32.mrf.mxu0
      %v2311 = vadd.f32 0.0, %v2310
      %v2312 = vpop.f32.mrf.mxu0
      %2313 = vmatprep.mubr.bf16.mxu0 0
      %2314 = vmatmul.mubr.bf16.gmra.mxu0 %v790
      %v2315 = vpop.f32.mrf.mxu0
      %v2316 = vadd.f32 0.0, %v2315
      %v2317 = vpop.f32.mrf.mxu0
      %v2318 = vpop.f32.mrf.mxu0
      %v2319 = vadd.f32 0.0, %v2318
      %v2320 = vpop.f32.mrf.mxu0
      %2321 = vmatprep.mubr.bf16.mxu0 0
      %2322 = vmatmul.mubr.bf16.gmra.mxu0 %v791
      %v2323 = vpop.f32.mrf.mxu0
      %v2324 = vadd.f32 0.0, %v2323
      %v2325 = vpop.f32.mrf.mxu0
      %v2326 = vpop.f32.mrf.mxu0
      %v2327 = vadd.f32 0.0, %v2326
      %v2328 = vpop.f32.mrf.mxu0
      %2329 = vmatprep.mubr.bf16.mxu0 0
      %2330 = vmatmul.mubr.bf16.gmra.mxu0 %v792
      %v2331 = vpop.f32.mrf.mxu0
      %v2332 = vadd.f32 0.0, %v2331
      %v2333 = vpop.f32.mrf.mxu0
      %v2334 = vpop.f32.mrf.mxu0
      %v2335 = vadd.f32 0.0, %v2334
      %v2336 = vpop.f32.mrf.mxu0
      %2337 = vmatprep.mubr.bf16.mxu0 0
      %2338 = vmatmul.mubr.bf16.gmra.mxu0 %v793
      %v2339 = vpop.f32.mrf.mxu0
      %v2340 = vadd.f32 0.0, %v2339
      %v2341 = vpop.f32.mrf.mxu0
      %v2342 = vpop.f32.mrf.mxu0
      %v2343 = vadd.f32 0.0, %v2342
      %v2344 = vpop.f32.mrf.mxu0
      %2345 = vmatprep.mubr.bf16.mxu0 0
      %2346 = vmatmul.mubr.bf16.gmra.mxu0 %v794
      %v2347 = vpop.f32.mrf.mxu0
      %v2348 = vadd.f32 0.0, %v2347
      %v2349 = vpop.f32.mrf.mxu0
      %v2350 = vpop.f32.mrf.mxu0
      %v2351 = vadd.f32 0.0, %v2350
      %v2352 = vpop.f32.mrf.mxu0
      %2353 = vmatprep.mubr.bf16.mxu0 0
      %2354 = vmatmul.mubr.bf16.gmra.mxu0 %v795
      %v2355 = vpop.f32.mrf.mxu0
      %v2356 = vadd.f32 0.0, %v2355
      %v2357 = vpop.f32.mrf.mxu0
      %v2358 = vpop.f32.mrf.mxu0
      %v2359 = vadd.f32 0.0, %v2358
      %v2360 = vpop.f32.mrf.mxu0
      %2361 = vmatprep.mubr.bf16.mxu0 0
      %2362 = vmatmul.mubr.bf16.gmra.mxu0 %v796
      %v2363 = vpop.f32.mrf.mxu0
      %v2364 = vadd.f32 0.0, %v2363
      %v2365 = vpop.f32.mrf.mxu0
      %v2366 = vpop.f32.mrf.mxu0
      %v2367 = vadd.f32 0.0, %v2366
      %v2368 = vpop.f32.mrf.mxu0
      %2369 = vmatprep.mubr.bf16.mxu0 0
      %2370 = vmatmul.mubr.bf16.gmra.mxu0 %v797
      %v2371 = vpop.f32.mrf.mxu0
      %v2372 = vadd.f32 0.0, %v2371
      %v2373 = vpop.f32.mrf.mxu0
      %v2374 = vpop.f32.mrf.mxu0
      %v2375 = vadd.f32 0.0, %v2374
      %v2376 = vpop.f32.mrf.mxu0
      %2377 = vmatprep.mubr.bf16.mxu0 0
      %2378 = vmatmul.mubr.bf16.gmra.mxu0 %v798
      %v2379 = vpop.f32.mrf.mxu0
      %v2380 = vadd.f32 0.0, %v2379
      %v2381 = vpop.f32.mrf.mxu0
      %v2382 = vpop.f32.mrf.mxu0
      %v2383 = vadd.f32 0.0, %v2382
      %v2384 = vpop.f32.mrf.mxu0
      %2385 = vmatprep.mubr.bf16.mxu0 0
      %2386 = vmatmul.mubr.bf16.gmra.mxu0 %v1399
      %v2387 = vpop.f32.mrf.mxu0
      %v2388 = vadd.f32 0.0, %v2387
      %v2389 = vpop.f32.mrf.mxu0
      %v2390 = vpop.f32.mrf.mxu0
      %v2391 = vadd.f32 0.0, %v2390
      %v2392 = vpop.f32.mrf.mxu0
      %2393 = vmatprep.mubr.bf16.mxu0 0
      %2394 = vmatmul.mubr.bf16.gmra.mxu0 %v2191
      %v2395 = vpop.f32.mrf.mxu0
      %v2396 = vadd.f32 0.0, %v2395
      %v2397 = vpop.f32.mrf.mxu0
      %v2398 = vpop.f32.mrf.mxu0
      %v2399 = vadd.f32 0.0, %v2398
      %v2400 = vpop.f32.mrf.mxu0
      %2401 = vdwg.mxu0
      %v2402 = vadd.f32 %v2138, %v2276
      %v2403 = vadd.f32 %v2139, %v2279
      %v2404 = vadd.f32 %v2140, %v2284
      %v2405 = vadd.f32 %v2141, %v2287
      %v2406 = vadd.f32 %v2142, %v2292
      %v2407 = vadd.f32 %v2143, %v2295
      %v2408 = vadd.f32 %v2144, %v2300
      %v2409 = vadd.f32 %v2145, %v2303
      %v2410 = vadd.f32 %v2146, %v2308
      %v2411 = vadd.f32 %v2147, %v2311
      %v2412 = vadd.f32 %v2148, %v2316
      %v2413 = vadd.f32 %v2149, %v2319
      %v2414 = vadd.f32 %v2150, %v2324
      %v2415 = vadd.f32 %v2151, %v2327
      %v2416 = vadd.f32 %v2152, %v2332
      %v2417 = vadd.f32 %v2153, %v2335
      %v2418 = vadd.f32 %v2154, %v2340
      %v2419 = vadd.f32 %v2155, %v2343
      %v2420 = vadd.f32 %v2156, %v2348
      %v2421 = vadd.f32 %v2157, %v2351
      %v2422 = vadd.f32 %v2158, %v2356
      %v2423 = vadd.f32 %v2159, %v2359
      %v2424 = vadd.f32 %v2160, %v2364
      %v2425 = vadd.f32 %v2161, %v2367
      %v2426 = vadd.f32 %v2162, %v2372
      %v2427 = vadd.f32 %v2163, %v2375
      %v2428 = vadd.f32 %v2164, %v2380
      %v2429 = vadd.f32 %v2165, %v2383
      %v2430 = vadd.f32 %v2166, %v2388
      %v2431 = vadd.f32 %v2167, %v2391
      %v2432 = vadd.f32 %v2168, %v2396
      %v2433 = vadd.f32 %v2169, %v2399
      %s2434 = scalar_lea.vmem %s1, 448
      %v2435 = vld [vmem:[%s2434] sm:$0xf]
      %v2436 = vld [vmem:[%s2434 + $0x4] sm:$0xf]
      %v2437 = vld [vmem:[%s2434 + $0x8] sm:$0xf]
      %v2438 = vld [vmem:[%s2434 + $0xc] sm:$0xf]
      %v2439 = vld [vmem:[%s2434 + $0x10] sm:$0xf]
      %v2440 = vld [vmem:[%s2434 + $0x14] sm:$0xf]
      %v2441 = vld [vmem:[%s2434 + $0x18] sm:$0xf]
      %v2442 = vld [vmem:[%s2434 + $0x1c] sm:$0xf]
      %v2443 = vld [vmem:[%s2434 + $0x20] sm:$0xf]
      %v2444 = vld [vmem:[%s2434 + $0x24] sm:$0xf]
      %v2445 = vld [vmem:[%s2434 + $0x28] sm:$0xf]
      %v2446 = vld [vmem:[%s2434 + $0x2c] sm:$0xf]
      %v2447 = vld [vmem:[%s2434 + $0x30] sm:$0xf]
      %v2448 = vld [vmem:[%s2434 + $0x34] sm:$0xf]
      %v2449 = vld [vmem:[%s2434 + $0x38] sm:$0xf]
      %v2450 = vld [vmem:[%s2434 + $0x3c] sm:$0xf]
      %v2453 = vunpack.c.l.b16 %v343
      %v2454 = vunpack.c.l.b16 %v344
      %v2455 = vpack.c.b16 %v2454, %v2453
      %v2473 = vunpack.c.l.b16 %v2435
      %v2474 = vunpack.c.l.b16 %v2436
      %v2475 = vunpack.c.l.b16 %v2437
      %v2476 = vunpack.c.l.b16 %v2438
      %v2477 = vunpack.c.l.b16 %v2439
      %v2478 = vunpack.c.l.b16 %v2440
      %v2479 = vunpack.c.l.b16 %v2441
      %v2480 = vunpack.c.l.b16 %v2442
      %v2481 = vunpack.c.l.b16 %v2443
      %v2482 = vunpack.c.l.b16 %v2444
      %v2483 = vunpack.c.l.b16 %v2445
      %v2484 = vunpack.c.l.b16 %v2446
      %v2485 = vunpack.c.l.b16 %v2447
      %v2486 = vunpack.c.l.b16 %v2448
      %v2487 = vunpack.c.l.b16 %v2449
      %v2488 = vunpack.c.l.b16 %v2450
      %v2489 = vpack.c.b16 %v2474, %v2473
      %v2490 = vpack.c.b16 %v2476, %v2475
      %v2491 = vpack.c.b16 %v2478, %v2477
      %v2492 = vpack.c.b16 %v2480, %v2479
      %v2493 = vpack.c.b16 %v2482, %v2481
      %v2494 = vpack.c.b16 %v2484, %v2483
      %v2495 = vpack.c.b16 %v2486, %v2485
      %v2496 = vpack.c.b16 %v2488, %v2487
      %2505 = vmatprep.subr.bf16.mxu0 0
      %2506 = vmatpush1.bf16.msra.mxu0 %v2496
      %2507 = vmatprep.subr.bf16.mxu0 0
      %2508 = vmatpush1.bf16.msra.mxu0 %v2495
      %2509 = vmatprep.subr.bf16.mxu0 0
      %2510 = vmatpush1.bf16.msra.mxu0 %v2494
      %2511 = vmatprep.subr.bf16.mxu0 0
      %2512 = vmatpush1.bf16.msra.mxu0 %v2493
      %2513 = vmatprep.subr.bf16.mxu0 0
      %2514 = vmatpush1.bf16.msra.mxu0 %v2492
      %2515 = vmatprep.subr.bf16.mxu0 0
      %2516 = vmatpush1.bf16.msra.mxu0 %v2491
      %2517 = vmatprep.subr.bf16.mxu0 0
      %2518 = vmatpush1.bf16.msra.mxu0 %v2490
      %2519 = vmatprep.subr.bf16.mxu0 0
      %2520 = vmatpush1.bf16.msra.mxu0 %v2489
      %2521 = vmatprep.subr.bf16.mxu0 0
      %2522 = vmatpush2.bf16.msra.mxu0 0
      %2523 = vmatprep.subr.bf16.mxu0 0
      %2524 = vmatpush2.bf16.msra.mxu0 0
      %2525 = vmatprep.subr.bf16.mxu0 0
      %2526 = vmatpush2.bf16.msra.mxu0 0
      %2527 = vmatprep.subr.bf16.mxu0 0
      %2528 = vmatpush2.bf16.msra.mxu0 0
      %2529 = vmatprep.subr.bf16.mxu0 0
      %2530 = vmatpush2.bf16.msra.mxu0 0
      %2531 = vmatprep.subr.bf16.mxu0 0
      %2532 = vmatpush2.bf16.msra.mxu0 0
      %2533 = vmatprep.subr.bf16.mxu0 0
      %2534 = vmatpush2.bf16.msra.mxu0 0
      %2535 = vmatprep.subr.bf16.mxu0 0
      %2536 = vmatpush2.bf16.msra.mxu0 0
      %2537 = vmatprep.mubr.bf16.mxu0 0
      %2538 = vmatmul.mubr.bf16.gmra.mxu0 %v480
      %v2539 = vpop.f32.mrf.mxu0
      %v2540 = vadd.f32 0.0, %v2539
      %v2541 = vpop.f32.mrf.mxu0
      %v2542 = vpop.f32.mrf.mxu0
      %v2543 = vadd.f32 0.0, %v2542
      %v2544 = vpop.f32.mrf.mxu0
      %2545 = vmatprep.mubr.bf16.mxu0 0
      %2546 = vmatmul.mubr.bf16.gmra.mxu0 %v481
      %v2547 = vpop.f32.mrf.mxu0
      %v2548 = vadd.f32 0.0, %v2547
      %v2549 = vpop.f32.mrf.mxu0
      %v2550 = vpop.f32.mrf.mxu0
      %v2551 = vadd.f32 0.0, %v2550
      %v2552 = vpop.f32.mrf.mxu0
      %2553 = vmatprep.mubr.bf16.mxu0 0
      %2554 = vmatmul.mubr.bf16.gmra.mxu0 %v482
      %v2555 = vpop.f32.mrf.mxu0
      %v2556 = vadd.f32 0.0, %v2555
      %v2557 = vpop.f32.mrf.mxu0
      %v2558 = vpop.f32.mrf.mxu0
      %v2559 = vadd.f32 0.0, %v2558
      %v2560 = vpop.f32.mrf.mxu0
      %2561 = vmatprep.mubr.bf16.mxu0 0
      %2562 = vmatmul.mubr.bf16.gmra.mxu0 %v483
      %v2563 = vpop.f32.mrf.mxu0
      %v2564 = vadd.f32 0.0, %v2563
      %v2565 = vpop.f32.mrf.mxu0
      %v2566 = vpop.f32.mrf.mxu0
      %v2567 = vadd.f32 0.0, %v2566
      %v2568 = vpop.f32.mrf.mxu0
      %2569 = vmatprep.mubr.bf16.mxu0 0
      %2570 = vmatmul.mubr.bf16.gmra.mxu0 %v484
      %v2571 = vpop.f32.mrf.mxu0
      %v2572 = vadd.f32 0.0, %v2571
      %v2573 = vpop.f32.mrf.mxu0
      %v2574 = vpop.f32.mrf.mxu0
      %v2575 = vadd.f32 0.0, %v2574
      %v2576 = vpop.f32.mrf.mxu0
      %2577 = vmatprep.mubr.bf16.mxu0 0
      %2578 = vmatmul.mubr.bf16.gmra.mxu0 %v485
      %v2579 = vpop.f32.mrf.mxu0
      %v2580 = vadd.f32 0.0, %v2579
      %v2581 = vpop.f32.mrf.mxu0
      %v2582 = vpop.f32.mrf.mxu0
      %v2583 = vadd.f32 0.0, %v2582
      %v2584 = vpop.f32.mrf.mxu0
      %2585 = vmatprep.mubr.bf16.mxu0 0
      %2586 = vmatmul.mubr.bf16.gmra.mxu0 %v486
      %v2587 = vpop.f32.mrf.mxu0
      %v2588 = vadd.f32 0.0, %v2587
      %v2589 = vpop.f32.mrf.mxu0
      %v2590 = vpop.f32.mrf.mxu0
      %v2591 = vadd.f32 0.0, %v2590
      %v2592 = vpop.f32.mrf.mxu0
      %2593 = vmatprep.mubr.bf16.mxu0 0
      %2594 = vmatmul.mubr.bf16.gmra.mxu0 %v487
      %v2595 = vpop.f32.mrf.mxu0
      %v2596 = vadd.f32 0.0, %v2595
      %v2597 = vpop.f32.mrf.mxu0
      %v2598 = vpop.f32.mrf.mxu0
      %v2599 = vadd.f32 0.0, %v2598
      %v2600 = vpop.f32.mrf.mxu0
      %2601 = vmatprep.mubr.bf16.mxu0 0
      %2602 = vmatmul.mubr.bf16.gmra.mxu0 %v488
      %v2603 = vpop.f32.mrf.mxu0
      %v2604 = vadd.f32 0.0, %v2603
      %v2605 = vpop.f32.mrf.mxu0
      %v2606 = vpop.f32.mrf.mxu0
      %v2607 = vadd.f32 0.0, %v2606
      %v2608 = vpop.f32.mrf.mxu0
      %2609 = vmatprep.mubr.bf16.mxu0 0
      %2610 = vmatmul.mubr.bf16.gmra.mxu0 %v489
      %v2611 = vpop.f32.mrf.mxu0
      %v2612 = vadd.f32 0.0, %v2611
      %v2613 = vpop.f32.mrf.mxu0
      %v2614 = vpop.f32.mrf.mxu0
      %v2615 = vadd.f32 0.0, %v2614
      %v2616 = vpop.f32.mrf.mxu0
      %2617 = vmatprep.mubr.bf16.mxu0 0
      %2618 = vmatmul.mubr.bf16.gmra.mxu0 %v490
      %v2619 = vpop.f32.mrf.mxu0
      %v2620 = vadd.f32 0.0, %v2619
      %v2621 = vpop.f32.mrf.mxu0
      %v2622 = vpop.f32.mrf.mxu0
      %v2623 = vadd.f32 0.0, %v2622
      %v2624 = vpop.f32.mrf.mxu0
      %2625 = vmatprep.mubr.bf16.mxu0 0
      %2626 = vmatmul.mubr.bf16.gmra.mxu0 %v491
      %v2627 = vpop.f32.mrf.mxu0
      %v2628 = vadd.f32 0.0, %v2627
      %v2629 = vpop.f32.mrf.mxu0
      %v2630 = vpop.f32.mrf.mxu0
      %v2631 = vadd.f32 0.0, %v2630
      %v2632 = vpop.f32.mrf.mxu0
      %2633 = vmatprep.mubr.bf16.mxu0 0
      %2634 = vmatmul.mubr.bf16.gmra.mxu0 %v492
      %v2635 = vpop.f32.mrf.mxu0
      %v2636 = vadd.f32 0.0, %v2635
      %v2637 = vpop.f32.mrf.mxu0
      %v2638 = vpop.f32.mrf.mxu0
      %v2639 = vadd.f32 0.0, %v2638
      %v2640 = vpop.f32.mrf.mxu0
      %2641 = vmatprep.mubr.bf16.mxu0 0
      %2642 = vmatmul.mubr.bf16.gmra.mxu0 %v493
      %v2643 = vpop.f32.mrf.mxu0
      %v2644 = vadd.f32 0.0, %v2643
      %v2645 = vpop.f32.mrf.mxu0
      %v2646 = vpop.f32.mrf.mxu0
      %v2647 = vadd.f32 0.0, %v2646
      %v2648 = vpop.f32.mrf.mxu0
      %2649 = vmatprep.mubr.bf16.mxu0 0
      %2650 = vmatmul.mubr.bf16.gmra.mxu0 %v1663
      %v2651 = vpop.f32.mrf.mxu0
      %v2652 = vadd.f32 0.0, %v2651
      %v2653 = vpop.f32.mrf.mxu0
      %v2654 = vpop.f32.mrf.mxu0
      %v2655 = vadd.f32 0.0, %v2654
      %v2656 = vpop.f32.mrf.mxu0
      %2657 = vmatprep.mubr.bf16.mxu0 0
      %2658 = vmatmul.mubr.bf16.gmra.mxu0 %v2455
      %v2659 = vpop.f32.mrf.mxu0
      %v2660 = vadd.f32 0.0, %v2659
      %v2661 = vpop.f32.mrf.mxu0
      %v2662 = vpop.f32.mrf.mxu0
      %v2663 = vadd.f32 0.0, %v2662
      %v2664 = vpop.f32.mrf.mxu0
      %2665 = vdwg.mxu0
      %v2666 = vadd.f32 %v2402, %v2540
      %v2667 = vadd.f32 %v2403, %v2543
      %v2668 = vadd.f32 %v2404, %v2548
      %v2669 = vadd.f32 %v2405, %v2551
      %v2670 = vadd.f32 %v2406, %v2556
      %v2671 = vadd.f32 %v2407, %v2559
      %v2672 = vadd.f32 %v2408, %v2564
      %v2673 = vadd.f32 %v2409, %v2567
      %v2674 = vadd.f32 %v2410, %v2572
      %v2675 = vadd.f32 %v2411, %v2575
      %v2676 = vadd.f32 %v2412, %v2580
      %v2677 = vadd.f32 %v2413, %v2583
      %v2678 = vadd.f32 %v2414, %v2588
      %v2679 = vadd.f32 %v2415, %v2591
      %v2680 = vadd.f32 %v2416, %v2596
      %v2681 = vadd.f32 %v2417, %v2599
      %v2682 = vadd.f32 %v2418, %v2604
      %v2683 = vadd.f32 %v2419, %v2607
      %v2684 = vadd.f32 %v2420, %v2612
      %v2685 = vadd.f32 %v2421, %v2615
      %v2686 = vadd.f32 %v2422, %v2620
      %v2687 = vadd.f32 %v2423, %v2623
      %v2688 = vadd.f32 %v2424, %v2628
      %v2689 = vadd.f32 %v2425, %v2631
      %v2690 = vadd.f32 %v2426, %v2636
      %v2691 = vadd.f32 %v2427, %v2639
      %v2692 = vadd.f32 %v2428, %v2644
      %v2693 = vadd.f32 %v2429, %v2647
      %v2694 = vadd.f32 %v2430, %v2652
      %v2695 = vadd.f32 %v2431, %v2655
      %v2696 = vadd.f32 %v2432, %v2660
      %v2697 = vadd.f32 %v2433, %v2663
      %s2698 = scalar_lea.vmem %s1, 512
      %v2699 = vld [vmem:[%s2698] sm:$0xf]
      %v2700 = vld [vmem:[%s2698 + $0x4] sm:$0xf]
      %v2701 = vld [vmem:[%s2698 + $0x8] sm:$0xf]
      %v2702 = vld [vmem:[%s2698 + $0xc] sm:$0xf]
      %v2703 = vld [vmem:[%s2698 + $0x10] sm:$0xf]
      %v2704 = vld [vmem:[%s2698 + $0x14] sm:$0xf]
      %v2705 = vld [vmem:[%s2698 + $0x18] sm:$0xf]
      %v2706 = vld [vmem:[%s2698 + $0x1c] sm:$0xf]
      %v2707 = vld [vmem:[%s2698 + $0x20] sm:$0xf]
      %v2708 = vld [vmem:[%s2698 + $0x24] sm:$0xf]
      %v2709 = vld [vmem:[%s2698 + $0x28] sm:$0xf]
      %v2710 = vld [vmem:[%s2698 + $0x2c] sm:$0xf]
      %v2711 = vld [vmem:[%s2698 + $0x30] sm:$0xf]
      %v2712 = vld [vmem:[%s2698 + $0x34] sm:$0xf]
      %v2713 = vld [vmem:[%s2698 + $0x38] sm:$0xf]
      %v2714 = vld [vmem:[%s2698 + $0x3c] sm:$0xf]
      %v2717 = vunpack.c.l.b16 %v379
      %v2718 = vunpack.c.l.b16 %v380
      %v2719 = vpack.c.b16 %v2718, %v2717
      %v2737 = vunpack.c.l.b16 %v2699
      %v2738 = vunpack.c.l.b16 %v2700
      %v2739 = vunpack.c.l.b16 %v2701
      %v2740 = vunpack.c.l.b16 %v2702
      %v2741 = vunpack.c.l.b16 %v2703
      %v2742 = vunpack.c.l.b16 %v2704
      %v2743 = vunpack.c.l.b16 %v2705
      %v2744 = vunpack.c.l.b16 %v2706
      %v2745 = vunpack.c.l.b16 %v2707
      %v2746 = vunpack.c.l.b16 %v2708
      %v2747 = vunpack.c.l.b16 %v2709
      %v2748 = vunpack.c.l.b16 %v2710
      %v2749 = vunpack.c.l.b16 %v2711
      %v2750 = vunpack.c.l.b16 %v2712
      %v2751 = vunpack.c.l.b16 %v2713
      %v2752 = vunpack.c.l.b16 %v2714
      %v2753 = vpack.c.b16 %v2738, %v2737
      %v2754 = vpack.c.b16 %v2740, %v2739
      %v2755 = vpack.c.b16 %v2742, %v2741
      %v2756 = vpack.c.b16 %v2744, %v2743
      %v2757 = vpack.c.b16 %v2746, %v2745
      %v2758 = vpack.c.b16 %v2748, %v2747
      %v2759 = vpack.c.b16 %v2750, %v2749
      %v2760 = vpack.c.b16 %v2752, %v2751
      %2769 = vmatprep.subr.bf16.mxu0 0
      %2770 = vmatpush1.bf16.msra.mxu0 %v2760
      %2771 = vmatprep.subr.bf16.mxu0 0
      %2772 = vmatpush1.bf16.msra.mxu0 %v2759
      %2773 = vmatprep.subr.bf16.mxu0 0
      %2774 = vmatpush1.bf16.msra.mxu0 %v2758
      %2775 = vmatprep.subr.bf16.mxu0 0
      %2776 = vmatpush1.bf16.msra.mxu0 %v2757
      %2777 = vmatprep.subr.bf16.mxu0 0
      %2778 = vmatpush1.bf16.msra.mxu0 %v2756
      %2779 = vmatprep.subr.bf16.mxu0 0
      %2780 = vmatpush1.bf16.msra.mxu0 %v2755
      %2781 = vmatprep.subr.bf16.mxu0 0
      %2782 = vmatpush1.bf16.msra.mxu0 %v2754
      %2783 = vmatprep.subr.bf16.mxu0 0
      %2784 = vmatpush1.bf16.msra.mxu0 %v2753
      %2785 = vmatprep.subr.bf16.mxu0 0
      %2786 = vmatpush2.bf16.msra.mxu0 0
      %2787 = vmatprep.subr.bf16.mxu0 0
      %2788 = vmatpush2.bf16.msra.mxu0 0
      %2789 = vmatprep.subr.bf16.mxu0 0
      %2790 = vmatpush2.bf16.msra.mxu0 0
      %2791 = vmatprep.subr.bf16.mxu0 0
      %2792 = vmatpush2.bf16.msra.mxu0 0
      %2793 = vmatprep.subr.bf16.mxu0 0
      %2794 = vmatpush2.bf16.msra.mxu0 0
      %2795 = vmatprep.subr.bf16.mxu0 0
      %2796 = vmatpush2.bf16.msra.mxu0 0
      %2797 = vmatprep.subr.bf16.mxu0 0
      %2798 = vmatpush2.bf16.msra.mxu0 0
      %2799 = vmatprep.subr.bf16.mxu0 0
      %2800 = vmatpush2.bf16.msra.mxu0 0
      %2801 = vmatprep.mubr.bf16.mxu0 0
      %2802 = vmatmul.mubr.bf16.gmra.mxu0 %v1107
      %v2803 = vpop.f32.mrf.mxu0
      %v2804 = vadd.f32 0.0, %v2803
      %v2805 = vpop.f32.mrf.mxu0
      %v2806 = vpop.f32.mrf.mxu0
      %v2807 = vadd.f32 0.0, %v2806
      %v2808 = vpop.f32.mrf.mxu0
      %2809 = vmatprep.mubr.bf16.mxu0 0
      %2810 = vmatmul.mubr.bf16.gmra.mxu0 %v1108
      %v2811 = vpop.f32.mrf.mxu0
      %v2812 = vadd.f32 0.0, %v2811
      %v2813 = vpop.f32.mrf.mxu0
      %v2814 = vpop.f32.mrf.mxu0
      %v2815 = vadd.f32 0.0, %v2814
      %v2816 = vpop.f32.mrf.mxu0
      %2817 = vmatprep.mubr.bf16.mxu0 0
      %2818 = vmatmul.mubr.bf16.gmra.mxu0 %v1109
      %v2819 = vpop.f32.mrf.mxu0
      %v2820 = vadd.f32 0.0, %v2819
      %v2821 = vpop.f32.mrf.mxu0
      %v2822 = vpop.f32.mrf.mxu0
      %v2823 = vadd.f32 0.0, %v2822
      %v2824 = vpop.f32.mrf.mxu0
      %2825 = vmatprep.mubr.bf16.mxu0 0
      %2826 = vmatmul.mubr.bf16.gmra.mxu0 %v1110
      %v2827 = vpop.f32.mrf.mxu0
      %v2828 = vadd.f32 0.0, %v2827
      %v2829 = vpop.f32.mrf.mxu0
      %v2830 = vpop.f32.mrf.mxu0
      %v2831 = vadd.f32 0.0, %v2830
      %v2832 = vpop.f32.mrf.mxu0
      %2833 = vmatprep.mubr.bf16.mxu0 0
      %2834 = vmatmul.mubr.bf16.gmra.mxu0 %v1111
      %v2835 = vpop.f32.mrf.mxu0
      %v2836 = vadd.f32 0.0, %v2835
      %v2837 = vpop.f32.mrf.mxu0
      %v2838 = vpop.f32.mrf.mxu0
      %v2839 = vadd.f32 0.0, %v2838
      %v2840 = vpop.f32.mrf.mxu0
      %2841 = vmatprep.mubr.bf16.mxu0 0
      %2842 = vmatmul.mubr.bf16.gmra.mxu0 %v1112
      %v2843 = vpop.f32.mrf.mxu0
      %v2844 = vadd.f32 0.0, %v2843
      %v2845 = vpop.f32.mrf.mxu0
      %v2846 = vpop.f32.mrf.mxu0
      %v2847 = vadd.f32 0.0, %v2846
      %v2848 = vpop.f32.mrf.mxu0
      %2849 = vmatprep.mubr.bf16.mxu0 0
      %2850 = vmatmul.mubr.bf16.gmra.mxu0 %v1113
      %v2851 = vpop.f32.mrf.mxu0
      %v2852 = vadd.f32 0.0, %v2851
      %v2853 = vpop.f32.mrf.mxu0
      %v2854 = vpop.f32.mrf.mxu0
      %v2855 = vadd.f32 0.0, %v2854
      %v2856 = vpop.f32.mrf.mxu0
      %2857 = vmatprep.mubr.bf16.mxu0 0
      %2858 = vmatmul.mubr.bf16.gmra.mxu0 %v1114
      %v2859 = vpop.f32.mrf.mxu0
      %v2860 = vadd.f32 0.0, %v2859
      %v2861 = vpop.f32.mrf.mxu0
      %v2862 = vpop.f32.mrf.mxu0
      %v2863 = vadd.f32 0.0, %v2862
      %v2864 = vpop.f32.mrf.mxu0
      %2865 = vmatprep.mubr.bf16.mxu0 0
      %2866 = vmatmul.mubr.bf16.gmra.mxu0 %v1115
      %v2867 = vpop.f32.mrf.mxu0
      %v2868 = vadd.f32 0.0, %v2867
      %v2869 = vpop.f32.mrf.mxu0
      %v2870 = vpop.f32.mrf.mxu0
      %v2871 = vadd.f32 0.0, %v2870
      %v2872 = vpop.f32.mrf.mxu0
      %2873 = vmatprep.mubr.bf16.mxu0 0
      %2874 = vmatmul.mubr.bf16.gmra.mxu0 %v1116
      %v2875 = vpop.f32.mrf.mxu0
      %v2876 = vadd.f32 0.0, %v2875
      %v2877 = vpop.f32.mrf.mxu0
      %v2878 = vpop.f32.mrf.mxu0
      %v2879 = vadd.f32 0.0, %v2878
      %v2880 = vpop.f32.mrf.mxu0
      %2881 = vmatprep.mubr.bf16.mxu0 0
      %2882 = vmatmul.mubr.bf16.gmra.mxu0 %v1117
      %v2883 = vpop.f32.mrf.mxu0
      %v2884 = vadd.f32 0.0, %v2883
      %v2885 = vpop.f32.mrf.mxu0
      %v2886 = vpop.f32.mrf.mxu0
      %v2887 = vadd.f32 0.0, %v2886
      %v2888 = vpop.f32.mrf.mxu0
      %2889 = vmatprep.mubr.bf16.mxu0 0
      %2890 = vmatmul.mubr.bf16.gmra.mxu0 %v1118
      %v2891 = vpop.f32.mrf.mxu0
      %v2892 = vadd.f32 0.0, %v2891
      %v2893 = vpop.f32.mrf.mxu0
      %v2894 = vpop.f32.mrf.mxu0
      %v2895 = vadd.f32 0.0, %v2894
      %v2896 = vpop.f32.mrf.mxu0
      %2897 = vmatprep.mubr.bf16.mxu0 0
      %2898 = vmatmul.mubr.bf16.gmra.mxu0 %v1119
      %v2899 = vpop.f32.mrf.mxu0
      %v2900 = vadd.f32 0.0, %v2899
      %v2901 = vpop.f32.mrf.mxu0
      %v2902 = vpop.f32.mrf.mxu0
      %v2903 = vadd.f32 0.0, %v2902
      %v2904 = vpop.f32.mrf.mxu0
      %2905 = vmatprep.mubr.bf16.mxu0 0
      %2906 = vmatmul.mubr.bf16.gmra.mxu0 %v1120
      %v2907 = vpop.f32.mrf.mxu0
      %v2908 = vadd.f32 0.0, %v2907
      %v2909 = vpop.f32.mrf.mxu0
      %v2910 = vpop.f32.mrf.mxu0
      %v2911 = vadd.f32 0.0, %v2910
      %v2912 = vpop.f32.mrf.mxu0
      %2913 = vmatprep.mubr.bf16.mxu0 0
      %2914 = vmatmul.mubr.bf16.gmra.mxu0 %v1927
      %v2915 = vpop.f32.mrf.mxu0
      %v2916 = vadd.f32 0.0, %v2915
      %v2917 = vpop.f32.mrf.mxu0
      %v2918 = vpop.f32.mrf.mxu0
      %v2919 = vadd.f32 0.0, %v2918
      %v2920 = vpop.f32.mrf.mxu0
      %2921 = vmatprep.mubr.bf16.mxu0 0
      %2922 = vmatmul.mubr.bf16.gmra.mxu0 %v2719
      %v2923 = vpop.f32.mrf.mxu0
      %v2924 = vadd.f32 0.0, %v2923
      %v2925 = vpop.f32.mrf.mxu0
      %v2926 = vpop.f32.mrf.mxu0
      %v2927 = vadd.f32 0.0, %v2926
      %v2928 = vpop.f32.mrf.mxu0
      %2929 = vdwg.mxu0
      %v2930 = vadd.f32 %v2666, %v2804
      %v2931 = vadd.f32 %v2667, %v2807
      %v2932 = vadd.f32 %v2668, %v2812
      %v2933 = vadd.f32 %v2669, %v2815
      %v2934 = vadd.f32 %v2670, %v2820
      %v2935 = vadd.f32 %v2671, %v2823
      %v2936 = vadd.f32 %v2672, %v2828
      %v2937 = vadd.f32 %v2673, %v2831
      %v2938 = vadd.f32 %v2674, %v2836
      %v2939 = vadd.f32 %v2675, %v2839
      %v2940 = vadd.f32 %v2676, %v2844
      %v2941 = vadd.f32 %v2677, %v2847
      %v2942 = vadd.f32 %v2678, %v2852
      %v2943 = vadd.f32 %v2679, %v2855
      %v2944 = vadd.f32 %v2680, %v2860
      %v2945 = vadd.f32 %v2681, %v2863
      %v2946 = vadd.f32 %v2682, %v2868
      %v2947 = vadd.f32 %v2683, %v2871
      %v2948 = vadd.f32 %v2684, %v2876
      %v2949 = vadd.f32 %v2685, %v2879
      %v2950 = vadd.f32 %v2686, %v2884
      %v2951 = vadd.f32 %v2687, %v2887
      %v2952 = vadd.f32 %v2688, %v2892
      %v2953 = vadd.f32 %v2689, %v2895
      %v2954 = vadd.f32 %v2690, %v2900
      %v2955 = vadd.f32 %v2691, %v2903
      %v2956 = vadd.f32 %v2692, %v2908
      %v2957 = vadd.f32 %v2693, %v2911
      %v2958 = vadd.f32 %v2694, %v2916
      %v2959 = vadd.f32 %v2695, %v2919
      %v2960 = vadd.f32 %v2696, %v2924
      %v2961 = vadd.f32 %v2697, %v2927
      %v2962 = vld [vmem:[%s2] sm:$0x1]
      %v2964 = vlaneseq
      %v2965 = vshrl.u32 %v2964, 7
      %v2966 = vsub.s32 0, %v2965
      %v2967 = vrot.slane %v2962, %v2966
      %v2969 = vadd.f32 %v2930, %v2967
      %v2970 = vadd.f32 %v2931, %v2967
      %v2971 = vadd.f32 %v2932, %v2967
      %v2972 = vadd.f32 %v2933, %v2967
      %v2973 = vadd.f32 %v2934, %v2967
      %v2974 = vadd.f32 %v2935, %v2967
      %v2975 = vadd.f32 %v2936, %v2967
      %v2976 = vadd.f32 %v2937, %v2967
      %v2977 = vadd.f32 %v2938, %v2967
      %v2978 = vadd.f32 %v2939, %v2967
      %v2979 = vadd.f32 %v2940, %v2967
      %v2980 = vadd.f32 %v2941, %v2967
      %v2981 = vadd.f32 %v2942, %v2967
      %v2982 = vadd.f32 %v2943, %v2967
      %v2983 = vadd.f32 %v2944, %v2967
      %v2984 = vadd.f32 %v2945, %v2967
      %v2985 = vadd.f32 %v2946, %v2967
      %v2986 = vadd.f32 %v2947, %v2967
      %v2987 = vadd.f32 %v2948, %v2967
      %v2988 = vadd.f32 %v2949, %v2967
      %v2989 = vadd.f32 %v2950, %v2967
      %v2990 = vadd.f32 %v2951, %v2967
      %v2991 = vadd.f32 %v2952, %v2967
      %v2992 = vadd.f32 %v2953, %v2967
      %v2993 = vadd.f32 %v2954, %v2967
      %v2994 = vadd.f32 %v2955, %v2967
      %v2995 = vadd.f32 %v2956, %v2967
      %v2996 = vadd.f32 %v2957, %v2967
      %v2997 = vadd.f32 %v2958, %v2967
      %v2998 = vadd.f32 %v2959, %v2967
      %v2999 = vadd.f32 %v2960, %v2967
      %v3000 = vadd.f32 %v2961, %v2967
      %v3001 = vmax.f32 %v2969, 0.0
      %v3002 = vmax.f32 %v2970, 0.0
      %v3003 = vmax.f32 %v2971, 0.0
      %v3004 = vmax.f32 %v2972, 0.0
      %v3005 = vmax.f32 %v2973, 0.0
      %v3006 = vmax.f32 %v2974, 0.0
      %v3007 = vmax.f32 %v2975, 0.0
      %v3008 = vmax.f32 %v2976, 0.0
      %v3009 = vmax.f32 %v2977, 0.0
      %v3010 = vmax.f32 %v2978, 0.0
      %v3011 = vmax.f32 %v2979, 0.0
      %v3012 = vmax.f32 %v2980, 0.0
      %v3013 = vmax.f32 %v2981, 0.0
      %v3014 = vmax.f32 %v2982, 0.0
      %v3015 = vmax.f32 %v2983, 0.0
      %v3016 = vmax.f32 %v2984, 0.0
      %v3017 = vmax.f32 %v2985, 0.0
      %v3018 = vmax.f32 %v2986, 0.0
      %v3019 = vmax.f32 %v2987, 0.0
      %v3020 = vmax.f32 %v2988, 0.0
      %v3021 = vmax.f32 %v2989, 0.0
      %v3022 = vmax.f32 %v2990, 0.0
      %v3023 = vmax.f32 %v2991, 0.0
      %v3024 = vmax.f32 %v2992, 0.0
      %v3025 = vmax.f32 %v2993, 0.0
      %v3026 = vmax.f32 %v2994, 0.0
      %v3027 = vmax.f32 %v2995, 0.0
      %v3028 = vmax.f32 %v2996, 0.0
      %v3029 = vmax.f32 %v2997, 0.0
      %v3030 = vmax.f32 %v2998, 0.0
      %v3031 = vmax.f32 %v2999, 0.0
      %v3032 = vmax.f32 %v3000, 0.0
      %v3033 = vpack.c.bf16 %v3002, %v3001
      %v3034 = vpack.c.bf16 %v3004, %v3003
      %v3035 = vpack.c.bf16 %v3006, %v3005
      %v3036 = vpack.c.bf16 %v3008, %v3007
      %v3037 = vpack.c.bf16 %v3010, %v3009
      %v3038 = vpack.c.bf16 %v3012, %v3011
      %v3039 = vpack.c.bf16 %v3014, %v3013
      %v3040 = vpack.c.bf16 %v3016, %v3015
      %v3041 = vpack.c.bf16 %v3018, %v3017
      %v3042 = vpack.c.bf16 %v3020, %v3019
      %v3043 = vpack.c.bf16 %v3022, %v3021
      %v3044 = vpack.c.bf16 %v3024, %v3023
      %v3045 = vpack.c.bf16 %v3026, %v3025
      %v3046 = vpack.c.bf16 %v3028, %v3027
      %v3047 = vpack.c.bf16 %v3030, %v3029
      %v3048 = vpack.c.bf16 %v3032, %v3031
      %v3049 = vld [vmem:[%s3] sm:$0xf]
      %v3050 = vld [vmem:[%s3 + $0x4] sm:$0xf]
      %v3051 = vld [vmem:[%s3 + $0x8] sm:$0xf]
      %v3052 = vld [vmem:[%s3 + $0xc] sm:$0xf]
      %v3053 = vld [vmem:[%s3 + $0x10] sm:$0xf]
      %v3054 = vld [vmem:[%s3 + $0x14] sm:$0xf]
      %v3055 = vld [vmem:[%s3 + $0x18] sm:$0xf]
      %v3056 = vld [vmem:[%s3 + $0x1c] sm:$0xf]
      %v3057 = vld [vmem:[%s3 + $0x20] sm:$0xf]
      %v3058 = vld [vmem:[%s3 + $0x24] sm:$0xf]
      %v3059 = vld [vmem:[%s3 + $0x28] sm:$0xf]
      %v3060 = vld [vmem:[%s3 + $0x2c] sm:$0xf]
      %v3061 = vld [vmem:[%s3 + $0x30] sm:$0xf]
      %v3062 = vld [vmem:[%s3 + $0x34] sm:$0xf]
      %v3063 = vld [vmem:[%s3 + $0x38] sm:$0xf]
      %v3064 = vld [vmem:[%s3 + $0x3c] sm:$0xf]
      %v3065 = vld [vmem:[%s4] sm:$0x1]
      %v3067 = vlaneseq
      %v3068 = vshrl.u32 %v3067, 7
      %v3069 = vsub.s32 0, %v3068
      %v3070 = vrot.slane %v3065, %v3069
      %v3088 = vunpack.c.l.b16 %v3049
      %v3089 = vunpack.c.l.b16 %v3050
      %v3090 = vunpack.c.l.b16 %v3051
      %v3091 = vunpack.c.l.b16 %v3052
      %v3092 = vunpack.c.l.b16 %v3053
      %v3093 = vunpack.c.l.b16 %v3054
      %v3094 = vunpack.c.l.b16 %v3055
      %v3095 = vunpack.c.l.b16 %v3056
      %v3096 = vunpack.c.l.b16 %v3057
      %v3097 = vunpack.c.l.b16 %v3058
      %v3098 = vunpack.c.l.b16 %v3059
      %v3099 = vunpack.c.l.b16 %v3060
      %v3100 = vunpack.c.l.b16 %v3061
      %v3101 = vunpack.c.l.b16 %v3062
      %v3102 = vunpack.c.l.b16 %v3063
      %v3103 = vunpack.c.l.b16 %v3064
      %v3104 = vpack.c.b16 %v3089, %v3088
      %v3105 = vpack.c.b16 %v3091, %v3090
      %v3106 = vpack.c.b16 %v3093, %v3092
      %v3107 = vpack.c.b16 %v3095, %v3094
      %v3108 = vpack.c.b16 %v3097, %v3096
      %v3109 = vpack.c.b16 %v3099, %v3098
      %v3110 = vpack.c.b16 %v3101, %v3100
      %v3111 = vpack.c.b16 %v3103, %v3102
      %3120 = vmatprep.subr.bf16.mxu0 0
      %3121 = vmatpush1.bf16.msra.mxu0 %v3111
      %3122 = vmatprep.subr.bf16.mxu0 0
      %3123 = vmatpush1.bf16.msra.mxu0 %v3110
      %3124 = vmatprep.subr.bf16.mxu0 0
      %3125 = vmatpush1.bf16.msra.mxu0 %v3109
      %3126 = vmatprep.subr.bf16.mxu0 0
      %3127 = vmatpush1.bf16.msra.mxu0 %v3108
      %3128 = vmatprep.subr.bf16.mxu0 0
      %3129 = vmatpush1.bf16.msra.mxu0 %v3107
      %3130 = vmatprep.subr.bf16.mxu0 0
      %3131 = vmatpush1.bf16.msra.mxu0 %v3106
      %3132 = vmatprep.subr.bf16.mxu0 0
      %3133 = vmatpush1.bf16.msra.mxu0 %v3105
      %3134 = vmatprep.subr.bf16.mxu0 0
      %3135 = vmatpush1.bf16.msra.mxu0 %v3104
      %3136 = vmatprep.subr.bf16.mxu0 0
      %3137 = vmatpush2.bf16.msra.mxu0 0
      %3138 = vmatprep.subr.bf16.mxu0 0
      %3139 = vmatpush2.bf16.msra.mxu0 0
      %3140 = vmatprep.subr.bf16.mxu0 0
      %3141 = vmatpush2.bf16.msra.mxu0 0
      %3142 = vmatprep.subr.bf16.mxu0 0
      %3143 = vmatpush2.bf16.msra.mxu0 0
      %3144 = vmatprep.subr.bf16.mxu0 0
      %3145 = vmatpush2.bf16.msra.mxu0 0
      %3146 = vmatprep.subr.bf16.mxu0 0
      %3147 = vmatpush2.bf16.msra.mxu0 0
      %3148 = vmatprep.subr.bf16.mxu0 0
      %3149 = vmatpush2.bf16.msra.mxu0 0
      %3150 = vmatprep.subr.bf16.mxu0 0
      %3151 = vmatpush2.bf16.msra.mxu0 0
      %3152 = vmatprep.mubr.bf16.mxu0 0
      %3153 = vmatmul.mubr.bf16.gmra.mxu0 %v3033
      %v3154 = vpop.f32.mrf.mxu0
      %v3155 = vadd.f32 %v3070, %v3154
      %v3156 = vpop.f32.mrf.mxu0
      %v3157 = vpop.f32.mrf.mxu0
      %v3158 = vadd.f32 %v3070, %v3157
      %v3159 = vpop.f32.mrf.mxu0
      %3160 = vmatprep.mubr.bf16.mxu0 0
      %3161 = vmatmul.mubr.bf16.gmra.mxu0 %v3034
      %v3162 = vpop.f32.mrf.mxu0
      %v3163 = vadd.f32 %v3070, %v3162
      %v3164 = vpop.f32.mrf.mxu0
      %v3165 = vpop.f32.mrf.mxu0
      %v3166 = vadd.f32 %v3070, %v3165
      %v3167 = vpop.f32.mrf.mxu0
      %3168 = vmatprep.mubr.bf16.mxu0 0
      %3169 = vmatmul.mubr.bf16.gmra.mxu0 %v3035
      %v3170 = vpop.f32.mrf.mxu0
      %v3171 = vadd.f32 %v3070, %v3170
      %v3172 = vpop.f32.mrf.mxu0
      %v3173 = vpop.f32.mrf.mxu0
      %v3174 = vadd.f32 %v3070, %v3173
      %v3175 = vpop.f32.mrf.mxu0
      %3176 = vmatprep.mubr.bf16.mxu0 0
      %3177 = vmatmul.mubr.bf16.gmra.mxu0 %v3036
      %v3178 = vpop.f32.mrf.mxu0
      %v3179 = vadd.f32 %v3070, %v3178
      %v3180 = vpop.f32.mrf.mxu0
      %v3181 = vpop.f32.mrf.mxu0
      %v3182 = vadd.f32 %v3070, %v3181
      %v3183 = vpop.f32.mrf.mxu0
      %3184 = vmatprep.mubr.bf16.mxu0 0
      %3185 = vmatmul.mubr.bf16.gmra.mxu0 %v3037
      %v3186 = vpop.f32.mrf.mxu0
      %v3187 = vadd.f32 %v3070, %v3186
      %v3188 = vpop.f32.mrf.mxu0
      %v3189 = vpop.f32.mrf.mxu0
      %v3190 = vadd.f32 %v3070, %v3189
      %v3191 = vpop.f32.mrf.mxu0
      %3192 = vmatprep.mubr.bf16.mxu0 0
      %3193 = vmatmul.mubr.bf16.gmra.mxu0 %v3038
      %v3194 = vpop.f32.mrf.mxu0
      %v3195 = vadd.f32 %v3070, %v3194
      %v3196 = vpop.f32.mrf.mxu0
      %v3197 = vpop.f32.mrf.mxu0
      %v3198 = vadd.f32 %v3070, %v3197
      %v3199 = vpop.f32.mrf.mxu0
      %3200 = vmatprep.mubr.bf16.mxu0 0
      %3201 = vmatmul.mubr.bf16.gmra.mxu0 %v3039
      %v3202 = vpop.f32.mrf.mxu0
      %v3203 = vadd.f32 %v3070, %v3202
      %v3204 = vpop.f32.mrf.mxu0
      %v3205 = vpop.f32.mrf.mxu0
      %v3206 = vadd.f32 %v3070, %v3205
      %v3207 = vpop.f32.mrf.mxu0
      %3208 = vmatprep.mubr.bf16.mxu0 0
      %3209 = vmatmul.mubr.bf16.gmra.mxu0 %v3040
      %v3210 = vpop.f32.mrf.mxu0
      %v3211 = vadd.f32 %v3070, %v3210
      %v3212 = vpop.f32.mrf.mxu0
      %v3213 = vpop.f32.mrf.mxu0
      %v3214 = vadd.f32 %v3070, %v3213
      %v3215 = vpop.f32.mrf.mxu0
      %3216 = vmatprep.mubr.bf16.mxu0 0
      %3217 = vmatmul.mubr.bf16.gmra.mxu0 %v3041
      %v3218 = vpop.f32.mrf.mxu0
      %v3219 = vadd.f32 %v3070, %v3218
      %v3220 = vpop.f32.mrf.mxu0
      %v3221 = vpop.f32.mrf.mxu0
      %v3222 = vadd.f32 %v3070, %v3221
      %v3223 = vpop.f32.mrf.mxu0
      %3224 = vmatprep.mubr.bf16.mxu0 0
      %3225 = vmatmul.mubr.bf16.gmra.mxu0 %v3042
      %v3226 = vpop.f32.mrf.mxu0
      %v3227 = vadd.f32 %v3070, %v3226
      %v3228 = vpop.f32.mrf.mxu0
      %v3229 = vpop.f32.mrf.mxu0
      %v3230 = vadd.f32 %v3070, %v3229
      %v3231 = vpop.f32.mrf.mxu0
      %3232 = vmatprep.mubr.bf16.mxu0 0
      %3233 = vmatmul.mubr.bf16.gmra.mxu0 %v3043
      %v3234 = vpop.f32.mrf.mxu0
      %v3235 = vadd.f32 %v3070, %v3234
      %v3236 = vpop.f32.mrf.mxu0
      %v3237 = vpop.f32.mrf.mxu0
      %v3238 = vadd.f32 %v3070, %v3237
      %v3239 = vpop.f32.mrf.mxu0
      %3240 = vmatprep.mubr.bf16.mxu0 0
      %3241 = vmatmul.mubr.bf16.gmra.mxu0 %v3044
      %v3242 = vpop.f32.mrf.mxu0
      %v3243 = vadd.f32 %v3070, %v3242
      %v3244 = vpop.f32.mrf.mxu0
      %v3245 = vpop.f32.mrf.mxu0
      %v3246 = vadd.f32 %v3070, %v3245
      %v3247 = vpop.f32.mrf.mxu0
      %3248 = vmatprep.mubr.bf16.mxu0 0
      %3249 = vmatmul.mubr.bf16.gmra.mxu0 %v3045
      %v3250 = vpop.f32.mrf.mxu0
      %v3251 = vadd.f32 %v3070, %v3250
      %v3252 = vpop.f32.mrf.mxu0
      %v3253 = vpop.f32.mrf.mxu0
      %v3254 = vadd.f32 %v3070, %v3253
      %v3255 = vpop.f32.mrf.mxu0
      %3256 = vmatprep.mubr.bf16.mxu0 0
      %3257 = vmatmul.mubr.bf16.gmra.mxu0 %v3046
      %v3258 = vpop.f32.mrf.mxu0
      %v3259 = vadd.f32 %v3070, %v3258
      %v3260 = vpop.f32.mrf.mxu0
      %v3261 = vpop.f32.mrf.mxu0
      %v3262 = vadd.f32 %v3070, %v3261
      %v3263 = vpop.f32.mrf.mxu0
      %3264 = vmatprep.mubr.bf16.mxu0 0
      %3265 = vmatmul.mubr.bf16.gmra.mxu0 %v3047
      %v3266 = vpop.f32.mrf.mxu0
      %v3267 = vadd.f32 %v3070, %v3266
      %v3268 = vpop.f32.mrf.mxu0
      %v3269 = vpop.f32.mrf.mxu0
      %v3270 = vadd.f32 %v3070, %v3269
      %v3271 = vpop.f32.mrf.mxu0
      %3272 = vmatprep.mubr.bf16.mxu0 0
      %3273 = vmatmul.mubr.bf16.gmra.mxu0 %v3048
      %v3274 = vpop.f32.mrf.mxu0
      %v3275 = vadd.f32 %v3070, %v3274
      %v3276 = vpop.f32.mrf.mxu0
      %v3277 = vpop.f32.mrf.mxu0
      %v3278 = vadd.f32 %v3070, %v3277
      %v3279 = vpop.f32.mrf.mxu0
      %3280 = vdwg.mxu0
      %v3281 = vld [vmem:[%s266] sm:$0xff]
      %v3282 = vld [vmem:[%s266 + $0x8] sm:$0xff]
      %v3283 = vld [vmem:[%s266 + $0x10] sm:$0xff]
      %v3284 = vld [vmem:[%s266 + $0x18] sm:$0xff]
      %v3285 = vld [vmem:[%s266 + $0x20] sm:$0xff]
      %v3286 = vld [vmem:[%s266 + $0x28] sm:$0xff]
      %v3287 = vld [vmem:[%s266 + $0x30] sm:$0xff]
      %v3288 = vld [vmem:[%s266 + $0x38] sm:$0xff]
      %v3289 = vld [vmem:[%s266 + $0x40] sm:$0xff]
      %v3290 = vld [vmem:[%s266 + $0x48] sm:$0xff]
      %v3291 = vld [vmem:[%s266 + $0x50] sm:$0xff]
      %v3292 = vld [vmem:[%s266 + $0x58] sm:$0xff]
      %v3293 = vld [vmem:[%s266 + $0x60] sm:$0xff]
      %v3294 = vld [vmem:[%s266 + $0x68] sm:$0xff]
      %v3295 = vld [vmem:[%s266 + $0x70] sm:$0xff]
      %v3296 = vld [vmem:[%s266 + $0x78] sm:$0xff]
      %v3297 = vld [vmem:[%s266 + $0x80] sm:$0xff]
      %v3298 = vld [vmem:[%s266 + $0x88] sm:$0xff]
      %v3299 = vld [vmem:[%s266 + $0x90] sm:$0xff]
      %v3300 = vld [vmem:[%s266 + $0x98] sm:$0xff]
      %v3301 = vld [vmem:[%s266 + $0xa0] sm:$0xff]
      %v3302 = vld [vmem:[%s266 + $0xa8] sm:$0xff]
      %v3303 = vld [vmem:[%s266 + $0xb0] sm:$0xff]
      %v3304 = vld [vmem:[%s266 + $0xb8] sm:$0xff]
      %v3305 = vld [vmem:[%s266 + $0xc0] sm:$0xff]
      %v3306 = vld [vmem:[%s266 + $0xc8] sm:$0xff]
      %v3307 = vld [vmem:[%s266 + $0xd0] sm:$0xff]
      %v3308 = vld [vmem:[%s266 + $0xd8] sm:$0xff]
      %v3309 = vld [vmem:[%s266 + $0xe0] sm:$0xff]
      %v3310 = vld [vmem:[%s266 + $0xe8] sm:$0xff]
      %v3311 = vld [vmem:[%s266 + $0xf0] sm:$0xff]
      %v3312 = vld [vmem:[%s266 + $0xf8] sm:$0xff]
      %v3313 = vadd.f32 %v3155, %v3281
      %v3314 = vadd.f32 %v3158, %v3282
      %v3315 = vadd.f32 %v3163, %v3283
      %v3316 = vadd.f32 %v3166, %v3284
      %v3317 = vadd.f32 %v3171, %v3285
      %v3318 = vadd.f32 %v3174, %v3286
      %v3319 = vadd.f32 %v3179, %v3287
      %v3320 = vadd.f32 %v3182, %v3288
      %v3321 = vadd.f32 %v3187, %v3289
      %v3322 = vadd.f32 %v3190, %v3290
      %v3323 = vadd.f32 %v3195, %v3291
      %v3324 = vadd.f32 %v3198, %v3292
      %v3325 = vadd.f32 %v3203, %v3293
      %v3326 = vadd.f32 %v3206, %v3294
      %v3327 = vadd.f32 %v3211, %v3295
      %v3328 = vadd.f32 %v3214, %v3296
      %v3329 = vadd.f32 %v3219, %v3297
      %v3330 = vadd.f32 %v3222, %v3298
      %v3331 = vadd.f32 %v3227, %v3299
      %v3332 = vadd.f32 %v3230, %v3300
      %v3333 = vadd.f32 %v3235, %v3301
      %v3334 = vadd.f32 %v3238, %v3302
      %v3335 = vadd.f32 %v3243, %v3303
      %v3336 = vadd.f32 %v3246, %v3304
      %v3337 = vadd.f32 %v3251, %v3305
      %v3338 = vadd.f32 %v3254, %v3306
      %v3339 = vadd.f32 %v3259, %v3307
      %v3340 = vadd.f32 %v3262, %v3308
      %v3341 = vadd.f32 %v3267, %v3309
      %v3342 = vadd.f32 %v3270, %v3310
      %v3343 = vadd.f32 %v3275, %v3311
      %v3344 = vadd.f32 %v3278, %v3312
      %v3345 = vmax.f32 %v3313, 0.0
      %v3346 = vmax.f32 %v3314, 0.0
      %v3347 = vmax.f32 %v3315, 0.0
      %v3348 = vmax.f32 %v3316, 0.0
      %v3349 = vmax.f32 %v3317, 0.0
      %v3350 = vmax.f32 %v3318, 0.0
      %v3351 = vmax.f32 %v3319, 0.0
      %v3352 = vmax.f32 %v3320, 0.0
      %v3353 = vmax.f32 %v3321, 0.0
      %v3354 = vmax.f32 %v3322, 0.0
      %v3355 = vmax.f32 %v3323, 0.0
      %v3356 = vmax.f32 %v3324, 0.0
      %v3357 = vmax.f32 %v3325, 0.0
      %v3358 = vmax.f32 %v3326, 0.0
      %v3359 = vmax.f32 %v3327, 0.0
      %v3360 = vmax.f32 %v3328, 0.0
      %v3361 = vmax.f32 %v3329, 0.0
      %v3362 = vmax.f32 %v3330, 0.0
      %v3363 = vmax.f32 %v3331, 0.0
      %v3364 = vmax.f32 %v3332, 0.0
      %v3365 = vmax.f32 %v3333, 0.0
      %v3366 = vmax.f32 %v3334, 0.0
      %v3367 = vmax.f32 %v3335, 0.0
      %v3368 = vmax.f32 %v3336, 0.0
      %v3369 = vmax.f32 %v3337, 0.0
      %v3370 = vmax.f32 %v3338, 0.0
      %v3371 = vmax.f32 %v3339, 0.0
      %v3372 = vmax.f32 %v3340, 0.0
      %v3373 = vmax.f32 %v3341, 0.0
      %v3374 = vmax.f32 %v3342, 0.0
      %v3375 = vmax.f32 %v3343, 0.0
      %v3376 = vmax.f32 %v3344, 0.0
      %3377 = vst [vmem:[%s271] sm:$0xff] %v3345
      %3378 = vst [vmem:[%s271 + $0x8] sm:$0xff] %v3346
      %3379 = vst [vmem:[%s271 + $0x10] sm:$0xff] %v3347
      %3380 = vst [vmem:[%s271 + $0x18] sm:$0xff] %v3348
      %3381 = vst [vmem:[%s271 + $0x20] sm:$0xff] %v3349
      %3382 = vst [vmem:[%s271 + $0x28] sm:$0xff] %v3350
      %3383 = vst [vmem:[%s271 + $0x30] sm:$0xff] %v3351
      %3384 = vst [vmem:[%s271 + $0x38] sm:$0xff] %v3352
      %3385 = vst [vmem:[%s271 + $0x40] sm:$0xff] %v3353
      %3386 = vst [vmem:[%s271 + $0x48] sm:$0xff] %v3354
      %3387 = vst [vmem:[%s271 + $0x50] sm:$0xff] %v3355
      %3388 = vst [vmem:[%s271 + $0x58] sm:$0xff] %v3356
      %3389 = vst [vmem:[%s271 + $0x60] sm:$0xff] %v3357
      %3390 = vst [vmem:[%s271 + $0x68] sm:$0xff] %v3358
      %3391 = vst [vmem:[%s271 + $0x70] sm:$0xff] %v3359
      %3392 = vst [vmem:[%s271 + $0x78] sm:$0xff] %v3360
      %3393 = vst [vmem:[%s271 + $0x80] sm:$0xff] %v3361
      %3394 = vst [vmem:[%s271 + $0x88] sm:$0xff] %v3362
      %3395 = vst [vmem:[%s271 + $0x90] sm:$0xff] %v3363
      %3396 = vst [vmem:[%s271 + $0x98] sm:$0xff] %v3364
      %3397 = vst [vmem:[%s271 + $0xa0] sm:$0xff] %v3365
      %3398 = vst [vmem:[%s271 + $0xa8] sm:$0xff] %v3366
      %3399 = vst [vmem:[%s271 + $0xb0] sm:$0xff] %v3367
      %3400 = vst [vmem:[%s271 + $0xb8] sm:$0xff] %v3368
      %3401 = vst [vmem:[%s271 + $0xc0] sm:$0xff] %v3369
      %3402 = vst [vmem:[%s271 + $0xc8] sm:$0xff] %v3370
      %3403 = vst [vmem:[%s271 + $0xd0] sm:$0xff] %v3371
      %3404 = vst [vmem:[%s271 + $0xd8] sm:$0xff] %v3372
      %3405 = vst [vmem:[%s271 + $0xe0] sm:$0xff] %v3373
      %3406 = vst [vmem:[%s271 + $0xe8] sm:$0xff] %v3374
      %3407 = vst [vmem:[%s271 + $0xf0] sm:$0xff] %v3375
      %3408 = vst [vmem:[%s271 + $0xf8] sm:$0xff] %v3376
      %p3409 = scmp.lt.s32.totalorder %s17, 1
      %s3410 = scalar_select %p3409, %s17, 1
      %s3411 = smul.addr %s3410, 32
      %s3412 = smul.addr %s3411, 8
      %s3413 = scalar_lea.vmem %s6, %s3412
      // Predicated region
      $region45: #{bottleneck_forward.3} parent=43 // pred_check
        %p3414 = pneg %p171
      $region46: #{bottleneck_forward.3} parent=43 // pred_check_branch
        %3416 = sbr.rel (%p3414) target = $region48
      $region47: #{bottleneck_forward.3} parent=43 // pred_region
        _
      $region48: #{bottleneck_forward.3} parent=43 // pred_fallthru
        _
    $region44: #{bottleneck_forward.3} parent=5 // pred_fallthru
      _
    %p3417 = scmp.le.s32.totalorder 2, %s12
    // Predicated region
    $region49: #{bottleneck_forward.3} parent=5 // pred_check
      %p3418 = pneg %p3417
    $region50: #{bottleneck_forward.3} parent=5 // pred_check_branch
      %3420 = sbr.rel (%p3418) target = $region52
    $region51: #{bottleneck_forward.3} parent=5 // pred_region
      %s3421 = ssub.s32 %s12, 2
      // Predicated region
      $region53: #{bottleneck_forward.3} parent=51 // pred_check
        %p3422 = pneg %p177
      $region54: #{bottleneck_forward.3} parent=51 // pred_check_branch
        %3424 = sbr.rel (%p3422) target = $region56
      $region55: #{bottleneck_forward.3} parent=51 // pred_region
        %p3425 = scmp.lt.s32.totalorder %s18, 1
        %s3426 = scalar_select %p3425, %s18, 1
        %s3427 = smul.addr %s3426, 32
        %s3428 = smul.addr %s3427, 8
        %s3429 = scalar_lea.vmem %s6, %s3428
      $region56: #{bottleneck_forward.3} parent=51 // pred_fallthru
        _
    $region52: #{bottleneck_forward.3} parent=5 // pred_fallthru
      _
  $region6: #{bottleneck_forward.3} parent=0 // loop_footer
    %s16 = sadd.s32 1, %s12
  $region7: #{bottleneck_forward.3} parent=0 // loop_footer_branch
    %11 = sbr.rel target = $region3
  $region8: #{bottleneck_forward.3} parent=0 // loop_exit
    _

</llo_original>
